<compile_context>
chip_gen: v7x
topology: tpu7x:2x2x1
jax: 0.10.0
libtpu: 0.0.40
codegen_flags: <defaults>
</compile_context>

<pallas_src>
import functools

import jax
import jax.numpy as jnp
from jax.experimental import pallas as pl
from jax.experimental.pallas import tpu as pltpu


def _round_up(x: int, m: int) -> int:
    return (x + m - 1) // m * m


# --------------------------------------------------------------------------
# Generation-aware configuration
# --------------------------------------------------------------------------
def _device_config():
    """Per-TPU-generation tile / VMEM defaults."""
    kind = ""
    try:
        kind = jax.devices()[0].device_kind.lower()
    except Exception:
        pass
    vmem_phys = None
    try:
        vmem_phys = int(pltpu.get_tpu_info().vmem_capacity_bytes)
    except Exception:
        pass

    if "v7" in kind or "7x" in kind:
        cfg = dict(bm=384, bk=512, vmem_target=48 << 20, wbufs=2, cores=2, phys=64 << 20)
    elif "v6" in kind:
        cfg = dict(bm=512, bk=1024, vmem_target=100 << 20, wbufs=2, cores=1, phys=128 << 20)
    elif "v5" in kind:
        cfg = dict(bm=256, bk=1024, vmem_target=100 << 20, wbufs=3, cores=1, phys=128 << 20)
    else:  # unknown generation: conservative defaults
        cfg = dict(bm=256, bk=512, vmem_target=48 << 20, wbufs=2, cores=1, phys=64 << 20)

    if vmem_phys:
        cfg["phys"] = vmem_phys
    cfg["vmem_limit"] = int(min(cfg["vmem_target"], int(cfg["phys"] * 0.85)))
    return cfg


def _fit_tiles(n_tokens, dim, inter_dim, cfg):
    """Pick (bm, bk, dim_p, inter_p) that fit the generation's VMEM budget."""
    dim_p = _round_up(dim, 128)

    bm = max(128, (min(cfg["bm"], _round_up(n_tokens, 128)) // 128) * 128)
    bk = max(128, (min(cfg["bk"], _round_up(inter_dim, 128)) // 128) * 128)

    # Megacore: on multi-TensorCore parts make sure there are >= `cores` token
    # tiles whenever the batch allows it, otherwise the second core idles.
    if cfg["cores"] > 1 and -(-n_tokens // bm) < cfg["cores"] and bm > 128:
        bm = max(128, ((bm // cfg["cores"]) // 128) * 128)

    # Shrink tiles until the buffered working set fits VMEM (8 MiB headroom
    # for compiler-internal scratch).
    budget = cfg["vmem_limit"] - (8 << 20)

    def footprint(bm_, bk_):
        w = cfg["wbufs"] * 6 * bk_ * dim_p        # w13t (dim,2bk) + w2t (bk,dim) bf16, per buffer
        xio = 12 * bm_ * dim_p                    # x + out (bf16, 2 bufs each) + f32 accumulator
        tmp = bm_ * 2 * bk_ * 4 + bm_ * bk_ * 2   # h13 (f32) + gated (bf16) live temporaries
        return w + xio + tmp

    while footprint(bm, bk) > budget and bk > 128:
        bk -= 128
    while footprint(bm, bk) > budget and bm > 128:
        bm -= 128

    inter_p = _round_up(inter_dim, bk)  # pad inter UP to a bk multiple (zeros are inert)
    return bm, bk, dim_p, inter_p


# --------------------------------------------------------------------------
# One-time (load-time) weight prep
# --------------------------------------------------------------------------
def prepare_expert_weights(w1, w2, w3, *, dim_p, inter_p, block_k):
    """Pad, fuse w1/w3 per k-tile, pre-transpose — done ONCE at param load time.

    w1, w3: [inter_dim, dim]  (PyTorch Linear layout)
    w2:     [dim, inter_dim]
    Returns:
      w13t: [dim_p, 2*inter_p]   column tile k = [w1_tile_k ; w3_tile_k]^T
      w2t:  [inter_p, dim_p]
    Zero padding is mathematically inert for SwiGLU: silu(0)*0 = 0.
    """
    inter_dim, dim = w1.shape
    w1p = jnp.pad(w1, ((0, inter_p - inter_dim), (0, dim_p - dim)))
    w3p = jnp.pad(w3, ((0, inter_p - inter_dim), (0, dim_p - dim)))
    w2p = jnp.pad(w2, ((0, dim_p - dim), (0, inter_p - inter_dim)))
    nk = inter_p // block_k
    w13 = jnp.concatenate(
        [w1p.reshape(nk, block_k, dim_p), w3p.reshape(nk, block_k, dim_p)], axis=1
    ).reshape(nk * 2 * block_k, dim_p)
    # One-time transposes so both in-kernel matmuls are plain NN (no per-step
    # XLU transposes on the re-streamed weight tiles).
    return w13.T, w2p.T


# --------------------------------------------------------------------------
# Kernel
# --------------------------------------------------------------------------
def _expert_kernel(x_ref, w13_ref, w2_ref, o_ref, acc_ref, *, bk):
    # x_ref:   (bm, dim_p)      bf16  -- same tile resident across k
    # w13_ref: (dim_p, 2*bk)    bf16  -- fused [w1_k ; w3_k]^T tile
    # w2_ref:  (bk, dim_p)      bf16  -- w2^T rows for this inter tile
    # o_ref:   (bm, dim_p)      bf16  -- written on the last k step
    # acc_ref: (bm, dim_p)      f32   -- VMEM accumulator, resident across k
    k = pl.program_id(1)

    @pl.when(k == 0)
    def _():
        acc_ref[...] = jnp.zeros_like(acc_ref)

    # Fused gate/up projection: one MXU pass over the pre-transposed [w1_k; w3_k].
    h13 = jnp.dot(x_ref[...], w13_ref[...], preferred_element_type=jnp.float32)
    h1 = h13[:, :bk]
    h3 = h13[:, bk:]

    # SiLU(h1) * h3, recast to bf16 (matches the PyTorch bf16 intermediates).
    gated = (h1 * jax.nn.sigmoid(h1) * h3).astype(jnp.bfloat16)

    # Down projection against the pre-transposed w2 tile; accumulate in f32.
    acc_ref[...] += jnp.dot(gated, w2_ref[...], preferred_element_type=jnp.float32)

    @pl.when(k == pl.num_programs(1) - 1)
    def _():
        o_ref[...] = acc_ref[...].astype(o_ref.dtype)


def _weight_spec(shape, index_map, n_buf):
    if n_buf != 2:
        try:
            return pl.BlockSpec(shape, index_map, pipeline_mode=pl.Buffered(n_buf))
        except Exception:
            pass  # pipeline_mode unsupported on this jax: keep default double-buffering
    return pl.BlockSpec(shape, index_map)


@functools.partial(jax.jit, static_argnames=("bm", "bk", "wbufs", "vmem_limit"))
def expert_forward_prepped(x, w13t, w2t, *, bm, bk, wbufs, vmem_limit):
    n_tokens, dim = x.shape
    inter_p, dim_p = w2t.shape
    assert w13t.shape == (dim_p, 2 * inter_p)

    n_pad = _round_up(n_tokens, bm)
    if n_pad != n_tokens or dim_p != dim:
        x = jnp.pad(x, ((0, n_pad - n_tokens), (0, dim_p - dim)))

    grid = (n_pad // bm, inter_p // bk)

    # Weights are re-streamed once per token tile (k innermost); x is read once
    # per i tile; out is written once per i tile.
    cost = pl.CostEstimate(
        flops=int(6 * n_pad * dim_p * inter_p),
        transcendentals=int(n_pad * inter_p),
        bytes_accessed=int(4 * n_pad * dim_p + grid[0] * 6 * dim_p * inter_p),
    )

    out = pl.pallas_call(
        functools.partial(_expert_kernel, bk=bk),
        out_shape=jax.ShapeDtypeStruct((n_pad, dim_p), x.dtype),
        grid_spec=pltpu.PrefetchScalarGridSpec(
            num_scalar_prefetch=0,
            grid=grid,
            in_specs=[
                pl.BlockSpec((bm, dim_p), lambda i, k: (i, 0)),             # x (resident across k)
                _weight_spec((dim_p, 2 * bk), lambda i, k: (0, k), wbufs),  # fused w1/w3 tile
                _weight_spec((bk, dim_p), lambda i, k: (k, 0), wbufs),      # w2^T tile
            ],
            out_specs=pl.BlockSpec((bm, dim_p), lambda i, k: (i, 0)),
            scratch_shapes=[pltpu.VMEM((bm, dim_p), jnp.float32)],
        ),
        compiler_params=pltpu.CompilerParams(
            dimension_semantics=("parallel", "arbitrary"),
            vmem_limit_bytes=int(vmem_limit),
        ),
        cost_estimate=cost,
    )(x, w13t, w2t)

    if n_pad != n_tokens or dim_p != dim:
        out = out[:n_tokens, :dim]
    return out


def expert_forward(x, w1, w2, w3):
    """Convenience one-shot entry point.

    x : [N, dim] bf16, w1/w3: [inter_dim, dim] bf16, w2: [dim, inter_dim] bf16.
    In a real model `prepare_expert_weights` would be called once at parameter
    load time; here it is invoked once per process for the example.
    """
    n_tokens, dim = x.shape
    inter_dim = w1.shape[0]
    assert w1.shape == (inter_dim, dim) and w3.shape == (inter_dim, dim)
    assert w2.shape == (dim, inter_dim)

    cfg = _device_config()
    bm, bk, dim_p, inter_p = _fit_tiles(n_tokens, dim, inter_dim, cfg)
    w13t, w2t = prepare_expert_weights(w1, w2, w3, dim_p=dim_p, inter_p=inter_p, block_k=bk)
    return expert_forward_prepped(
        x, w13t, w2t, bm=bm, bk=bk, wbufs=cfg["wbufs"], vmem_limit=cfg["vmem_limit"]
    )


def expert_reference(x, w1, w2, w3):
    """Pure-JAX reference matching the PyTorch forward (bf16 Linears)."""
    xf = x.astype(jnp.float32)
    h1 = xf @ w1.astype(jnp.float32).T
    h3 = xf @ w3.astype(jnp.float32).T
    gated = (h1 * jax.nn.sigmoid(h1) * h3).astype(jnp.bfloat16).astype(jnp.float32)
    out = gated @ w2.astype(jnp.float32).T
    return out.astype(jnp.bfloat16)


if __name__ == "__main__":
    # Small shapes consistent with the module (dim / moe_inter_dim scaled down).
    # n_tokens is not a multiple of block_m (ragged-token padding path) and
    # inter_dim is not a multiple of block_k (inter-padding path).
    dim = 256
    inter_dim = 1152
    n_tokens = 320

    key = jax.random.PRNGKey(0)
    kx, k1, k2, k3 = jax.random.split(key, 4)

    # Linear.__init__ semantics: randn(out, in) * in**-0.5, bf16.
    w1 = (jax.random.normal(k1, (inter_dim, dim), jnp.float32) * dim ** -0.5).astype(jnp.bfloat16)
    w2 = (jax.random.normal(k2, (dim, inter_dim), jnp.float32) * inter_dim ** -0.5).astype(jnp.bfloat16)
    w3 = (jax.random.normal(k3, (inter_dim, dim), jnp.float32) * dim ** -0.5).astype(jnp.bfloat16)
    x = jax.random.normal(kx, (n_tokens, dim), jnp.float32).astype(jnp.bfloat16)

    out = expert_forward(x, w1, w2, w3)
    out = jax.block_until_ready(out)

    ref = expert_reference(x, w1, w2, w3)
    out_f = out.astype(jnp.float32)
    ref_f = ref.astype(jnp.float32)
    abs_err = float(jnp.max(jnp.abs(out_f - ref_f)))
    rel_err = abs_err / max(float(jnp.max(jnp.abs(ref_f))), 1e-6)

    assert out.shape == (n_tokens, dim) and out.dtype == jnp.bfloat16
    assert abs_err < 1e-1 and rel_err < 2.5e-2, f"mismatch: abs={abs_err} rel={rel_err}"

    print("KERNEL_OK")
</pallas_src>

<mosaic_0001>
module attributes {stable_mosaic.version = 11 : i64} {
  func.func @_expert_kernel(%arg0: i32, %arg1: i32, %arg2: memref<256x256xbf16, #tpu.memory_space<vmem>>, %arg3: memref<256x1024xbf16, #tpu.memory_space<vmem>>, %arg4: memref<512x256xbf16, #tpu.memory_space<vmem>>, %arg5: memref<256x256xbf16, #tpu.memory_space<vmem>>, %arg6: memref<256x256xf32, #tpu.memory_space<vmem>>) attributes {dimension_semantics = [#tpu.dimension_semantics<parallel>, #tpu.dimension_semantics<arbitrary>], iteration_bounds = array<i64: 2, 3>, scalar_prefetch = 0 : i64, scratch_operands = 1 : i64, tpu.core_type = #tpu.core_type<tc>, window_params = [{transform_indices = @transform_0, window_bounds = array<i64: 256, 256>}, {transform_indices = @transform_1, window_bounds = array<i64: 256, 1024>}, {transform_indices = @transform_2, window_bounds = array<i64: 512, 256>}, {transform_indices = @transform_3, window_bounds = array<i64: 256, 256>}]} {
    %c0_i32 = arith.constant 0 : i32
    %0 = arith.cmpi eq, %arg1, %c0_i32 : i32
    %1 = arith.extui %0 : i1 to i32
    %c0_i32_0 = arith.constant 0 : i32
    %2 = arith.cmpi ne, %1, %c0_i32_0 : i32
    scf.if %2 {
      %cst_13 = arith.constant 0.000000e+00 : f32
      %24 = vector.broadcast %cst_13 : f32 to vector<256x256xf32>
      %c0_14 = arith.constant 0 : index
      %c0_15 = arith.constant 0 : index
      %25 = vector.load %arg6[%c0_14, %c0_15] : memref<256x256xf32, #tpu.memory_space<vmem>>, vector<256x256xf32>
      tpu.vector_store %arg6[%c0_14, %c0_15], %24 {strides = array<i32>} : memref<256x256xf32, #tpu.memory_space<vmem>>, vector<256x256xf32>,
    } else {
    }
    %c0 = arith.constant 0 : index
    %c0_1 = arith.constant 0 : index
    %3 = vector.load %arg2[%c0, %c0_1] : memref<256x256xbf16, #tpu.memory_space<vmem>>, vector<256x256xbf16>
    %c0_2 = arith.constant 0 : index
    %c0_3 = arith.constant 0 : index
    %4 = vector.load %arg3[%c0_2, %c0_3] : memref<256x1024xbf16, #tpu.memory_space<vmem>>, vector<256x1024xbf16>
    %cst = arith.constant dense<0.000000e+00> : vector<256x1024xf32>
    %5 = tpu.matmul %3, %4, %cst {dimension_numbers = #tpu.dot_dimension_numbers<[1], [0], [0], [1], [0, 0, 1, 1], [], []>} : vector<256x256xbf16>, vector<256x1024xbf16>, vector<256x1024xf32> -> vector<256x1024xf32>
    %6 = vector.extract_strided_slice %5 {offsets = [0, 0], sizes = [256, 512], strides = [1, 1]} : vector<256x1024xf32> to vector<256x512xf32>
    %7 = vector.extract_strided_slice %5 {offsets = [0, 512], sizes = [256, 512], strides = [1, 1]} : vector<256x1024xf32> to vector<256x512xf32>
    %8 = arith.negf %6 : vector<256x512xf32>
    %9 = math.exp %8 : vector<256x512xf32>
    %cst_4 = arith.constant 1.000000e+00 : f32
    %10 = vector.broadcast %cst_4 : f32 to vector<256x512xf32>
    %11 = arith.addf %10, %9 : vector<256x512xf32>
    %12 = arith.divf %10, %11 : vector<256x512xf32>
    %13 = arith.mulf %6, %12 : vector<256x512xf32>
    %14 = arith.mulf %13, %7 : vector<256x512xf32>
    %15 = arith.truncf %14 : vector<256x512xf32> to vector<256x512xbf16>
    %c0_5 = arith.constant 0 : index
    %c0_6 = arith.constant 0 : index
    %16 = vector.load %arg6[%c0_5, %c0_6] : memref<256x256xf32, #tpu.memory_space<vmem>>, vector<256x256xf32>
    %c0_7 = arith.constant 0 : index
    %c0_8 = arith.constant 0 : index
    %17 = vector.load %arg4[%c0_7, %c0_8] : memref<512x256xbf16, #tpu.memory_space<vmem>>, vector<512x256xbf16>
    %cst_9 = arith.constant dense<0.000000e+00> : vector<256x256xf32>
    %18 = tpu.matmul %15, %17, %cst_9 {dimension_numbers = #tpu.dot_dimension_numbers<[1], [0], [0], [1], [0, 0, 1, 1], [], []>} : vector<256x512xbf16>, vector<512x256xbf16>, vector<256x256xf32> -> vector<256x256xf32>
    %19 = arith.addf %16, %18 : vector<256x256xf32>
    %c0_10 = arith.constant 0 : index
    %c0_11 = arith.constant 0 : index
    %20 = vector.load %arg6[%c0_10, %c0_11] : memref<256x256xf32, #tpu.memory_space<vmem>>, vector<256x256xf32>
    tpu.vector_store %arg6[%c0_10, %c0_11], %19 {strides = array<i32>} : memref<256x256xf32, #tpu.memory_space<vmem>>, vector<256x256xf32>,
    %c2_i32 = arith.constant 2 : i32
    %21 = arith.cmpi eq, %arg1, %c2_i32 : i32
    %22 = arith.extui %21 : i1 to i32
    %c0_i32_12 = arith.constant 0 : i32
    %23 = arith.cmpi ne, %22, %c0_i32_12 : i32
    scf.if %23 {
      %c0_13 = arith.constant 0 : index
      %c0_14 = arith.constant 0 : index
      %24 = vector.load %arg6[%c0_13, %c0_14] : memref<256x256xf32, #tpu.memory_space<vmem>>, vector<256x256xf32>
      %25 = arith.truncf %24 : vector<256x256xf32> to vector<256x256xbf16>
      %c0_15 = arith.constant 0 : index
      %c0_16 = arith.constant 0 : index
      %26 = vector.load %arg5[%c0_15, %c0_16] : memref<256x256xbf16, #tpu.memory_space<vmem>>, vector<256x256xbf16>
      tpu.vector_store %arg5[%c0_15, %c0_16], %25 {strides = array<i32>} : memref<256x256xbf16, #tpu.memory_space<vmem>>, vector<256x256xbf16>,
    } else {
    }
    return
  }
  func.func @transform_0(%arg0: i32, %arg1: i32) -> (i32, i32) {
    %c0_i32 = arith.constant 0 : i32
    %c0_i32_0 = arith.constant 0 : i32
    return %arg0, %c0_i32 : i32, i32
  }
  func.func @transform_1(%arg0: i32, %arg1: i32) -> (i32, i32) {
    %c0_i32 = arith.constant 0 : i32
    %c0_i32_0 = arith.constant 0 : i32
    return %c0_i32, %arg1 : i32, i32
  }
  func.func @transform_2(%arg0: i32, %arg1: i32) -> (i32, i32) {
    %c0_i32 = arith.constant 0 : i32
    %c0_i32_0 = arith.constant 0 : i32
    return %arg1, %c0_i32 : i32, i32
  }
  func.func @transform_3(%arg0: i32, %arg1: i32) -> (i32, i32) {
    %c0_i32 = arith.constant 0 : i32
    %c0_i32_0 = arith.constant 0 : i32
    return %arg0, %c0_i32 : i32, i32
  }
}

</mosaic_0001>

<llo_original>
// kernel: expert_forward_prepped.1
$region0: #{expert_forward_prepped.1}
  #allocation0 [shape = 'u32[]', space=smem, size = 0x4, offset = 0x4, fixed_abs, tag = 'smem constant byte address 0x4 - core index']
  #allocation1 [shape = 'u32[144,128]{1,0:T(1,128)}', space=vmem, size = 0x12000, scoped, tag = 'internal scratch']
  #allocation2 [shape = 'f32[256,256]{1,0:T(8,128)}', space=vmem, size = 0x40000, scoped, tag = 'scratch operand']
  %s0 = inlined_call_operand.vmem [shape: bf16[512,256], index: 0, kind: input, shape index: {}]
  %s1 = inlined_call_operand.hbm [shape: bf16[256,3072], index: 1, kind: input, shape index: {}]
  %s2 = inlined_call_operand.hbm [shape: bf16[1536,256], index: 2, kind: input, shape index: {}]
  %s3 = inlined_call_operand.vmem [shape: bf16[512,256], index: 3, kind: output, shape index: {}]
  %s4 = sld [smem:[#allocation0]]
  $region61: #{expert_forward_prepped.1} parent=0
    _
  %s6 = ssub.s32 1, %s4
  %s7 = scalar_select 0, %s6, %s4
  $region1: #{expert_forward_prepped.1} parent=0
    #allocation3 [shape = 'u8[1048576]{0}', space=vmem, size = 0x100000, scoped, tag = 'input window, operand 1']
    #allocation4 [shape = 's32[2]{0}', space=sflag, size = 0x8, scoped, tag = 'scoped memory for expert_forward_prepped.1']
    #allocation5 [shape = 'u8[524288]{0}', space=vmem, size = 0x80000, scoped, tag = 'input window, operand 2']
    #allocation6 [shape = 's32[2]{0}', space=sflag, size = 0x8, scoped, tag = 'scoped memory for expert_forward_prepped.1']
    %8 = vsyncpa [#allocation4], 0
    %s9 = scalar_lea.sflag [#allocation4], 1
    %10 = vsyncpa %s9, 0
    %11 = vsyncpa [#allocation6], 0
    %s12 = scalar_lea.sflag [#allocation6], 1
    %13 = vsyncpa %s12, 0
    loop: start=0, step=1, limit=8
    $region2: #{expert_forward_prepped.1} parent=1 // loop_pre_header
      _
    $region3: #{expert_forward_prepped.1} parent=1 // loop_header
      %s15 = sphi 0, %s19
      %p16 = scmp.ge.s32.totalorder %s15, 8
      %s22 = sphi 0, %s34
      %s23 = sphi 0, %s30
      %s24 = sphi 0, %s22
      %s25 = sphi 0, %s23
      %s26 = sphi 0, %s24
      %s27 = sphi 0, %s25
      %s37 = sphi 0, %s39
      %s40 = sphi 0, %s37
      %s41 = sphi 0, %s40
      %s57 = sphi 0, %s41
      %s63 = sphi 0, %s65
      %s66 = sphi 0, %s63
      %s67 = sphi 0, %s66
      %s83 = sphi 0, %s67
      %s89 = sphi 0, %s91
      %s92 = sphi 0, %s89
      %s93 = sphi 0, %s92
      %s109 = sphi 0, %s93
      %s115 = sphi 0, %s117
      %s118 = sphi 0, %s115
      %s119 = sphi 0, %s118
      %s135 = sphi 0, %s119
    $region4: #{expert_forward_prepped.1} parent=1 // loop_header_branch
      %18 = sbr.rel (%p16) target = $region8
    $region5: #{expert_forward_prepped.1} parent=1 // loop_body
      %s20 = ssub.s32 %s15, 1
      %s21 = ssub.s32 %s15, 2
      %s28 = sadd.s32 1, %s23
      %p29 = scmp.ge.s32.totalorder %s28, 3
      %s30 = scalar_select %p29, 0, %s28
      %s31 = sadd.s32 1, %s22
      %s32 = scalar_select %p29, %s31, %s22
      %p33 = scmp.ge.s32.totalorder %s32, 2
      %s34 = scalar_select %p33, 0, %s32
      %s35 = ssub.s32 %s22, %s34
      %p36 = scmp.eq.s32.totalorder %s35, 0
      %s38 = sadd.s32 %s37, 1
      %s39 = scalar_select %p36, %s37, %s38
      %p42 = pneg %p36
      %p43 = scmp.eq.s32.totalorder %s15, 5
      %p44 = por %p42, %p43
      %p45 = scmp.ne.s32.totalorder %s37, %s40
      %p46 = scmp.eq.s32.totalorder %s15, 0
      %p47 = por %p45, %p46
      %p48 = scmp.ne.s32.totalorder %s37, %s40
      %p49 = scmp.eq.s32.totalorder %s20, 5
      %p50 = por %p48, %p49
      %p51 = scmp.ne.s32.totalorder %s40, %s41
      %p52 = scmp.eq.s32.totalorder %s20, 0
      %p53 = por %p51, %p52
      %p54 = scmp.ne.s32.totalorder %s40, %s41
      %p55 = scmp.eq.s32.totalorder %s21, 5
      %p56 = por %p54, %p55
      %p58 = scmp.ne.s32.totalorder %s41, %s57
      %p59 = scmp.eq.s32.totalorder %s21, 0
      %p60 = por %p58, %p59
      %s61 = ssub.s32 %s23, %s30
      %p62 = scmp.eq.s32.totalorder %s61, 0
      %s64 = sadd.s32 %s63, 1
      %s65 = scalar_select %p62, %s63, %s64
      %p68 = pneg %p62
      %p69 = scmp.eq.s32.totalorder %s15, 5
      %p70 = por %p68, %p69
      %p71 = scmp.ne.s32.totalorder %s63, %s66
      %p72 = scmp.eq.s32.totalorder %s15, 0
      %p73 = por %p71, %p72
      %p74 = scmp.ne.s32.totalorder %s63, %s66
      %p75 = scmp.eq.s32.totalorder %s20, 5
      %p76 = por %p74, %p75
      %p77 = scmp.ne.s32.totalorder %s66, %s67
      %p78 = scmp.eq.s32.totalorder %s20, 0
      %p79 = por %p77, %p78
      %p80 = scmp.ne.s32.totalorder %s66, %s67
      %p81 = scmp.eq.s32.totalorder %s21, 5
      %p82 = por %p80, %p81
      %p84 = scmp.ne.s32.totalorder %s67, %s83
      %p85 = scmp.eq.s32.totalorder %s21, 0
      %p86 = por %p84, %p85
      %s87 = ssub.s32 %s23, %s30
      %p88 = scmp.eq.s32.totalorder %s87, 0
      %s90 = sadd.s32 %s89, 1
      %s91 = scalar_select %p88, %s89, %s90
      %p94 = pneg %p88
      %p95 = scmp.eq.s32.totalorder %s15, 5
      %p96 = por %p94, %p95
      %p97 = scmp.ne.s32.totalorder %s89, %s92
      %p98 = scmp.eq.s32.totalorder %s15, 0
      %p99 = por %p97, %p98
      %p100 = scmp.ne.s32.totalorder %s89, %s92
      %p101 = scmp.eq.s32.totalorder %s20, 5
      %p102 = por %p100, %p101
      %p103 = scmp.ne.s32.totalorder %s92, %s93
      %p104 = scmp.eq.s32.totalorder %s20, 0
      %p105 = por %p103, %p104
      %p106 = scmp.ne.s32.totalorder %s92, %s93
      %p107 = scmp.eq.s32.totalorder %s21, 5
      %p108 = por %p106, %p107
      %p110 = scmp.ne.s32.totalorder %s93, %s109
      %p111 = scmp.eq.s32.totalorder %s21, 0
      %p112 = por %p110, %p111
      %s113 = ssub.s32 %s22, %s34
      %p114 = scmp.eq.s32.totalorder %s113, 0
      %s116 = sadd.s32 %s115, 1
      %s117 = scalar_select %p114, %s115, %s116
      %p120 = pneg %p114
      %p121 = scmp.eq.s32.totalorder %s15, 5
      %p122 = por %p120, %p121
      %p123 = scmp.ne.s32.totalorder %s115, %s118
      %p124 = scmp.eq.s32.totalorder %s15, 0
      %p125 = por %p123, %p124
      %p126 = scmp.ne.s32.totalorder %s115, %s118
      %p127 = scmp.eq.s32.totalorder %s20, 5
      %p128 = por %p126, %p127
      %p129 = scmp.ne.s32.totalorder %s118, %s119
      %p130 = scmp.eq.s32.totalorder %s20, 0
      %p131 = por %p129, %p130
      %p132 = scmp.ne.s32.totalorder %s118, %s119
      %p133 = scmp.eq.s32.totalorder %s21, 5
      %p134 = por %p132, %p133
      %p136 = scmp.ne.s32.totalorder %s119, %s135
      %p137 = scmp.eq.s32.totalorder %s21, 0
      %p138 = por %p136, %p137
      %p139 = scmp.le.s32.totalorder 1, %s15
      %p140 = scmp.lt.s32.totalorder %s15, 7
      %p141 = pnand %p139, %p140
      %p142 = pneg %p141
      // Predicated region
      $region9: #{expert_forward_prepped.1} parent=5 // pred_check
        _
      $region10: #{expert_forward_prepped.1} parent=5 // pred_check_branch
        %144 = sbr.rel (%p141) target = $region12
      $region11: #{expert_forward_prepped.1} parent=5 // pred_region
        %s145 = ssub.s32 %s15, 1
      $region12: #{expert_forward_prepped.1} parent=5 // pred_fallthru
        _
      %p146 = scmp.lt.s32.totalorder %s15, 6
      // Predicated region
      $region13: #{expert_forward_prepped.1} parent=5 // pred_check
        %p147 = pneg %p146
      $region14: #{expert_forward_prepped.1} parent=5 // pred_check_branch
        %149 = sbr.rel (%p147) target = $region16
      $region15: #{expert_forward_prepped.1} parent=5 // pred_region
        // Predicated region
        $region17: #{expert_forward_prepped.1} parent=15 // pred_check
          %p150 = pneg %p47
        $region18: #{expert_forward_prepped.1} parent=15 // pred_check_branch
          %152 = sbr.rel (%p150) target = $region20
        $region19: #{expert_forward_prepped.1} parent=15 // pred_region
          %s153 = smul.u32 32, %s22
          %p154 = scmp.lt.s32.totalorder %s153, 63
          %s155 = scalar_select %p154, %s153, 63
          %s156 = smul.addr %s155, 2
          %s157 = smul.addr %s156, 4
          %s158 = scalar_lea.vmem %s0, %s157
          %s159 = smul.u32 32, %s22
        $region20: #{expert_forward_prepped.1} parent=15 // pred_fallthru
          _
        // Predicated region
        $region21: #{expert_forward_prepped.1} parent=15 // pred_check
          %p160 = pneg %p73
        $region22: #{expert_forward_prepped.1} parent=15 // pred_check_branch
          %162 = sbr.rel (%p160) target = $region24
        $region23: #{expert_forward_prepped.1} parent=15 // pred_region
          %s163 = sand.u32 %s63, 1
          %s164 = scalar_lea.sflag [#allocation4], %s163
          %s165 = sand.u32 %s63, 1
          %s166 = smul.addr %s165, 1024
          %s167 = scalar_lea.vmem [#allocation3], %s166
          %s168 = smul.u32 8, %s23
          %s170 = ssub.s32 16384, 16384
          %171 = vsyncadd %s164, %s170
          %s172 = smul.addr %s168, 64
          %s173 = scalar_lea.hbm %s1, %s172
          %s174 = sshll.u32 %s167, 4
          %s175 = int_to_ptr.vmem [resolvable:$true] %s174
          %180 = dma.hbm_to_vmem [thread:$0]  %s173, 16384, %s175, %s164, 1536, 512, 32
        $region24: #{expert_forward_prepped.1} parent=15 // pred_fallthru
          _
        // Predicated region
        $region25: #{expert_forward_prepped.1} parent=15 // pred_check
          %p181 = pneg %p99
        $region26: #{expert_forward_prepped.1} parent=15 // pred_check_branch
          %183 = sbr.rel (%p181) target = $region28
        $region27: #{expert_forward_prepped.1} parent=15 // pred_region
          %s184 = sand.u32 %s89, 1
          %s185 = scalar_lea.sflag [#allocation6], %s184
          %s186 = sand.u32 %s89, 1
          %s187 = smul.addr %s186, 512
          %s188 = scalar_lea.vmem [#allocation5], %s187
          %s189 = smul.u32 64, %s23
          %s191 = ssub.s32 8192, 8192
          %192 = vsyncadd %s185, %s191
          %s193 = smul.addr %s189, 2
          %s194 = smul.addr %s193, 64
          %s195 = scalar_lea.hbm %s2, %s194
          %s196 = sshll.u32 %s188, 4
          %s197 = int_to_ptr.vmem [resolvable:$true] %s196
          %202 = dma.hbm_to_vmem [thread:$0]  %s195, 8192, %s197, %s185, 128, 128, 8
        $region28: #{expert_forward_prepped.1} parent=15 // pred_fallthru
          _
      $region16: #{expert_forward_prepped.1} parent=5 // pred_fallthru
        _
      %p203 = scmp.le.s32.totalorder 1, %s15
      %p204 = scmp.lt.s32.totalorder %s15, 7
      %p205 = pnand %p203, %p204
      %p206 = pneg %p205
      // Predicated region
      $region29: #{expert_forward_prepped.1} parent=5 // pred_check
        _
      $region30: #{expert_forward_prepped.1} parent=5 // pred_check_branch
        %208 = sbr.rel (%p205) target = $region32
      $region31: #{expert_forward_prepped.1} parent=5 // pred_region
        %s209 = ssub.s32 %s15, 1
        %s210 = sand.u32 %s66, 1
        %s211 = scalar_lea.sflag [#allocation4], %s210
        %s212 = sand.u32 %s66, 1
        %s213 = smul.addr %s212, 1024
        %s214 = scalar_lea.vmem [#allocation3], %s213
        // Predicated region
        $region33: #{expert_forward_prepped.1} parent=31 // pred_check
          %p215 = pneg %p79
        $region34: #{expert_forward_prepped.1} parent=31 // pred_check_branch
          %217 = sbr.rel (%p215) target = $region36
        $region35: #{expert_forward_prepped.1} parent=31 // pred_region
          %218 = dma.done %s211, 16384
        $region36: #{expert_forward_prepped.1} parent=31 // pred_fallthru
          _
        %s219 = sand.u32 %s92, 1
        %s220 = scalar_lea.sflag [#allocation6], %s219
        %s221 = sand.u32 %s92, 1
        %s222 = smul.addr %s221, 512
        %s223 = scalar_lea.vmem [#allocation5], %s222
        // Predicated region
        $region37: #{expert_forward_prepped.1} parent=31 // pred_check
          %p224 = pneg %p105
        $region38: #{expert_forward_prepped.1} parent=31 // pred_check_branch
          %226 = sbr.rel (%p224) target = $region40
        $region39: #{expert_forward_prepped.1} parent=31 // pred_region
          %227 = dma.done %s220, 8192
        $region40: #{expert_forward_prepped.1} parent=31 // pred_fallthru
          _
        %s228 = smul.u32 32, %s24
        %p229 = scmp.lt.s32.totalorder %s228, 63
        %s230 = scalar_select %p229, %s228, 63
        %s231 = smul.addr %s230, 2
        %s232 = smul.addr %s231, 4
        %s233 = scalar_lea.vmem %s0, %s232
        %p234 = pneg %p53
        %p235 = pneg %p50
        %s236 = sand.u32 %s66, 1
        %s237 = scalar_lea.sflag [#allocation4], %s236
        %s238 = sand.u32 %s66, 1
        %s239 = smul.addr %s238, 1024
        %s240 = scalar_lea.vmem [#allocation3], %s239
        %p241 = pneg %p79
        %p242 = pneg %p76
        %s243 = sand.u32 %s92, 1
        %s244 = scalar_lea.sflag [#allocation6], %s243
        %s245 = sand.u32 %s92, 1
        %s246 = smul.addr %s245, 512
        %s247 = scalar_lea.vmem [#allocation5], %s246
        %p248 = pneg %p105
        %p249 = pneg %p102
        %p250 = pneg %p131
        %p251 = pneg %p128
        %s252 = smul.u32 32, %s24
        %p253 = scmp.lt.s32.totalorder %s252, 63
        %s254 = scalar_select %p253, %s252, 63
        %s255 = smul.addr %s254, 2
        %s256 = smul.addr %s255, 4
        %s257 = scalar_lea.vmem %s3, %s256
        %s258 = smul.u32 32, %s24
        %p259 = scmp.lt.s32.totalorder %s258, 63
        %s260 = scalar_select %p259, %s258, 63
        %s261 = smul.addr %s260, 2
        %s262 = smul.addr %s261, 4
        %s263 = scalar_lea.vmem %s0, %s262
        %s264 = smul.u32 32, %s24
        %s265 = smul.u32 8, %s25
        %s266 = smul.u32 64, %s25
        %s267 = smul.u32 32, %s24
        %p268 = scmp.lt.s32.totalorder %s267, 63
        %s269 = scalar_select %p268, %s267, 63
        %s270 = smul.addr %s269, 2
        %s271 = smul.addr %s270, 4
        %s272 = scalar_lea.vmem %s3, %s271
        %s273 = smul.u32 32, %s24
        %p274 = scmp.eq.s32.totalorder %s25, 0
        // Predicated region
        $region41: #{expert_forward_prepped.1} parent=31 // pred_check
          %p275 = pneg %p274
        $region42: #{expert_forward_prepped.1} parent=31 // pred_check_branch
          %277 = sbr.rel (%p275) target = $region44
        $region43: #{expert_forward_prepped.1} parent=31 // pred_region
          %278 = vst [vmem:[#allocation2] sm:$0xff] 0.0
          %279 = vst [vmem:[#allocation2 + $0x8] sm:$0xff] 0.0
          %280 = vst [vmem:[#allocation2 + $0x10] sm:$0xff] 0.0
          %281 = vst [vmem:[#allocation2 + $0x18] sm:$0xff] 0.0
          %282 = vst [vmem:[#allocation2 + $0x20] sm:$0xff] 0.0
          %283 = vst [vmem:[#allocation2 + $0x28] sm:$0xff] 0.0
          %284 = vst [vmem:[#allocation2 + $0x30] sm:$0xff] 0.0
          %285 = vst [vmem:[#allocation2 + $0x38] sm:$0xff] 0.0
          %286 = vst [vmem:[#allocation2 + $0x40] sm:$0xff] 0.0
          %287 = vst [vmem:[#allocation2 + $0x48] sm:$0xff] 0.0
          %288 = vst [vmem:[#allocation2 + $0x50] sm:$0xff] 0.0
          %289 = vst [vmem:[#allocation2 + $0x58] sm:$0xff] 0.0
          %290 = vst [vmem:[#allocation2 + $0x60] sm:$0xff] 0.0
          %291 = vst [vmem:[#allocation2 + $0x68] sm:$0xff] 0.0
          %292 = vst [vmem:[#allocation2 + $0x70] sm:$0xff] 0.0
          %293 = vst [vmem:[#allocation2 + $0x78] sm:$0xff] 0.0
          %294 = vst [vmem:[#allocation2 + $0x80] sm:$0xff] 0.0
          %295 = vst [vmem:[#allocation2 + $0x88] sm:$0xff] 0.0
          %296 = vst [vmem:[#allocation2 + $0x90] sm:$0xff] 0.0
          %297 = vst [vmem:[#allocation2 + $0x98] sm:$0xff] 0.0
          %298 = vst [vmem:[#allocation2 + $0xa0] sm:$0xff] 0.0
          %299 = vst [vmem:[#allocation2 + $0xa8] sm:$0xff] 0.0
          %300 = vst [vmem:[#allocation2 + $0xb0] sm:$0xff] 0.0
          %301 = vst [vmem:[#allocation2 + $0xb8] sm:$0xff] 0.0
          %302 = vst [vmem:[#allocation2 + $0xc0] sm:$0xff] 0.0
          %303 = vst [vmem:[#allocation2 + $0xc8] sm:$0xff] 0.0
          %304 = vst [vmem:[#allocation2 + $0xd0] sm:$0xff] 0.0
          %305 = vst [vmem:[#allocation2 + $0xd8] sm:$0xff] 0.0
          %306 = vst [vmem:[#allocation2 + $0xe0] sm:$0xff] 0.0
          %307 = vst [vmem:[#allocation2 + $0xe8] sm:$0xff] 0.0
          %308 = vst [vmem:[#allocation2 + $0xf0] sm:$0xff] 0.0
          %309 = vst [vmem:[#allocation2 + $0xf8] sm:$0xff] 0.0
          %310 = vst [vmem:[#allocation2 + $0x100] sm:$0xff] 0.0
          %311 = vst [vmem:[#allocation2 + $0x108] sm:$0xff] 0.0
          %312 = vst [vmem:[#allocation2 + $0x110] sm:$0xff] 0.0
          %313 = vst [vmem:[#allocation2 + $0x118] sm:$0xff] 0.0
          %314 = vst [vmem:[#allocation2 + $0x120] sm:$0xff] 0.0
          %315 = vst [vmem:[#allocation2 + $0x128] sm:$0xff] 0.0
          %316 = vst [vmem:[#allocation2 + $0x130] sm:$0xff] 0.0
          %317 = vst [vmem:[#allocation2 + $0x138] sm:$0xff] 0.0
          %318 = vst [vmem:[#allocation2 + $0x140] sm:$0xff] 0.0
          %319 = vst [vmem:[#allocation2 + $0x148] sm:$0xff] 0.0
          %320 = vst [vmem:[#allocation2 + $0x150] sm:$0xff] 0.0
          %321 = vst [vmem:[#allocation2 + $0x158] sm:$0xff] 0.0
          %322 = vst [vmem:[#allocation2 + $0x160] sm:$0xff] 0.0
          %323 = vst [vmem:[#allocation2 + $0x168] sm:$0xff] 0.0
          %324 = vst [vmem:[#allocation2 + $0x170] sm:$0xff] 0.0
          %325 = vst [vmem:[#allocation2 + $0x178] sm:$0xff] 0.0
          %326 = vst [vmem:[#allocation2 + $0x180] sm:$0xff] 0.0
          %327 = vst [vmem:[#allocation2 + $0x188] sm:$0xff] 0.0
          %328 = vst [vmem:[#allocation2 + $0x190] sm:$0xff] 0.0
          %329 = vst [vmem:[#allocation2 + $0x198] sm:$0xff] 0.0
          %330 = vst [vmem:[#allocation2 + $0x1a0] sm:$0xff] 0.0
          %331 = vst [vmem:[#allocation2 + $0x1a8] sm:$0xff] 0.0
          %332 = vst [vmem:[#allocation2 + $0x1b0] sm:$0xff] 0.0
          %333 = vst [vmem:[#allocation2 + $0x1b8] sm:$0xff] 0.0
          %334 = vst [vmem:[#allocation2 + $0x1c0] sm:$0xff] 0.0
          %335 = vst [vmem:[#allocation2 + $0x1c8] sm:$0xff] 0.0
          %336 = vst [vmem:[#allocation2 + $0x1d0] sm:$0xff] 0.0
          %337 = vst [vmem:[#allocation2 + $0x1d8] sm:$0xff] 0.0
          %338 = vst [vmem:[#allocation2 + $0x1e0] sm:$0xff] 0.0
          %339 = vst [vmem:[#allocation2 + $0x1e8] sm:$0xff] 0.0
          %340 = vst [vmem:[#allocation2 + $0x1f0] sm:$0xff] 0.0
          %341 = vst [vmem:[#allocation2 + $0x1f8] sm:$0xff] 0.0
        $region44: #{expert_forward_prepped.1} parent=31 // pred_fallthru
          _
        %v342 = vld [vmem:[%s263] sm:$0xff]
        %v343 = vld [vmem:[%s263 + $0x8] sm:$0xff]
        %v344 = vld [vmem:[%s263 + $0x10] sm:$0xff]
        %v345 = vld [vmem:[%s263 + $0x18] sm:$0xff]
        %v346 = vld [vmem:[%s263 + $0x20] sm:$0xff]
        %v347 = vld [vmem:[%s263 + $0x28] sm:$0xff]
        %v348 = vld [vmem:[%s263 + $0x30] sm:$0xff]
        %v349 = vld [vmem:[%s263 + $0x38] sm:$0xff]
        %v350 = vld [vmem:[%s263 + $0x40] sm:$0xff]
        %v351 = vld [vmem:[%s263 + $0x48] sm:$0xff]
        %v352 = vld [vmem:[%s263 + $0x50] sm:$0xff]
        %v353 = vld [vmem:[%s263 + $0x58] sm:$0xff]
        %v354 = vld [vmem:[%s263 + $0x60] sm:$0xff]
        %v355 = vld [vmem:[%s263 + $0x68] sm:$0xff]
        %v356 = vld [vmem:[%s263 + $0x70] sm:$0xff]
        %v357 = vld [vmem:[%s263 + $0x78] sm:$0xff]
        %v358 = vld [vmem:[%s263 + $0x80] sm:$0xff]
        %v359 = vld [vmem:[%s263 + $0x88] sm:$0xff]
        %v360 = vld [vmem:[%s263 + $0x90] sm:$0xff]
        %v361 = vld [vmem:[%s263 + $0x98] sm:$0xff]
        %v362 = vld [vmem:[%s263 + $0xa0] sm:$0xff]
        %v363 = vld [vmem:[%s263 + $0xa8] sm:$0xff]
        %v364 = vld [vmem:[%s263 + $0xb0] sm:$0xff]
        %v365 = vld [vmem:[%s263 + $0xb8] sm:$0xff]
        %v366 = vld [vmem:[%s263 + $0xc0] sm:$0xff]
        %v367 = vld [vmem:[%s263 + $0xc8] sm:$0xff]
        %v368 = vld [vmem:[%s263 + $0xd0] sm:$0xff]
        %v369 = vld [vmem:[%s263 + $0xd8] sm:$0xff]
        %v370 = vld [vmem:[%s263 + $0xe0] sm:$0xff]
        %v371 = vld [vmem:[%s263 + $0xe8] sm:$0xff]
        %v372 = vld [vmem:[%s263 + $0xf0] sm:$0xff]
        %v373 = vld [vmem:[%s263 + $0xf8] sm:$0xff]
        %v374 = vld [vmem:[%s214] sm:$0xff]
        %v375 = vld [vmem:[%s214 + $0x8] sm:$0xff]
        %v376 = vld [vmem:[%s214 + $0x10] sm:$0xff]
        %v377 = vld [vmem:[%s214 + $0x18] sm:$0xff]
        %v378 = vld [vmem:[%s214 + $0x20] sm:$0xff]
        %v379 = vld [vmem:[%s214 + $0x28] sm:$0xff]
        %v380 = vld [vmem:[%s214 + $0x30] sm:$0xff]
        %v381 = vld [vmem:[%s214 + $0x38] sm:$0xff]
        %v382 = vld [vmem:[%s214 + $0x40] sm:$0xff]
        %v383 = vld [vmem:[%s214 + $0x48] sm:$0xff]
        %v384 = vld [vmem:[%s214 + $0x50] sm:$0xff]
        %v385 = vld [vmem:[%s214 + $0x58] sm:$0xff]
        %v386 = vld [vmem:[%s214 + $0x60] sm:$0xff]
        %v387 = vld [vmem:[%s214 + $0x68] sm:$0xff]
        %v388 = vld [vmem:[%s214 + $0x70] sm:$0xff]
        %v389 = vld [vmem:[%s214 + $0x78] sm:$0xff]
        %v390 = vld [vmem:[%s214 + $0x80] sm:$0xff]
        %v391 = vld [vmem:[%s214 + $0x88] sm:$0xff]
        %v392 = vld [vmem:[%s214 + $0x90] sm:$0xff]
        %v393 = vld [vmem:[%s214 + $0x98] sm:$0xff]
        %v394 = vld [vmem:[%s214 + $0xa0] sm:$0xff]
        %v395 = vld [vmem:[%s214 + $0xa8] sm:$0xff]
        %v396 = vld [vmem:[%s214 + $0xb0] sm:$0xff]
        %v397 = vld [vmem:[%s214 + $0xb8] sm:$0xff]
        %v398 = vld [vmem:[%s214 + $0xc0] sm:$0xff]
        %v399 = vld [vmem:[%s214 + $0xc8] sm:$0xff]
        %v400 = vld [vmem:[%s214 + $0xd0] sm:$0xff]
        %v401 = vld [vmem:[%s214 + $0xd8] sm:$0xff]
        %v402 = vld [vmem:[%s214 + $0xe0] sm:$0xff]
        %v403 = vld [vmem:[%s214 + $0xe8] sm:$0xff]
        %v404 = vld [vmem:[%s214 + $0xf0] sm:$0xff]
        %v405 = vld [vmem:[%s214 + $0xf8] sm:$0xff]
        %v406 = vld [vmem:[%s214 + $0x100] sm:$0xff]
        %v407 = vld [vmem:[%s214 + $0x108] sm:$0xff]
        %v408 = vld [vmem:[%s214 + $0x110] sm:$0xff]
        %v409 = vld [vmem:[%s214 + $0x118] sm:$0xff]
        %v410 = vld [vmem:[%s214 + $0x120] sm:$0xff]
        %v411 = vld [vmem:[%s214 + $0x128] sm:$0xff]
        %v412 = vld [vmem:[%s214 + $0x130] sm:$0xff]
        %v413 = vld [vmem:[%s214 + $0x138] sm:$0xff]
        %v414 = vld [vmem:[%s214 + $0x140] sm:$0xff]
        %v415 = vld [vmem:[%s214 + $0x148] sm:$0xff]
        %v416 = vld [vmem:[%s214 + $0x150] sm:$0xff]
        %v417 = vld [vmem:[%s214 + $0x158] sm:$0xff]
        %v418 = vld [vmem:[%s214 + $0x160] sm:$0xff]
        %v419 = vld [vmem:[%s214 + $0x168] sm:$0xff]
        %v420 = vld [vmem:[%s214 + $0x170] sm:$0xff]
        %v421 = vld [vmem:[%s214 + $0x178] sm:$0xff]
        %v422 = vld [vmem:[%s214 + $0x180] sm:$0xff]
        %v423 = vld [vmem:[%s214 + $0x188] sm:$0xff]
        %v424 = vld [vmem:[%s214 + $0x190] sm:$0xff]
        %v425 = vld [vmem:[%s214 + $0x198] sm:$0xff]
        %v426 = vld [vmem:[%s214 + $0x1a0] sm:$0xff]
        %v427 = vld [vmem:[%s214 + $0x1a8] sm:$0xff]
        %v428 = vld [vmem:[%s214 + $0x1b0] sm:$0xff]
        %v429 = vld [vmem:[%s214 + $0x1b8] sm:$0xff]
        %v430 = vld [vmem:[%s214 + $0x1c0] sm:$0xff]
        %v431 = vld [vmem:[%s214 + $0x1c8] sm:$0xff]
        %v432 = vld [vmem:[%s214 + $0x1d0] sm:$0xff]
        %v433 = vld [vmem:[%s214 + $0x1d8] sm:$0xff]
        %v434 = vld [vmem:[%s214 + $0x1e0] sm:$0xff]
        %v435 = vld [vmem:[%s214 + $0x1e8] sm:$0xff]
        %v436 = vld [vmem:[%s214 + $0x1f0] sm:$0xff]
        %v437 = vld [vmem:[%s214 + $0x1f8] sm:$0xff]
        %v438 = vld [vmem:[%s214 + $0x200] sm:$0xff]
        %v439 = vld [vmem:[%s214 + $0x208] sm:$0xff]
        %v440 = vld [vmem:[%s214 + $0x210] sm:$0xff]
        %v441 = vld [vmem:[%s214 + $0x218] sm:$0xff]
        %v442 = vld [vmem:[%s214 + $0x220] sm:$0xff]
        %v443 = vld [vmem:[%s214 + $0x228] sm:$0xff]
        %v444 = vld [vmem:[%s214 + $0x230] sm:$0xff]
        %v445 = vld [vmem:[%s214 + $0x238] sm:$0xff]
        %v446 = vld [vmem:[%s214 + $0x240] sm:$0xff]
        %v447 = vld [vmem:[%s214 + $0x248] sm:$0xff]
        %v448 = vld [vmem:[%s214 + $0x250] sm:$0xff]
        %v449 = vld [vmem:[%s214 + $0x258] sm:$0xff]
        %v450 = vld [vmem:[%s214 + $0x260] sm:$0xff]
        %v451 = vld [vmem:[%s214 + $0x268] sm:$0xff]
        %v452 = vld [vmem:[%s214 + $0x270] sm:$0xff]
        %v453 = vld [vmem:[%s214 + $0x278] sm:$0xff]
        %v454 = vld [vmem:[%s214 + $0x280] sm:$0xff]
        %v455 = vld [vmem:[%s214 + $0x288] sm:$0xff]
        %v456 = vld [vmem:[%s214 + $0x290] sm:$0xff]
        %v457 = vld [vmem:[%s214 + $0x298] sm:$0xff]
        %v458 = vld [vmem:[%s214 + $0x2a0] sm:$0xff]
        %v459 = vld [vmem:[%s214 + $0x2a8] sm:$0xff]
        %v460 = vld [vmem:[%s214 + $0x2b0] sm:$0xff]
        %v461 = vld [vmem:[%s214 + $0x2b8] sm:$0xff]
        %v462 = vld [vmem:[%s214 + $0x2c0] sm:$0xff]
        %v463 = vld [vmem:[%s214 + $0x2c8] sm:$0xff]
        %v464 = vld [vmem:[%s214 + $0x2d0] sm:$0xff]
        %v465 = vld [vmem:[%s214 + $0x2d8] sm:$0xff]
        %v466 = vld [vmem:[%s214 + $0x2e0] sm:$0xff]
        %v467 = vld [vmem:[%s214 + $0x2e8] sm:$0xff]
        %v468 = vld [vmem:[%s214 + $0x2f0] sm:$0xff]
        %v469 = vld [vmem:[%s214 + $0x2f8] sm:$0xff]
        %v470 = vld [vmem:[%s214 + $0x300] sm:$0xff]
        %v471 = vld [vmem:[%s214 + $0x308] sm:$0xff]
        %v472 = vld [vmem:[%s214 + $0x310] sm:$0xff]
        %v473 = vld [vmem:[%s214 + $0x318] sm:$0xff]
        %v474 = vld [vmem:[%s214 + $0x320] sm:$0xff]
        %v475 = vld [vmem:[%s214 + $0x328] sm:$0xff]
        %v476 = vld [vmem:[%s214 + $0x330] sm:$0xff]
        %v477 = vld [vmem:[%s214 + $0x338] sm:$0xff]
        %v478 = vld [vmem:[%s214 + $0x340] sm:$0xff]
        %v479 = vld [vmem:[%s214 + $0x348] sm:$0xff]
        %v480 = vld [vmem:[%s214 + $0x350] sm:$0xff]
        %v481 = vld [vmem:[%s214 + $0x358] sm:$0xff]
        %v482 = vld [vmem:[%s214 + $0x360] sm:$0xff]
        %v483 = vld [vmem:[%s214 + $0x368] sm:$0xff]
        %v484 = vld [vmem:[%s214 + $0x370] sm:$0xff]
        %v485 = vld [vmem:[%s214 + $0x378] sm:$0xff]
        %v486 = vld [vmem:[%s214 + $0x380] sm:$0xff]
        %v487 = vld [vmem:[%s214 + $0x388] sm:$0xff]
        %v488 = vld [vmem:[%s214 + $0x390] sm:$0xff]
        %v489 = vld [vmem:[%s214 + $0x398] sm:$0xff]
        %v490 = vld [vmem:[%s214 + $0x3a0] sm:$0xff]
        %v491 = vld [vmem:[%s214 + $0x3a8] sm:$0xff]
        %v492 = vld [vmem:[%s214 + $0x3b0] sm:$0xff]
        %v493 = vld [vmem:[%s214 + $0x3b8] sm:$0xff]
        %v494 = vld [vmem:[%s214 + $0x3c0] sm:$0xff]
        %v495 = vld [vmem:[%s214 + $0x3c8] sm:$0xff]
        %v496 = vld [vmem:[%s214 + $0x3d0] sm:$0xff]
        %v497 = vld [vmem:[%s214 + $0x3d8] sm:$0xff]
        %v498 = vld [vmem:[%s214 + $0x3e0] sm:$0xff]
        %v499 = vld [vmem:[%s214 + $0x3e8] sm:$0xff]
        %v500 = vld [vmem:[%s214 + $0x3f0] sm:$0xff]
        %v501 = vld [vmem:[%s214 + $0x3f8] sm:$0xff]
        %v534 = vunpack.c.l.b16 %v342
        %v535 = vunpack.c.h.b16 %v342
        %v536 = vunpack.c.l.b16 %v343
        %v537 = vunpack.c.h.b16 %v343
        %v538 = vunpack.c.l.b16 %v344
        %v539 = vunpack.c.h.b16 %v344
        %v540 = vunpack.c.l.b16 %v345
        %v541 = vunpack.c.h.b16 %v345
        %v542 = vunpack.c.l.b16 %v346
        %v543 = vunpack.c.h.b16 %v346
        %v544 = vunpack.c.l.b16 %v347
        %v545 = vunpack.c.h.b16 %v347
        %v546 = vunpack.c.l.b16 %v348
        %v547 = vunpack.c.h.b16 %v348
        %v548 = vunpack.c.l.b16 %v349
        %v549 = vunpack.c.h.b16 %v349
        %v550 = vunpack.c.l.b16 %v350
        %v551 = vunpack.c.h.b16 %v350
        %v552 = vunpack.c.l.b16 %v351
        %v553 = vunpack.c.h.b16 %v351
        %v554 = vunpack.c.l.b16 %v352
        %v555 = vunpack.c.h.b16 %v352
        %v556 = vunpack.c.l.b16 %v353
        %v557 = vunpack.c.h.b16 %v353
        %v558 = vunpack.c.l.b16 %v354
        %v559 = vunpack.c.h.b16 %v354
        %v560 = vunpack.c.l.b16 %v355
        %v561 = vunpack.c.h.b16 %v355
        %v562 = vunpack.c.l.b16 %v356
        %v563 = vunpack.c.h.b16 %v356
        %v564 = vunpack.c.l.b16 %v357
        %v565 = vunpack.c.h.b16 %v357
        %v566 = vunpack.c.l.b16 %v358
        %v567 = vunpack.c.h.b16 %v358
        %v568 = vunpack.c.l.b16 %v359
        %v569 = vunpack.c.h.b16 %v359
        %v570 = vunpack.c.l.b16 %v360
        %v571 = vunpack.c.h.b16 %v360
        %v572 = vunpack.c.l.b16 %v361
        %v573 = vunpack.c.h.b16 %v361
        %v574 = vunpack.c.l.b16 %v362
        %v575 = vunpack.c.h.b16 %v362
        %v576 = vunpack.c.l.b16 %v363
        %v577 = vunpack.c.h.b16 %v363
        %v578 = vunpack.c.l.b16 %v364
        %v579 = vunpack.c.h.b16 %v364
        %v580 = vunpack.c.l.b16 %v365
        %v581 = vunpack.c.h.b16 %v365
        %v582 = vunpack.c.l.b16 %v366
        %v583 = vunpack.c.h.b16 %v366
        %v584 = vunpack.c.l.b16 %v367
        %v585 = vunpack.c.h.b16 %v367
        %v586 = vunpack.c.l.b16 %v368
        %v587 = vunpack.c.h.b16 %v368
        %v588 = vunpack.c.l.b16 %v369
        %v589 = vunpack.c.h.b16 %v369
        %v590 = vunpack.c.l.b16 %v370
        %v591 = vunpack.c.h.b16 %v370
        %v592 = vunpack.c.l.b16 %v371
        %v593 = vunpack.c.h.b16 %v371
        %v594 = vunpack.c.l.b16 %v372
        %v595 = vunpack.c.h.b16 %v372
        %v596 = vunpack.c.l.b16 %v373
        %v597 = vunpack.c.h.b16 %v373
        %v598 = vpack.c.b16 %v536, %v534
        %v599 = vpack.c.b16 %v537, %v535
        %v600 = vpack.c.b16 %v540, %v538
        %v601 = vpack.c.b16 %v541, %v539
        %v602 = vpack.c.b16 %v544, %v542
        %v603 = vpack.c.b16 %v545, %v543
        %v604 = vpack.c.b16 %v548, %v546
        %v605 = vpack.c.b16 %v549, %v547
        %v606 = vpack.c.b16 %v552, %v550
        %v607 = vpack.c.b16 %v553, %v551
        %v608 = vpack.c.b16 %v556, %v554
        %v609 = vpack.c.b16 %v557, %v555
        %v610 = vpack.c.b16 %v560, %v558
        %v611 = vpack.c.b16 %v561, %v559
        %v612 = vpack.c.b16 %v564, %v562
        %v613 = vpack.c.b16 %v565, %v563
        %v614 = vpack.c.b16 %v568, %v566
        %v615 = vpack.c.b16 %v569, %v567
        %v616 = vpack.c.b16 %v572, %v570
        %v617 = vpack.c.b16 %v573, %v571
        %v618 = vpack.c.b16 %v576, %v574
        %v619 = vpack.c.b16 %v577, %v575
        %v620 = vpack.c.b16 %v580, %v578
        %v621 = vpack.c.b16 %v581, %v579
        %v622 = vpack.c.b16 %v584, %v582
        %v623 = vpack.c.b16 %v585, %v583
        %v624 = vpack.c.b16 %v588, %v586
        %v625 = vpack.c.b16 %v589, %v587
        %v626 = vpack.c.b16 %v592, %v590
        %v627 = vpack.c.b16 %v593, %v591
        %v628 = vpack.c.b16 %v596, %v594
        %v629 = vpack.c.b16 %v597, %v595
        %v790 = vunpack.c.l.b16 %v374
        %v791 = vunpack.c.h.b16 %v374
        %v792 = vunpack.c.l.b16 %v375
        %v793 = vunpack.c.h.b16 %v375
        %v794 = vunpack.c.l.b16 %v376
        %v795 = vunpack.c.h.b16 %v376
        %v796 = vunpack.c.l.b16 %v377
        %v797 = vunpack.c.h.b16 %v377
        %v798 = vunpack.c.l.b16 %v378
        %v799 = vunpack.c.h.b16 %v378
        %v800 = vunpack.c.l.b16 %v379
        %v801 = vunpack.c.h.b16 %v379
        %v802 = vunpack.c.l.b16 %v380
        %v803 = vunpack.c.h.b16 %v380
        %v804 = vunpack.c.l.b16 %v381
        %v805 = vunpack.c.h.b16 %v381
        %v806 = vunpack.c.l.b16 %v382
        %v807 = vunpack.c.h.b16 %v382
        %v808 = vunpack.c.l.b16 %v383
        %v809 = vunpack.c.h.b16 %v383
        %v810 = vunpack.c.l.b16 %v384
        %v811 = vunpack.c.h.b16 %v384
        %v812 = vunpack.c.l.b16 %v385
        %v813 = vunpack.c.h.b16 %v385
        %v814 = vunpack.c.l.b16 %v386
        %v815 = vunpack.c.h.b16 %v386
        %v816 = vunpack.c.l.b16 %v387
        %v817 = vunpack.c.h.b16 %v387
        %v818 = vunpack.c.l.b16 %v388
        %v819 = vunpack.c.h.b16 %v388
        %v820 = vunpack.c.l.b16 %v389
        %v821 = vunpack.c.h.b16 %v389
        %v822 = vunpack.c.l.b16 %v390
        %v823 = vunpack.c.h.b16 %v390
        %v824 = vunpack.c.l.b16 %v391
        %v825 = vunpack.c.h.b16 %v391
        %v826 = vunpack.c.l.b16 %v392
        %v827 = vunpack.c.h.b16 %v392
        %v828 = vunpack.c.l.b16 %v393
        %v829 = vunpack.c.h.b16 %v393
        %v830 = vunpack.c.l.b16 %v394
        %v831 = vunpack.c.h.b16 %v394
        %v832 = vunpack.c.l.b16 %v395
        %v833 = vunpack.c.h.b16 %v395
        %v834 = vunpack.c.l.b16 %v396
        %v835 = vunpack.c.h.b16 %v396
        %v836 = vunpack.c.l.b16 %v397
        %v837 = vunpack.c.h.b16 %v397
        %v838 = vunpack.c.l.b16 %v398
        %v839 = vunpack.c.h.b16 %v398
        %v840 = vunpack.c.l.b16 %v399
        %v841 = vunpack.c.h.b16 %v399
        %v842 = vunpack.c.l.b16 %v400
        %v843 = vunpack.c.h.b16 %v400
        %v844 = vunpack.c.l.b16 %v401
        %v845 = vunpack.c.h.b16 %v401
        %v846 = vunpack.c.l.b16 %v402
        %v847 = vunpack.c.h.b16 %v402
        %v848 = vunpack.c.l.b16 %v403
        %v849 = vunpack.c.h.b16 %v403
        %v850 = vunpack.c.l.b16 %v404
        %v851 = vunpack.c.h.b16 %v404
        %v852 = vunpack.c.l.b16 %v405
        %v853 = vunpack.c.h.b16 %v405
        %v854 = vunpack.c.l.b16 %v406
        %v855 = vunpack.c.h.b16 %v406
        %v856 = vunpack.c.l.b16 %v407
        %v857 = vunpack.c.h.b16 %v407
        %v858 = vunpack.c.l.b16 %v408
        %v859 = vunpack.c.h.b16 %v408
        %v860 = vunpack.c.l.b16 %v409
        %v861 = vunpack.c.h.b16 %v409
        %v862 = vunpack.c.l.b16 %v410
        %v863 = vunpack.c.h.b16 %v410
        %v864 = vunpack.c.l.b16 %v411
        %v865 = vunpack.c.h.b16 %v411
        %v866 = vunpack.c.l.b16 %v412
        %v867 = vunpack.c.h.b16 %v412
        %v868 = vunpack.c.l.b16 %v413
        %v869 = vunpack.c.h.b16 %v413
        %v870 = vunpack.c.l.b16 %v414
        %v871 = vunpack.c.h.b16 %v414
        %v872 = vunpack.c.l.b16 %v415
        %v873 = vunpack.c.h.b16 %v415
        %v874 = vunpack.c.l.b16 %v416
        %v875 = vunpack.c.h.b16 %v416
        %v876 = vunpack.c.l.b16 %v417
        %v877 = vunpack.c.h.b16 %v417
        %v878 = vunpack.c.l.b16 %v418
        %v879 = vunpack.c.h.b16 %v418
        %v880 = vunpack.c.l.b16 %v419
        %v881 = vunpack.c.h.b16 %v419
        %v882 = vunpack.c.l.b16 %v420
        %v883 = vunpack.c.h.b16 %v420
        %v884 = vunpack.c.l.b16 %v421
        %v885 = vunpack.c.h.b16 %v421
        %v886 = vunpack.c.l.b16 %v422
        %v887 = vunpack.c.h.b16 %v422
        %v888 = vunpack.c.l.b16 %v423
        %v889 = vunpack.c.h.b16 %v423
        %v890 = vunpack.c.l.b16 %v424
        %v891 = vunpack.c.h.b16 %v424
        %v892 = vunpack.c.l.b16 %v425
        %v893 = vunpack.c.h.b16 %v425
        %v894 = vunpack.c.l.b16 %v426
        %v895 = vunpack.c.h.b16 %v426
        %v896 = vunpack.c.l.b16 %v427
        %v897 = vunpack.c.h.b16 %v427
        %v898 = vunpack.c.l.b16 %v428
        %v899 = vunpack.c.h.b16 %v428
        %v900 = vunpack.c.l.b16 %v429
        %v901 = vunpack.c.h.b16 %v429
        %v902 = vunpack.c.l.b16 %v430
        %v903 = vunpack.c.h.b16 %v430
        %v904 = vunpack.c.l.b16 %v431
        %v905 = vunpack.c.h.b16 %v431
        %v906 = vunpack.c.l.b16 %v432
        %v907 = vunpack.c.h.b16 %v432
        %v908 = vunpack.c.l.b16 %v433
        %v909 = vunpack.c.h.b16 %v433
        %v910 = vunpack.c.l.b16 %v434
        %v911 = vunpack.c.h.b16 %v434
        %v912 = vunpack.c.l.b16 %v435
        %v913 = vunpack.c.h.b16 %v435
        %v914 = vunpack.c.l.b16 %v436
        %v915 = vunpack.c.h.b16 %v436
        %v916 = vunpack.c.l.b16 %v437
        %v917 = vunpack.c.h.b16 %v437
        %v918 = vunpack.c.l.b16 %v438
        %v919 = vunpack.c.h.b16 %v438
        %v920 = vunpack.c.l.b16 %v439
        %v921 = vunpack.c.h.b16 %v439
        %v922 = vunpack.c.l.b16 %v440
        %v923 = vunpack.c.h.b16 %v440
        %v924 = vunpack.c.l.b16 %v441
        %v925 = vunpack.c.h.b16 %v441
        %v926 = vunpack.c.l.b16 %v442
        %v927 = vunpack.c.h.b16 %v442
        %v928 = vunpack.c.l.b16 %v443
        %v929 = vunpack.c.h.b16 %v443
        %v930 = vunpack.c.l.b16 %v444
        %v931 = vunpack.c.h.b16 %v444
        %v932 = vunpack.c.l.b16 %v445
        %v933 = vunpack.c.h.b16 %v445
        %v934 = vunpack.c.l.b16 %v446
        %v935 = vunpack.c.h.b16 %v446
        %v936 = vunpack.c.l.b16 %v447
        %v937 = vunpack.c.h.b16 %v447
        %v938 = vunpack.c.l.b16 %v448
        %v939 = vunpack.c.h.b16 %v448
        %v940 = vunpack.c.l.b16 %v449
        %v941 = vunpack.c.h.b16 %v449
        %v942 = vunpack.c.l.b16 %v450
        %v943 = vunpack.c.h.b16 %v450
        %v944 = vunpack.c.l.b16 %v451
        %v945 = vunpack.c.h.b16 %v451
        %v946 = vunpack.c.l.b16 %v452
        %v947 = vunpack.c.h.b16 %v452
        %v948 = vunpack.c.l.b16 %v453
        %v949 = vunpack.c.h.b16 %v453
        %v950 = vunpack.c.l.b16 %v454
        %v951 = vunpack.c.h.b16 %v454
        %v952 = vunpack.c.l.b16 %v455
        %v953 = vunpack.c.h.b16 %v455
        %v954 = vunpack.c.l.b16 %v456
        %v955 = vunpack.c.h.b16 %v456
        %v956 = vunpack.c.l.b16 %v457
        %v957 = vunpack.c.h.b16 %v457
        %v958 = vunpack.c.l.b16 %v458
        %v959 = vunpack.c.h.b16 %v458
        %v960 = vunpack.c.l.b16 %v459
        %v961 = vunpack.c.h.b16 %v459
        %v962 = vunpack.c.l.b16 %v460
        %v963 = vunpack.c.h.b16 %v460
        %v964 = vunpack.c.l.b16 %v461
        %v965 = vunpack.c.h.b16 %v461
        %v966 = vunpack.c.l.b16 %v462
        %v967 = vunpack.c.h.b16 %v462
        %v968 = vunpack.c.l.b16 %v463
        %v969 = vunpack.c.h.b16 %v463
        %v970 = vunpack.c.l.b16 %v464
        %v971 = vunpack.c.h.b16 %v464
        %v972 = vunpack.c.l.b16 %v465
        %v973 = vunpack.c.h.b16 %v465
        %v974 = vunpack.c.l.b16 %v466
        %v975 = vunpack.c.h.b16 %v466
        %v976 = vunpack.c.l.b16 %v467
        %v977 = vunpack.c.h.b16 %v467
        %v978 = vunpack.c.l.b16 %v468
        %v979 = vunpack.c.h.b16 %v468
        %v980 = vunpack.c.l.b16 %v469
        %v981 = vunpack.c.h.b16 %v469
        %v982 = vunpack.c.l.b16 %v470
        %v983 = vunpack.c.h.b16 %v470
        %v984 = vunpack.c.l.b16 %v471
        %v985 = vunpack.c.h.b16 %v471
        %v986 = vunpack.c.l.b16 %v472
        %v987 = vunpack.c.h.b16 %v472
        %v988 = vunpack.c.l.b16 %v473
        %v989 = vunpack.c.h.b16 %v473
        %v990 = vunpack.c.l.b16 %v474
        %v991 = vunpack.c.h.b16 %v474
        %v992 = vunpack.c.l.b16 %v475
        %v993 = vunpack.c.h.b16 %v475
        %v994 = vunpack.c.l.b16 %v476
        %v995 = vunpack.c.h.b16 %v476
        %v996 = vunpack.c.l.b16 %v477
        %v997 = vunpack.c.h.b16 %v477
        %v998 = vunpack.c.l.b16 %v478
        %v999 = vunpack.c.h.b16 %v478
        %v1000 = vunpack.c.l.b16 %v479
        %v1001 = vunpack.c.h.b16 %v479
        %v1002 = vunpack.c.l.b16 %v480
        %v1003 = vunpack.c.h.b16 %v480
        %v1004 = vunpack.c.l.b16 %v481
        %v1005 = vunpack.c.h.b16 %v481
        %v1006 = vunpack.c.l.b16 %v482
        %v1007 = vunpack.c.h.b16 %v482
        %v1008 = vunpack.c.l.b16 %v483
        %v1009 = vunpack.c.h.b16 %v483
        %v1010 = vunpack.c.l.b16 %v484
        %v1011 = vunpack.c.h.b16 %v484
        %v1012 = vunpack.c.l.b16 %v485
        %v1013 = vunpack.c.h.b16 %v485
        %v1014 = vunpack.c.l.b16 %v486
        %v1015 = vunpack.c.h.b16 %v486
        %v1016 = vunpack.c.l.b16 %v487
        %v1017 = vunpack.c.h.b16 %v487
        %v1018 = vunpack.c.l.b16 %v488
        %v1019 = vunpack.c.h.b16 %v488
        %v1020 = vunpack.c.l.b16 %v489
        %v1021 = vunpack.c.h.b16 %v489
        %v1022 = vunpack.c.l.b16 %v490
        %v1023 = vunpack.c.h.b16 %v490
        %v1024 = vunpack.c.l.b16 %v491
        %v1025 = vunpack.c.h.b16 %v491
        %v1026 = vunpack.c.l.b16 %v492
        %v1027 = vunpack.c.h.b16 %v492
        %v1028 = vunpack.c.l.b16 %v493
        %v1029 = vunpack.c.h.b16 %v493
        %v1030 = vunpack.c.l.b16 %v494
        %v1031 = vunpack.c.h.b16 %v494
        %v1032 = vunpack.c.l.b16 %v495
        %v1033 = vunpack.c.h.b16 %v495
        %v1034 = vunpack.c.l.b16 %v496
        %v1035 = vunpack.c.h.b16 %v496
        %v1036 = vunpack.c.l.b16 %v497
        %v1037 = vunpack.c.h.b16 %v497
        %v1038 = vunpack.c.l.b16 %v498
        %v1039 = vunpack.c.h.b16 %v498
        %v1040 = vunpack.c.l.b16 %v499
        %v1041 = vunpack.c.h.b16 %v499
        %v1042 = vunpack.c.l.b16 %v500
        %v1043 = vunpack.c.h.b16 %v500
        %v1044 = vunpack.c.l.b16 %v501
        %v1045 = vunpack.c.h.b16 %v501
        %v1046 = vpack.c.b16 %v798, %v790
        %v1047 = vpack.c.b16 %v799, %v791
        %v1048 = vpack.c.b16 %v800, %v792
        %v1049 = vpack.c.b16 %v801, %v793
        %v1050 = vpack.c.b16 %v802, %v794
        %v1051 = vpack.c.b16 %v803, %v795
        %v1052 = vpack.c.b16 %v804, %v796
        %v1053 = vpack.c.b16 %v805, %v797
        %v1054 = vpack.c.b16 %v814, %v806
        %v1055 = vpack.c.b16 %v815, %v807
        %v1056 = vpack.c.b16 %v816, %v808
        %v1057 = vpack.c.b16 %v817, %v809
        %v1058 = vpack.c.b16 %v818, %v810
        %v1059 = vpack.c.b16 %v819, %v811
        %v1060 = vpack.c.b16 %v820, %v812
        %v1061 = vpack.c.b16 %v821, %v813
        %v1062 = vpack.c.b16 %v830, %v822
        %v1063 = vpack.c.b16 %v831, %v823
        %v1064 = vpack.c.b16 %v832, %v824
        %v1065 = vpack.c.b16 %v833, %v825
        %v1066 = vpack.c.b16 %v834, %v826
        %v1067 = vpack.c.b16 %v835, %v827
        %v1068 = vpack.c.b16 %v836, %v828
        %v1069 = vpack.c.b16 %v837, %v829
        %v1070 = vpack.c.b16 %v846, %v838
        %v1071 = vpack.c.b16 %v847, %v839
        %v1072 = vpack.c.b16 %v848, %v840
        %v1073 = vpack.c.b16 %v849, %v841
        %v1074 = vpack.c.b16 %v850, %v842
        %v1075 = vpack.c.b16 %v851, %v843
        %v1076 = vpack.c.b16 %v852, %v844
        %v1077 = vpack.c.b16 %v853, %v845
        %v1078 = vpack.c.b16 %v862, %v854
        %v1079 = vpack.c.b16 %v863, %v855
        %v1080 = vpack.c.b16 %v864, %v856
        %v1081 = vpack.c.b16 %v865, %v857
        %v1082 = vpack.c.b16 %v866, %v858
        %v1083 = vpack.c.b16 %v867, %v859
        %v1084 = vpack.c.b16 %v868, %v860
        %v1085 = vpack.c.b16 %v869, %v861
        %v1086 = vpack.c.b16 %v878, %v870
        %v1087 = vpack.c.b16 %v879, %v871
        %v1088 = vpack.c.b16 %v880, %v872
        %v1089 = vpack.c.b16 %v881, %v873
        %v1090 = vpack.c.b16 %v882, %v874
        %v1091 = vpack.c.b16 %v883, %v875
        %v1092 = vpack.c.b16 %v884, %v876
        %v1093 = vpack.c.b16 %v885, %v877
        %v1094 = vpack.c.b16 %v894, %v886
        %v1095 = vpack.c.b16 %v895, %v887
        %v1096 = vpack.c.b16 %v896, %v888
        %v1097 = vpack.c.b16 %v897, %v889
        %v1098 = vpack.c.b16 %v898, %v890
        %v1099 = vpack.c.b16 %v899, %v891
        %v1100 = vpack.c.b16 %v900, %v892
        %v1101 = vpack.c.b16 %v901, %v893
        %v1102 = vpack.c.b16 %v910, %v902
        %v1103 = vpack.c.b16 %v911, %v903
        %v1104 = vpack.c.b16 %v912, %v904
        %v1105 = vpack.c.b16 %v913, %v905
        %v1106 = vpack.c.b16 %v914, %v906
        %v1107 = vpack.c.b16 %v915, %v907
        %v1108 = vpack.c.b16 %v916, %v908
        %v1109 = vpack.c.b16 %v917, %v909
        %v1110 = vpack.c.b16 %v926, %v918
        %v1111 = vpack.c.b16 %v927, %v919
        %v1112 = vpack.c.b16 %v928, %v920
        %v1113 = vpack.c.b16 %v929, %v921
        %v1114 = vpack.c.b16 %v930, %v922
        %v1115 = vpack.c.b16 %v931, %v923
        %v1116 = vpack.c.b16 %v932, %v924
        %v1117 = vpack.c.b16 %v933, %v925
        %v1118 = vpack.c.b16 %v942, %v934
        %v1119 = vpack.c.b16 %v943, %v935
        %v1120 = vpack.c.b16 %v944, %v936
        %v1121 = vpack.c.b16 %v945, %v937
        %v1122 = vpack.c.b16 %v946, %v938
        %v1123 = vpack.c.b16 %v947, %v939
        %v1124 = vpack.c.b16 %v948, %v940
        %v1125 = vpack.c.b16 %v949, %v941
        %v1126 = vpack.c.b16 %v958, %v950
        %v1127 = vpack.c.b16 %v959, %v951
        %v1128 = vpack.c.b16 %v960, %v952
        %v1129 = vpack.c.b16 %v961, %v953
        %v1130 = vpack.c.b16 %v962, %v954
        %v1131 = vpack.c.b16 %v963, %v955
        %v1132 = vpack.c.b16 %v964, %v956
        %v1133 = vpack.c.b16 %v965, %v957
        %v1134 = vpack.c.b16 %v974, %v966
        %v1135 = vpack.c.b16 %v975, %v967
        %v1136 = vpack.c.b16 %v976, %v968
        %v1137 = vpack.c.b16 %v977, %v969
        %v1138 = vpack.c.b16 %v978, %v970
        %v1139 = vpack.c.b16 %v979, %v971
        %v1140 = vpack.c.b16 %v980, %v972
        %v1141 = vpack.c.b16 %v981, %v973
        %v1142 = vpack.c.b16 %v990, %v982
        %v1143 = vpack.c.b16 %v991, %v983
        %v1144 = vpack.c.b16 %v992, %v984
        %v1145 = vpack.c.b16 %v993, %v985
        %v1146 = vpack.c.b16 %v994, %v986
        %v1147 = vpack.c.b16 %v995, %v987
        %v1148 = vpack.c.b16 %v996, %v988
        %v1149 = vpack.c.b16 %v997, %v989
        %v1150 = vpack.c.b16 %v1006, %v998
        %v1151 = vpack.c.b16 %v1007, %v999
        %v1152 = vpack.c.b16 %v1008, %v1000
        %v1153 = vpack.c.b16 %v1009, %v1001
        %v1154 = vpack.c.b16 %v1010, %v1002
        %v1155 = vpack.c.b16 %v1011, %v1003
        %v1156 = vpack.c.b16 %v1012, %v1004
        %v1157 = vpack.c.b16 %v1013, %v1005
        %v1158 = vpack.c.b16 %v1022, %v1014
        %v1159 = vpack.c.b16 %v1023, %v1015
        %v1160 = vpack.c.b16 %v1024, %v1016
        %v1161 = vpack.c.b16 %v1025, %v1017
        %v1162 = vpack.c.b16 %v1026, %v1018
        %v1163 = vpack.c.b16 %v1027, %v1019
        %v1164 = vpack.c.b16 %v1028, %v1020
        %v1165 = vpack.c.b16 %v1029, %v1021
        %v1166 = vpack.c.b16 %v1038, %v1030
        %v1167 = vpack.c.b16 %v1039, %v1031
        %v1168 = vpack.c.b16 %v1040, %v1032
        %v1169 = vpack.c.b16 %v1041, %v1033
        %v1170 = vpack.c.b16 %v1042, %v1034
        %v1171 = vpack.c.b16 %v1043, %v1035
        %v1172 = vpack.c.b16 %v1044, %v1036
        %v1173 = vpack.c.b16 %v1045, %v1037
        %1302 = vmatprep.subr.bf16.mxu0 %v1047
        %1303 = vmatpush1.bf16.msra.mxu0 %v1046
        %1304 = vmatprep.subr.bf16.mxu0 %v1055
        %1305 = vmatpush1.bf16.msra.mxu0 %v1054
        %1306 = vmatprep.subr.bf16.mxu0 %v1063
        %1307 = vmatpush1.bf16.msra.mxu0 %v1062
        %1308 = vmatprep.subr.bf16.mxu0 %v1071
        %1309 = vmatpush1.bf16.msra.mxu0 %v1070
        %1310 = vmatprep.subr.bf16.mxu0 %v1079
        %1311 = vmatpush1.bf16.msra.mxu0 %v1078
        %1312 = vmatprep.subr.bf16.mxu0 %v1087
        %1313 = vmatpush1.bf16.msra.mxu0 %v1086
        %1314 = vmatprep.subr.bf16.mxu0 %v1095
        %1315 = vmatpush1.bf16.msra.mxu0 %v1094
        %1316 = vmatprep.subr.bf16.mxu0 %v1103
        %1317 = vmatpush1.bf16.msra.mxu0 %v1102
        %1318 = vmatprep.subr.bf16.mxu0 %v1111
        %1319 = vmatpush1.bf16.msra.mxu0 %v1110
        %1320 = vmatprep.subr.bf16.mxu0 %v1119
        %1321 = vmatpush1.bf16.msra.mxu0 %v1118
        %1322 = vmatprep.subr.bf16.mxu0 %v1127
        %1323 = vmatpush1.bf16.msra.mxu0 %v1126
        %1324 = vmatprep.subr.bf16.mxu0 %v1135
        %1325 = vmatpush1.bf16.msra.mxu0 %v1134
        %1326 = vmatprep.subr.bf16.mxu0 %v1143
        %1327 = vmatpush1.bf16.msra.mxu0 %v1142
        %1328 = vmatprep.subr.bf16.mxu0 %v1151
        %1329 = vmatpush1.bf16.msra.mxu0 %v1150
        %1330 = vmatprep.subr.bf16.mxu0 %v1159
        %1331 = vmatpush1.bf16.msra.mxu0 %v1158
        %1332 = vmatprep.subr.bf16.mxu0 %v1167
        %1333 = vmatpush1.bf16.msra.mxu0 %v1166
        %1334 = vmatprep.mubr.bf16.mxu0 %v599
        %1335 = vmatmul.mubr.bf16.gmra.mrb[0].mxu0 %v598
        %v1336 = vpop.f32.mrb[0].mxu0
        %v1337 = vadd.f32 0.0, %v1336
        %v1338 = vpop.f32.mrb[0].mxu0
        %v1339 = vadd.f32 0.0, %v1338
        %v1340 = vpop.f32.mrb[0].mxu0
        %v1341 = vadd.f32 0.0, %v1340
        %v1342 = vpop.f32.mrb[0].mxu0
        %v1343 = vadd.f32 0.0, %v1342
        %1344 = vmatprep.mubr.bf16.mxu0 %v601
        %1345 = vmatmul.mubr.bf16.gmra.mrb[0].mxu0 %v600
        %v1346 = vpop.f32.mrb[0].mxu0
        %v1347 = vadd.f32 0.0, %v1346
        %v1348 = vpop.f32.mrb[0].mxu0
        %v1349 = vadd.f32 0.0, %v1348
        %v1350 = vpop.f32.mrb[0].mxu0
        %v1351 = vadd.f32 0.0, %v1350
        %v1352 = vpop.f32.mrb[0].mxu0
        %v1353 = vadd.f32 0.0, %v1352
        %1354 = vmatprep.mubr.bf16.mxu0 %v603
        %1355 = vmatmul.mubr.bf16.gmra.mrb[0].mxu0 %v602
        %v1356 = vpop.f32.mrb[0].mxu0
        %v1357 = vadd.f32 0.0, %v1356
        %v1358 = vpop.f32.mrb[0].mxu0
        %v1359 = vadd.f32 0.0, %v1358
        %v1360 = vpop.f32.mrb[0].mxu0
        %v1361 = vadd.f32 0.0, %v1360
        %v1362 = vpop.f32.mrb[0].mxu0
        %v1363 = vadd.f32 0.0, %v1362
        %1364 = vmatprep.mubr.bf16.mxu0 %v605
        %1365 = vmatmul.mubr.bf16.gmra.mrb[0].mxu0 %v604
        %v1366 = vpop.f32.mrb[0].mxu0
        %v1367 = vadd.f32 0.0, %v1366
        %v1368 = vpop.f32.mrb[0].mxu0
        %v1369 = vadd.f32 0.0, %v1368
        %v1370 = vpop.f32.mrb[0].mxu0
        %v1371 = vadd.f32 0.0, %v1370
        %v1372 = vpop.f32.mrb[0].mxu0
        %v1373 = vadd.f32 0.0, %v1372
        %1374 = vmatprep.mubr.bf16.mxu0 %v607
        %1375 = vmatmul.mubr.bf16.gmra.mrb[0].mxu0 %v606
        %v1376 = vpop.f32.mrb[0].mxu0
        %v1377 = vadd.f32 0.0, %v1376
        %v1378 = vpop.f32.mrb[0].mxu0
        %v1379 = vadd.f32 0.0, %v1378
        %v1380 = vpop.f32.mrb[0].mxu0
        %v1381 = vadd.f32 0.0, %v1380
        %v1382 = vpop.f32.mrb[0].mxu0
        %v1383 = vadd.f32 0.0, %v1382
        %1384 = vmatprep.mubr.bf16.mxu0 %v609
        %1385 = vmatmul.mubr.bf16.gmra.mrb[0].mxu0 %v608
        %v1386 = vpop.f32.mrb[0].mxu0
        %v1387 = vadd.f32 0.0, %v1386
        %v1388 = vpop.f32.mrb[0].mxu0
        %v1389 = vadd.f32 0.0, %v1388
        %v1390 = vpop.f32.mrb[0].mxu0
        %v1391 = vadd.f32 0.0, %v1390
        %v1392 = vpop.f32.mrb[0].mxu0
        %v1393 = vadd.f32 0.0, %v1392
        %1394 = vmatprep.mubr.bf16.mxu0 %v611
        %1395 = vmatmul.mubr.bf16.gmra.mrb[0].mxu0 %v610
        %v1396 = vpop.f32.mrb[0].mxu0
        %v1397 = vadd.f32 0.0, %v1396
        %v1398 = vpop.f32.mrb[0].mxu0
        %v1399 = vadd.f32 0.0, %v1398
        %v1400 = vpop.f32.mrb[0].mxu0
        %v1401 = vadd.f32 0.0, %v1400
        %v1402 = vpop.f32.mrb[0].mxu0
        %v1403 = vadd.f32 0.0, %v1402
        %1404 = vmatprep.mubr.bf16.mxu0 %v613
        %1405 = vmatmul.mubr.bf16.gmra.mrb[0].mxu0 %v612
        %v1406 = vpop.f32.mrb[0].mxu0
        %v1407 = vadd.f32 0.0, %v1406
        %v1408 = vpop.f32.mrb[0].mxu0
        %v1409 = vadd.f32 0.0, %v1408
        %v1410 = vpop.f32.mrb[0].mxu0
        %v1411 = vadd.f32 0.0, %v1410
        %v1412 = vpop.f32.mrb[0].mxu0
        %v1413 = vadd.f32 0.0, %v1412
        %1414 = vmatprep.mubr.bf16.mxu0 %v615
        %1415 = vmatmul.mubr.bf16.gmra.mrb[0].mxu0 %v614
        %v1416 = vpop.f32.mrb[0].mxu0
        %v1417 = vadd.f32 0.0, %v1416
        %v1418 = vpop.f32.mrb[0].mxu0
        %v1419 = vadd.f32 0.0, %v1418
        %v1420 = vpop.f32.mrb[0].mxu0
        %v1421 = vadd.f32 0.0, %v1420
        %v1422 = vpop.f32.mrb[0].mxu0
        %v1423 = vadd.f32 0.0, %v1422
        %1424 = vmatprep.mubr.bf16.mxu0 %v617
        %1425 = vmatmul.mubr.bf16.gmra.mrb[0].mxu0 %v616
        %v1426 = vpop.f32.mrb[0].mxu0
        %v1427 = vadd.f32 0.0, %v1426
        %v1428 = vpop.f32.mrb[0].mxu0
        %v1429 = vadd.f32 0.0, %v1428
        %v1430 = vpop.f32.mrb[0].mxu0
        %v1431 = vadd.f32 0.0, %v1430
        %v1432 = vpop.f32.mrb[0].mxu0
        %v1433 = vadd.f32 0.0, %v1432
        %1434 = vmatprep.mubr.bf16.mxu0 %v619
        %1435 = vmatmul.mubr.bf16.gmra.mrb[0].mxu0 %v618
        %v1436 = vpop.f32.mrb[0].mxu0
        %v1437 = vadd.f32 0.0, %v1436
        %v1438 = vpop.f32.mrb[0].mxu0
        %v1439 = vadd.f32 0.0, %v1438
        %v1440 = vpop.f32.mrb[0].mxu0
        %v1441 = vadd.f32 0.0, %v1440
        %v1442 = vpop.f32.mrb[0].mxu0
        %v1443 = vadd.f32 0.0, %v1442
        %1444 = vmatprep.mubr.bf16.mxu0 %v621
        %1445 = vmatmul.mubr.bf16.gmra.mrb[0].mxu0 %v620
        %v1446 = vpop.f32.mrb[0].mxu0
        %v1447 = vadd.f32 0.0, %v1446
        %v1448 = vpop.f32.mrb[0].mxu0
        %v1449 = vadd.f32 0.0, %v1448
        %v1450 = vpop.f32.mrb[0].mxu0
        %v1451 = vadd.f32 0.0, %v1450
        %v1452 = vpop.f32.mrb[0].mxu0
        %v1453 = vadd.f32 0.0, %v1452
        %1454 = vmatprep.mubr.bf16.mxu0 %v623
        %1455 = vmatmul.mubr.bf16.gmra.mrb[0].mxu0 %v622
        %v1456 = vpop.f32.mrb[0].mxu0
        %v1457 = vadd.f32 0.0, %v1456
        %v1458 = vpop.f32.mrb[0].mxu0
        %v1459 = vadd.f32 0.0, %v1458
        %v1460 = vpop.f32.mrb[0].mxu0
        %v1461 = vadd.f32 0.0, %v1460
        %v1462 = vpop.f32.mrb[0].mxu0
        %v1463 = vadd.f32 0.0, %v1462
        %1464 = vmatprep.mubr.bf16.mxu0 %v625
        %1465 = vmatmul.mubr.bf16.gmra.mrb[0].mxu0 %v624
        %v1466 = vpop.f32.mrb[0].mxu0
        %v1467 = vadd.f32 0.0, %v1466
        %v1468 = vpop.f32.mrb[0].mxu0
        %v1469 = vadd.f32 0.0, %v1468
        %v1470 = vpop.f32.mrb[0].mxu0
        %v1471 = vadd.f32 0.0, %v1470
        %v1472 = vpop.f32.mrb[0].mxu0
        %v1473 = vadd.f32 0.0, %v1472
        %1474 = vmatprep.mubr.bf16.mxu0 %v627
        %1475 = vmatmul.mubr.bf16.gmra.mrb[0].mxu0 %v626
        %v1476 = vpop.f32.mrb[0].mxu0
        %v1477 = vadd.f32 0.0, %v1476
        %v1478 = vpop.f32.mrb[0].mxu0
        %v1479 = vadd.f32 0.0, %v1478
        %v1480 = vpop.f32.mrb[0].mxu0
        %v1481 = vadd.f32 0.0, %v1480
        %v1482 = vpop.f32.mrb[0].mxu0
        %v1483 = vadd.f32 0.0, %v1482
        %1484 = vmatprep.mubr.bf16.mxu0 %v629
        %1485 = vmatmul.mubr.bf16.gmra.mrb[0].mxu0 %v628
        %v1486 = vpop.f32.mrb[0].mxu0
        %v1487 = vadd.f32 0.0, %v1486
        %v1488 = vpop.f32.mrb[0].mxu0
        %v1489 = vadd.f32 0.0, %v1488
        %v1490 = vpop.f32.mrb[0].mxu0
        %v1491 = vadd.f32 0.0, %v1490
        %v1492 = vpop.f32.mrb[0].mxu0
        %v1493 = vadd.f32 0.0, %v1492
        %1494 = vdwg.mxu0
        %1495 = vmatprep.subr.bf16.mxu0 %v1049
        %1496 = vmatpush1.bf16.msra.mxu0 %v1048
        %1497 = vmatprep.subr.bf16.mxu0 %v1057
        %1498 = vmatpush1.bf16.msra.mxu0 %v1056
        %1499 = vmatprep.subr.bf16.mxu0 %v1065
        %1500 = vmatpush1.bf16.msra.mxu0 %v1064
        %1501 = vmatprep.subr.bf16.mxu0 %v1073
        %1502 = vmatpush1.bf16.msra.mxu0 %v1072
        %1503 = vmatprep.subr.bf16.mxu0 %v1081
        %1504 = vmatpush1.bf16.msra.mxu0 %v1080
        %1505 = vmatprep.subr.bf16.mxu0 %v1089
        %1506 = vmatpush1.bf16.msra.mxu0 %v1088
        %1507 = vmatprep.subr.bf16.mxu0 %v1097
        %1508 = vmatpush1.bf16.msra.mxu0 %v1096
        %1509 = vmatprep.subr.bf16.mxu0 %v1105
        %1510 = vmatpush1.bf16.msra.mxu0 %v1104
        %1511 = vmatprep.subr.bf16.mxu0 %v1113
        %1512 = vmatpush1.bf16.msra.mxu0 %v1112
        %1513 = vmatprep.subr.bf16.mxu0 %v1121
        %1514 = vmatpush1.bf16.msra.mxu0 %v1120
        %1515 = vmatprep.subr.bf16.mxu0 %v1129
        %1516 = vmatpush1.bf16.msra.mxu0 %v1128
        %1517 = vmatprep.subr.bf16.mxu0 %v1137
        %1518 = vmatpush1.bf16.msra.mxu0 %v1136
        %1519 = vmatprep.subr.bf16.mxu0 %v1145
        %1520 = vmatpush1.bf16.msra.mxu0 %v1144
        %1521 = vmatprep.subr.bf16.mxu0 %v1153
        %1522 = vmatpush1.bf16.msra.mxu0 %v1152
        %1523 = vmatprep.subr.bf16.mxu0 %v1161
        %1524 = vmatpush1.bf16.msra.mxu0 %v1160
        %1525 = vmatprep.subr.bf16.mxu0 %v1169
        %1526 = vmatpush1.bf16.msra.mxu0 %v1168
        %1527 = vmatprep.mubr.bf16.mxu0 %v599
        %1528 = vmatmul.mubr.bf16.gmra.mrb[0].mxu0 %v598
        %v1529 = vpop.f32.mrb[0].mxu0
        %v1530 = vadd.f32 0.0, %v1529
        %v1531 = vpop.f32.mrb[0].mxu0
        %v1532 = vadd.f32 0.0, %v1531
        %v1533 = vpop.f32.mrb[0].mxu0
        %v1534 = vadd.f32 0.0, %v1533
        %v1535 = vpop.f32.mrb[0].mxu0
        %v1536 = vadd.f32 0.0, %v1535
        %1537 = vmatprep.mubr.bf16.mxu0 %v601
        %1538 = vmatmul.mubr.bf16.gmra.mrb[0].mxu0 %v600
        %v1539 = vpop.f32.mrb[0].mxu0
        %v1540 = vadd.f32 0.0, %v1539
        %v1541 = vpop.f32.mrb[0].mxu0
        %v1542 = vadd.f32 0.0, %v1541
        %v1543 = vpop.f32.mrb[0].mxu0
        %v1544 = vadd.f32 0.0, %v1543
        %v1545 = vpop.f32.mrb[0].mxu0
        %v1546 = vadd.f32 0.0, %v1545
        %1547 = vmatprep.mubr.bf16.mxu0 %v603
        %1548 = vmatmul.mubr.bf16.gmra.mrb[0].mxu0 %v602
        %v1549 = vpop.f32.mrb[0].mxu0
        %v1550 = vadd.f32 0.0, %v1549
        %v1551 = vpop.f32.mrb[0].mxu0
        %v1552 = vadd.f32 0.0, %v1551
        %v1553 = vpop.f32.mrb[0].mxu0
        %v1554 = vadd.f32 0.0, %v1553
        %v1555 = vpop.f32.mrb[0].mxu0
        %v1556 = vadd.f32 0.0, %v1555
        %1557 = vmatprep.mubr.bf16.mxu0 %v605
        %1558 = vmatmul.mubr.bf16.gmra.mrb[0].mxu0 %v604
        %v1559 = vpop.f32.mrb[0].mxu0
        %v1560 = vadd.f32 0.0, %v1559
        %v1561 = vpop.f32.mrb[0].mxu0
        %v1562 = vadd.f32 0.0, %v1561
        %v1563 = vpop.f32.mrb[0].mxu0
        %v1564 = vadd.f32 0.0, %v1563
        %v1565 = vpop.f32.mrb[0].mxu0
        %v1566 = vadd.f32 0.0, %v1565
        %1567 = vmatprep.mubr.bf16.mxu0 %v607
        %1568 = vmatmul.mubr.bf16.gmra.mrb[0].mxu0 %v606
        %v1569 = vpop.f32.mrb[0].mxu0
        %v1570 = vadd.f32 0.0, %v1569
        %v1571 = vpop.f32.mrb[0].mxu0
        %v1572 = vadd.f32 0.0, %v1571
        %v1573 = vpop.f32.mrb[0].mxu0
        %v1574 = vadd.f32 0.0, %v1573
        %v1575 = vpop.f32.mrb[0].mxu0
        %v1576 = vadd.f32 0.0, %v1575
        %1577 = vmatprep.mubr.bf16.mxu0 %v609
        %1578 = vmatmul.mubr.bf16.gmra.mrb[0].mxu0 %v608
        %v1579 = vpop.f32.mrb[0].mxu0
        %v1580 = vadd.f32 0.0, %v1579
        %v1581 = vpop.f32.mrb[0].mxu0
        %v1582 = vadd.f32 0.0, %v1581
        %v1583 = vpop.f32.mrb[0].mxu0
        %v1584 = vadd.f32 0.0, %v1583
        %v1585 = vpop.f32.mrb[0].mxu0
        %v1586 = vadd.f32 0.0, %v1585
        %1587 = vmatprep.mubr.bf16.mxu0 %v611
        %1588 = vmatmul.mubr.bf16.gmra.mrb[0].mxu0 %v610
        %v1589 = vpop.f32.mrb[0].mxu0
        %v1590 = vadd.f32 0.0, %v1589
        %v1591 = vpop.f32.mrb[0].mxu0
        %v1592 = vadd.f32 0.0, %v1591
        %v1593 = vpop.f32.mrb[0].mxu0
        %v1594 = vadd.f32 0.0, %v1593
        %v1595 = vpop.f32.mrb[0].mxu0
        %v1596 = vadd.f32 0.0, %v1595
        %1597 = vmatprep.mubr.bf16.mxu0 %v613
        %1598 = vmatmul.mubr.bf16.gmra.mrb[0].mxu0 %v612
        %v1599 = vpop.f32.mrb[0].mxu0
        %v1600 = vadd.f32 0.0, %v1599
        %v1601 = vpop.f32.mrb[0].mxu0
        %v1602 = vadd.f32 0.0, %v1601
        %v1603 = vpop.f32.mrb[0].mxu0
        %v1604 = vadd.f32 0.0, %v1603
        %v1605 = vpop.f32.mrb[0].mxu0
        %v1606 = vadd.f32 0.0, %v1605
        %1607 = vmatprep.mubr.bf16.mxu0 %v615
        %1608 = vmatmul.mubr.bf16.gmra.mrb[0].mxu0 %v614
        %v1609 = vpop.f32.mrb[0].mxu0
        %v1610 = vadd.f32 0.0, %v1609
        %v1611 = vpop.f32.mrb[0].mxu0
        %v1612 = vadd.f32 0.0, %v1611
        %v1613 = vpop.f32.mrb[0].mxu0
        %v1614 = vadd.f32 0.0, %v1613
        %v1615 = vpop.f32.mrb[0].mxu0
        %v1616 = vadd.f32 0.0, %v1615
        %1617 = vmatprep.mubr.bf16.mxu0 %v617
        %1618 = vmatmul.mubr.bf16.gmra.mrb[0].mxu0 %v616
        %v1619 = vpop.f32.mrb[0].mxu0
        %v1620 = vadd.f32 0.0, %v1619
        %v1621 = vpop.f32.mrb[0].mxu0
        %v1622 = vadd.f32 0.0, %v1621
        %v1623 = vpop.f32.mrb[0].mxu0
        %v1624 = vadd.f32 0.0, %v1623
        %v1625 = vpop.f32.mrb[0].mxu0
        %v1626 = vadd.f32 0.0, %v1625
        %1627 = vmatprep.mubr.bf16.mxu0 %v619
        %1628 = vmatmul.mubr.bf16.gmra.mrb[0].mxu0 %v618
        %v1629 = vpop.f32.mrb[0].mxu0
        %v1630 = vadd.f32 0.0, %v1629
        %v1631 = vpop.f32.mrb[0].mxu0
        %v1632 = vadd.f32 0.0, %v1631
        %v1633 = vpop.f32.mrb[0].mxu0
        %v1634 = vadd.f32 0.0, %v1633
        %v1635 = vpop.f32.mrb[0].mxu0
        %v1636 = vadd.f32 0.0, %v1635
        %1637 = vmatprep.mubr.bf16.mxu0 %v621
        %1638 = vmatmul.mubr.bf16.gmra.mrb[0].mxu0 %v620
        %v1639 = vpop.f32.mrb[0].mxu0
        %v1640 = vadd.f32 0.0, %v1639
        %v1641 = vpop.f32.mrb[0].mxu0
        %v1642 = vadd.f32 0.0, %v1641
        %v1643 = vpop.f32.mrb[0].mxu0
        %v1644 = vadd.f32 0.0, %v1643
        %v1645 = vpop.f32.mrb[0].mxu0
        %v1646 = vadd.f32 0.0, %v1645
        %1647 = vmatprep.mubr.bf16.mxu0 %v623
        %1648 = vmatmul.mubr.bf16.gmra.mrb[0].mxu0 %v622
        %v1649 = vpop.f32.mrb[0].mxu0
        %v1650 = vadd.f32 0.0, %v1649
        %v1651 = vpop.f32.mrb[0].mxu0
        %v1652 = vadd.f32 0.0, %v1651
        %v1653 = vpop.f32.mrb[0].mxu0
        %v1654 = vadd.f32 0.0, %v1653
        %v1655 = vpop.f32.mrb[0].mxu0
        %v1656 = vadd.f32 0.0, %v1655
        %1657 = vmatprep.mubr.bf16.mxu0 %v625
        %1658 = vmatmul.mubr.bf16.gmra.mrb[0].mxu0 %v624
        %v1659 = vpop.f32.mrb[0].mxu0
        %v1660 = vadd.f32 0.0, %v1659
        %v1661 = vpop.f32.mrb[0].mxu0
        %v1662 = vadd.f32 0.0, %v1661
        %v1663 = vpop.f32.mrb[0].mxu0
        %v1664 = vadd.f32 0.0, %v1663
        %v1665 = vpop.f32.mrb[0].mxu0
        %v1666 = vadd.f32 0.0, %v1665
        %1667 = vmatprep.mubr.bf16.mxu0 %v627
        %1668 = vmatmul.mubr.bf16.gmra.mrb[0].mxu0 %v626
        %v1669 = vpop.f32.mrb[0].mxu0
        %v1670 = vadd.f32 0.0, %v1669
        %v1671 = vpop.f32.mrb[0].mxu0
        %v1672 = vadd.f32 0.0, %v1671
        %v1673 = vpop.f32.mrb[0].mxu0
        %v1674 = vadd.f32 0.0, %v1673
        %v1675 = vpop.f32.mrb[0].mxu0
        %v1676 = vadd.f32 0.0, %v1675
        %1677 = vmatprep.mubr.bf16.mxu0 %v629
        %1678 = vmatmul.mubr.bf16.gmra.mrb[0].mxu0 %v628
        %v1679 = vpop.f32.mrb[0].mxu0
        %v1680 = vadd.f32 0.0, %v1679
        %v1681 = vpop.f32.mrb[0].mxu0
        %v1682 = vadd.f32 0.0, %v1681
        %v1683 = vpop.f32.mrb[0].mxu0
        %v1684 = vadd.f32 0.0, %v1683
        %v1685 = vpop.f32.mrb[0].mxu0
        %v1686 = vadd.f32 0.0, %v1685
        %1687 = vdwg.mxu0
        %1688 = vmatprep.subr.bf16.mxu0 %v1051
        %1689 = vmatpush1.bf16.msra.mxu0 %v1050
        %1690 = vmatprep.subr.bf16.mxu0 %v1059
        %1691 = vmatpush1.bf16.msra.mxu0 %v1058
        %1692 = vmatprep.subr.bf16.mxu0 %v1067
        %1693 = vmatpush1.bf16.msra.mxu0 %v1066
        %1694 = vmatprep.subr.bf16.mxu0 %v1075
        %1695 = vmatpush1.bf16.msra.mxu0 %v1074
        %1696 = vmatprep.subr.bf16.mxu0 %v1083
        %1697 = vmatpush1.bf16.msra.mxu0 %v1082
        %1698 = vmatprep.subr.bf16.mxu0 %v1091
        %1699 = vmatpush1.bf16.msra.mxu0 %v1090
        %1700 = vmatprep.subr.bf16.mxu0 %v1099
        %1701 = vmatpush1.bf16.msra.mxu0 %v1098
        %1702 = vmatprep.subr.bf16.mxu0 %v1107
        %1703 = vmatpush1.bf16.msra.mxu0 %v1106
        %1704 = vmatprep.subr.bf16.mxu0 %v1115
        %1705 = vmatpush1.bf16.msra.mxu0 %v1114
        %1706 = vmatprep.subr.bf16.mxu0 %v1123
        %1707 = vmatpush1.bf16.msra.mxu0 %v1122
        %1708 = vmatprep.subr.bf16.mxu0 %v1131
        %1709 = vmatpush1.bf16.msra.mxu0 %v1130
        %1710 = vmatprep.subr.bf16.mxu0 %v1139
        %1711 = vmatpush1.bf16.msra.mxu0 %v1138
        %1712 = vmatprep.subr.bf16.mxu0 %v1147
        %1713 = vmatpush1.bf16.msra.mxu0 %v1146
        %1714 = vmatprep.subr.bf16.mxu0 %v1155
        %1715 = vmatpush1.bf16.msra.mxu0 %v1154
        %1716 = vmatprep.subr.bf16.mxu0 %v1163
        %1717 = vmatpush1.bf16.msra.mxu0 %v1162
        %1718 = vmatprep.subr.bf16.mxu0 %v1171
        %1719 = vmatpush1.bf16.msra.mxu0 %v1170
        %1720 = vmatprep.mubr.bf16.mxu0 %v599
        %1721 = vmatmul.mubr.bf16.gmra.mrb[0].mxu0 %v598
        %v1722 = vpop.f32.mrb[0].mxu0
        %v1723 = vadd.f32 0.0, %v1722
        %v1724 = vpop.f32.mrb[0].mxu0
        %v1725 = vadd.f32 0.0, %v1724
        %v1726 = vpop.f32.mrb[0].mxu0
        %v1727 = vadd.f32 0.0, %v1726
        %v1728 = vpop.f32.mrb[0].mxu0
        %v1729 = vadd.f32 0.0, %v1728
        %1730 = vmatprep.mubr.bf16.mxu0 %v601
        %1731 = vmatmul.mubr.bf16.gmra.mrb[0].mxu0 %v600
        %v1732 = vpop.f32.mrb[0].mxu0
        %v1733 = vadd.f32 0.0, %v1732
        %v1734 = vpop.f32.mrb[0].mxu0
        %v1735 = vadd.f32 0.0, %v1734
        %v1736 = vpop.f32.mrb[0].mxu0
        %v1737 = vadd.f32 0.0, %v1736
        %v1738 = vpop.f32.mrb[0].mxu0
        %v1739 = vadd.f32 0.0, %v1738
        %1740 = vmatprep.mubr.bf16.mxu0 %v603
        %1741 = vmatmul.mubr.bf16.gmra.mrb[0].mxu0 %v602
        %v1742 = vpop.f32.mrb[0].mxu0
        %v1743 = vadd.f32 0.0, %v1742
        %v1744 = vpop.f32.mrb[0].mxu0
        %v1745 = vadd.f32 0.0, %v1744
        %v1746 = vpop.f32.mrb[0].mxu0
        %v1747 = vadd.f32 0.0, %v1746
        %v1748 = vpop.f32.mrb[0].mxu0
        %v1749 = vadd.f32 0.0, %v1748
        %1750 = vmatprep.mubr.bf16.mxu0 %v605
        %1751 = vmatmul.mubr.bf16.gmra.mrb[0].mxu0 %v604
        %v1752 = vpop.f32.mrb[0].mxu0
        %v1753 = vadd.f32 0.0, %v1752
        %v1754 = vpop.f32.mrb[0].mxu0
        %v1755 = vadd.f32 0.0, %v1754
        %v1756 = vpop.f32.mrb[0].mxu0
        %v1757 = vadd.f32 0.0, %v1756
        %v1758 = vpop.f32.mrb[0].mxu0
        %v1759 = vadd.f32 0.0, %v1758
        %1760 = vmatprep.mubr.bf16.mxu0 %v607
        %1761 = vmatmul.mubr.bf16.gmra.mrb[0].mxu0 %v606
        %v1762 = vpop.f32.mrb[0].mxu0
        %v1763 = vadd.f32 0.0, %v1762
        %v1764 = vpop.f32.mrb[0].mxu0
        %v1765 = vadd.f32 0.0, %v1764
        %v1766 = vpop.f32.mrb[0].mxu0
        %v1767 = vadd.f32 0.0, %v1766
        %v1768 = vpop.f32.mrb[0].mxu0
        %v1769 = vadd.f32 0.0, %v1768
        %1770 = vmatprep.mubr.bf16.mxu0 %v609
        %1771 = vmatmul.mubr.bf16.gmra.mrb[0].mxu0 %v608
        %v1772 = vpop.f32.mrb[0].mxu0
        %v1773 = vadd.f32 0.0, %v1772
        %v1774 = vpop.f32.mrb[0].mxu0
        %v1775 = vadd.f32 0.0, %v1774
        %v1776 = vpop.f32.mrb[0].mxu0
        %v1777 = vadd.f32 0.0, %v1776
        %v1778 = vpop.f32.mrb[0].mxu0
        %v1779 = vadd.f32 0.0, %v1778
        %1780 = vmatprep.mubr.bf16.mxu0 %v611
        %1781 = vmatmul.mubr.bf16.gmra.mrb[0].mxu0 %v610
        %v1782 = vpop.f32.mrb[0].mxu0
        %v1783 = vadd.f32 0.0, %v1782
        %v1784 = vpop.f32.mrb[0].mxu0
        %v1785 = vadd.f32 0.0, %v1784
        %v1786 = vpop.f32.mrb[0].mxu0
        %v1787 = vadd.f32 0.0, %v1786
        %v1788 = vpop.f32.mrb[0].mxu0
        %v1789 = vadd.f32 0.0, %v1788
        %1790 = vmatprep.mubr.bf16.mxu0 %v613
        %1791 = vmatmul.mubr.bf16.gmra.mrb[0].mxu0 %v612
        %v1792 = vpop.f32.mrb[0].mxu0
        %v1793 = vadd.f32 0.0, %v1792
        %v1794 = vpop.f32.mrb[0].mxu0
        %v1795 = vadd.f32 0.0, %v1794
        %v1796 = vpop.f32.mrb[0].mxu0
        %v1797 = vadd.f32 0.0, %v1796
        %v1798 = vpop.f32.mrb[0].mxu0
        %v1799 = vadd.f32 0.0, %v1798
        %1800 = vmatprep.mubr.bf16.mxu0 %v615
        %1801 = vmatmul.mubr.bf16.gmra.mrb[0].mxu0 %v614
        %v1802 = vpop.f32.mrb[0].mxu0
        %v1803 = vadd.f32 0.0, %v1802
        %v1804 = vpop.f32.mrb[0].mxu0
        %v1805 = vadd.f32 0.0, %v1804
        %v1806 = vpop.f32.mrb[0].mxu0
        %v1807 = vadd.f32 0.0, %v1806
        %v1808 = vpop.f32.mrb[0].mxu0
        %v1809 = vadd.f32 0.0, %v1808
        %1810 = vmatprep.mubr.bf16.mxu0 %v617
        %1811 = vmatmul.mubr.bf16.gmra.mrb[0].mxu0 %v616
        %v1812 = vpop.f32.mrb[0].mxu0
        %v1813 = vadd.f32 0.0, %v1812
        %v1814 = vpop.f32.mrb[0].mxu0
        %v1815 = vadd.f32 0.0, %v1814
        %v1816 = vpop.f32.mrb[0].mxu0
        %v1817 = vadd.f32 0.0, %v1816
        %v1818 = vpop.f32.mrb[0].mxu0
        %v1819 = vadd.f32 0.0, %v1818
        %1820 = vmatprep.mubr.bf16.mxu0 %v619
        %1821 = vmatmul.mubr.bf16.gmra.mrb[0].mxu0 %v618
        %v1822 = vpop.f32.mrb[0].mxu0
        %v1823 = vadd.f32 0.0, %v1822
        %v1824 = vpop.f32.mrb[0].mxu0
        %v1825 = vadd.f32 0.0, %v1824
        %v1826 = vpop.f32.mrb[0].mxu0
        %v1827 = vadd.f32 0.0, %v1826
        %v1828 = vpop.f32.mrb[0].mxu0
        %v1829 = vadd.f32 0.0, %v1828
        %1830 = vmatprep.mubr.bf16.mxu0 %v621
        %1831 = vmatmul.mubr.bf16.gmra.mrb[0].mxu0 %v620
        %v1832 = vpop.f32.mrb[0].mxu0
        %v1833 = vadd.f32 0.0, %v1832
        %v1834 = vpop.f32.mrb[0].mxu0
        %v1835 = vadd.f32 0.0, %v1834
        %v1836 = vpop.f32.mrb[0].mxu0
        %v1837 = vadd.f32 0.0, %v1836
        %v1838 = vpop.f32.mrb[0].mxu0
        %v1839 = vadd.f32 0.0, %v1838
        %1840 = vmatprep.mubr.bf16.mxu0 %v623
        %1841 = vmatmul.mubr.bf16.gmra.mrb[0].mxu0 %v622
        %v1842 = vpop.f32.mrb[0].mxu0
        %v1843 = vadd.f32 0.0, %v1842
        %v1844 = vpop.f32.mrb[0].mxu0
        %v1845 = vadd.f32 0.0, %v1844
        %v1846 = vpop.f32.mrb[0].mxu0
        %v1847 = vadd.f32 0.0, %v1846
        %v1848 = vpop.f32.mrb[0].mxu0
        %v1849 = vadd.f32 0.0, %v1848
        %1850 = vmatprep.mubr.bf16.mxu0 %v625
        %1851 = vmatmul.mubr.bf16.gmra.mrb[0].mxu0 %v624
        %v1852 = vpop.f32.mrb[0].mxu0
        %v1853 = vadd.f32 0.0, %v1852
        %v1854 = vpop.f32.mrb[0].mxu0
        %v1855 = vadd.f32 0.0, %v1854
        %v1856 = vpop.f32.mrb[0].mxu0
        %v1857 = vadd.f32 0.0, %v1856
        %v1858 = vpop.f32.mrb[0].mxu0
        %v1859 = vadd.f32 0.0, %v1858
        %1860 = vmatprep.mubr.bf16.mxu0 %v627
        %1861 = vmatmul.mubr.bf16.gmra.mrb[0].mxu0 %v626
        %v1862 = vpop.f32.mrb[0].mxu0
        %v1863 = vadd.f32 0.0, %v1862
        %v1864 = vpop.f32.mrb[0].mxu0
        %v1865 = vadd.f32 0.0, %v1864
        %v1866 = vpop.f32.mrb[0].mxu0
        %v1867 = vadd.f32 0.0, %v1866
        %v1868 = vpop.f32.mrb[0].mxu0
        %v1869 = vadd.f32 0.0, %v1868
        %1870 = vmatprep.mubr.bf16.mxu0 %v629
        %1871 = vmatmul.mubr.bf16.gmra.mrb[0].mxu0 %v628
        %v1872 = vpop.f32.mrb[0].mxu0
        %v1873 = vadd.f32 0.0, %v1872
        %v1874 = vpop.f32.mrb[0].mxu0
        %v1875 = vadd.f32 0.0, %v1874
        %v1876 = vpop.f32.mrb[0].mxu0
        %v1877 = vadd.f32 0.0, %v1876
        %v1878 = vpop.f32.mrb[0].mxu0
        %v1879 = vadd.f32 0.0, %v1878
        %1880 = vdwg.mxu0
        %1881 = vmatprep.subr.bf16.mxu0 %v1053
        %1882 = vmatpush1.bf16.msra.mxu0 %v1052
        %1883 = vmatprep.subr.bf16.mxu0 %v1061
        %1884 = vmatpush1.bf16.msra.mxu0 %v1060
        %1885 = vmatprep.subr.bf16.mxu0 %v1069
        %1886 = vmatpush1.bf16.msra.mxu0 %v1068
        %1887 = vmatprep.subr.bf16.mxu0 %v1077
        %1888 = vmatpush1.bf16.msra.mxu0 %v1076
        %1889 = vmatprep.subr.bf16.mxu0 %v1085
        %1890 = vmatpush1.bf16.msra.mxu0 %v1084
        %1891 = vmatprep.subr.bf16.mxu0 %v1093
        %1892 = vmatpush1.bf16.msra.mxu0 %v1092
        %1893 = vmatprep.subr.bf16.mxu0 %v1101
        %1894 = vmatpush1.bf16.msra.mxu0 %v1100
        %1895 = vmatprep.subr.bf16.mxu0 %v1109
        %1896 = vmatpush1.bf16.msra.mxu0 %v1108
        %1897 = vmatprep.subr.bf16.mxu0 %v1117
        %1898 = vmatpush1.bf16.msra.mxu0 %v1116
        %1899 = vmatprep.subr.bf16.mxu0 %v1125
        %1900 = vmatpush1.bf16.msra.mxu0 %v1124
        %1901 = vmatprep.subr.bf16.mxu0 %v1133
        %1902 = vmatpush1.bf16.msra.mxu0 %v1132
        %1903 = vmatprep.subr.bf16.mxu0 %v1141
        %1904 = vmatpush1.bf16.msra.mxu0 %v1140
        %1905 = vmatprep.subr.bf16.mxu0 %v1149
        %1906 = vmatpush1.bf16.msra.mxu0 %v1148
        %1907 = vmatprep.subr.bf16.mxu0 %v1157
        %1908 = vmatpush1.bf16.msra.mxu0 %v1156
        %1909 = vmatprep.subr.bf16.mxu0 %v1165
        %1910 = vmatpush1.bf16.msra.mxu0 %v1164
        %1911 = vmatprep.subr.bf16.mxu0 %v1173
        %1912 = vmatpush1.bf16.msra.mxu0 %v1172
        %1913 = vmatprep.mubr.bf16.mxu0 %v599
        %1914 = vmatmul.mubr.bf16.gmra.mrb[0].mxu0 %v598
        %v1915 = vpop.f32.mrb[0].mxu0
        %v1916 = vadd.f32 0.0, %v1915
        %v1917 = vpop.f32.mrb[0].mxu0
        %v1918 = vadd.f32 0.0, %v1917
        %v1919 = vpop.f32.mrb[0].mxu0
        %v1920 = vadd.f32 0.0, %v1919
        %v1921 = vpop.f32.mrb[0].mxu0
        %v1922 = vadd.f32 0.0, %v1921
        %1923 = vmatprep.mubr.bf16.mxu0 %v601
        %1924 = vmatmul.mubr.bf16.gmra.mrb[0].mxu0 %v600
        %v1925 = vpop.f32.mrb[0].mxu0
        %v1926 = vadd.f32 0.0, %v1925
        %v1927 = vpop.f32.mrb[0].mxu0
        %v1928 = vadd.f32 0.0, %v1927
        %v1929 = vpop.f32.mrb[0].mxu0
        %v1930 = vadd.f32 0.0, %v1929
        %v1931 = vpop.f32.mrb[0].mxu0
        %v1932 = vadd.f32 0.0, %v1931
        %1933 = vmatprep.mubr.bf16.mxu0 %v603
        %1934 = vmatmul.mubr.bf16.gmra.mrb[0].mxu0 %v602
        %v1935 = vpop.f32.mrb[0].mxu0
        %v1936 = vadd.f32 0.0, %v1935
        %v1937 = vpop.f32.mrb[0].mxu0
        %v1938 = vadd.f32 0.0, %v1937
        %v1939 = vpop.f32.mrb[0].mxu0
        %v1940 = vadd.f32 0.0, %v1939
        %v1941 = vpop.f32.mrb[0].mxu0
        %v1942 = vadd.f32 0.0, %v1941
        %1943 = vmatprep.mubr.bf16.mxu0 %v605
        %1944 = vmatmul.mubr.bf16.gmra.mrb[0].mxu0 %v604
        %v1945 = vpop.f32.mrb[0].mxu0
        %v1946 = vadd.f32 0.0, %v1945
        %v1947 = vpop.f32.mrb[0].mxu0
        %v1948 = vadd.f32 0.0, %v1947
        %v1949 = vpop.f32.mrb[0].mxu0
        %v1950 = vadd.f32 0.0, %v1949
        %v1951 = vpop.f32.mrb[0].mxu0
        %v1952 = vadd.f32 0.0, %v1951
        %1953 = vmatprep.mubr.bf16.mxu0 %v607
        %1954 = vmatmul.mubr.bf16.gmra.mrb[0].mxu0 %v606
        %v1955 = vpop.f32.mrb[0].mxu0
        %v1956 = vadd.f32 0.0, %v1955
        %v1957 = vpop.f32.mrb[0].mxu0
        %v1958 = vadd.f32 0.0, %v1957
        %v1959 = vpop.f32.mrb[0].mxu0
        %v1960 = vadd.f32 0.0, %v1959
        %v1961 = vpop.f32.mrb[0].mxu0
        %v1962 = vadd.f32 0.0, %v1961
        %1963 = vmatprep.mubr.bf16.mxu0 %v609
        %1964 = vmatmul.mubr.bf16.gmra.mrb[0].mxu0 %v608
        %v1965 = vpop.f32.mrb[0].mxu0
        %v1966 = vadd.f32 0.0, %v1965
        %v1967 = vpop.f32.mrb[0].mxu0
        %v1968 = vadd.f32 0.0, %v1967
        %v1969 = vpop.f32.mrb[0].mxu0
        %v1970 = vadd.f32 0.0, %v1969
        %v1971 = vpop.f32.mrb[0].mxu0
        %v1972 = vadd.f32 0.0, %v1971
        %1973 = vmatprep.mubr.bf16.mxu0 %v611
        %1974 = vmatmul.mubr.bf16.gmra.mrb[0].mxu0 %v610
        %v1975 = vpop.f32.mrb[0].mxu0
        %v1976 = vadd.f32 0.0, %v1975
        %v1977 = vpop.f32.mrb[0].mxu0
        %v1978 = vadd.f32 0.0, %v1977
        %v1979 = vpop.f32.mrb[0].mxu0
        %v1980 = vadd.f32 0.0, %v1979
        %v1981 = vpop.f32.mrb[0].mxu0
        %v1982 = vadd.f32 0.0, %v1981
        %1983 = vmatprep.mubr.bf16.mxu0 %v613
        %1984 = vmatmul.mubr.bf16.gmra.mrb[0].mxu0 %v612
        %v1985 = vpop.f32.mrb[0].mxu0
        %v1986 = vadd.f32 0.0, %v1985
        %v1987 = vpop.f32.mrb[0].mxu0
        %v1988 = vadd.f32 0.0, %v1987
        %v1989 = vpop.f32.mrb[0].mxu0
        %v1990 = vadd.f32 0.0, %v1989
        %v1991 = vpop.f32.mrb[0].mxu0
        %v1992 = vadd.f32 0.0, %v1991
        %1993 = vmatprep.mubr.bf16.mxu0 %v615
        %1994 = vmatmul.mubr.bf16.gmra.mrb[0].mxu0 %v614
        %v1995 = vpop.f32.mrb[0].mxu0
        %v1996 = vadd.f32 0.0, %v1995
        %v1997 = vpop.f32.mrb[0].mxu0
        %v1998 = vadd.f32 0.0, %v1997
        %v1999 = vpop.f32.mrb[0].mxu0
        %v2000 = vadd.f32 0.0, %v1999
        %v2001 = vpop.f32.mrb[0].mxu0
        %v2002 = vadd.f32 0.0, %v2001
        %2003 = vmatprep.mubr.bf16.mxu0 %v617
        %2004 = vmatmul.mubr.bf16.gmra.mrb[0].mxu0 %v616
        %v2005 = vpop.f32.mrb[0].mxu0
        %v2006 = vadd.f32 0.0, %v2005
        %v2007 = vpop.f32.mrb[0].mxu0
        %v2008 = vadd.f32 0.0, %v2007
        %v2009 = vpop.f32.mrb[0].mxu0
        %v2010 = vadd.f32 0.0, %v2009
        %v2011 = vpop.f32.mrb[0].mxu0
        %v2012 = vadd.f32 0.0, %v2011
        %2013 = vmatprep.mubr.bf16.mxu0 %v619
        %2014 = vmatmul.mubr.bf16.gmra.mrb[0].mxu0 %v618
        %v2015 = vpop.f32.mrb[0].mxu0
        %v2016 = vadd.f32 0.0, %v2015
        %v2017 = vpop.f32.mrb[0].mxu0
        %v2018 = vadd.f32 0.0, %v2017
        %v2019 = vpop.f32.mrb[0].mxu0
        %v2020 = vadd.f32 0.0, %v2019
        %v2021 = vpop.f32.mrb[0].mxu0
        %v2022 = vadd.f32 0.0, %v2021
        %2023 = vmatprep.mubr.bf16.mxu0 %v621
        %2024 = vmatmul.mubr.bf16.gmra.mrb[0].mxu0 %v620
        %v2025 = vpop.f32.mrb[0].mxu0
        %v2026 = vadd.f32 0.0, %v2025
        %v2027 = vpop.f32.mrb[0].mxu0
        %v2028 = vadd.f32 0.0, %v2027
        %v2029 = vpop.f32.mrb[0].mxu0
        %v2030 = vadd.f32 0.0, %v2029
        %v2031 = vpop.f32.mrb[0].mxu0
        %v2032 = vadd.f32 0.0, %v2031
        %2033 = vmatprep.mubr.bf16.mxu0 %v623
        %2034 = vmatmul.mubr.bf16.gmra.mrb[0].mxu0 %v622
        %v2035 = vpop.f32.mrb[0].mxu0
        %v2036 = vadd.f32 0.0, %v2035
        %v2037 = vpop.f32.mrb[0].mxu0
        %v2038 = vadd.f32 0.0, %v2037
        %v2039 = vpop.f32.mrb[0].mxu0
        %v2040 = vadd.f32 0.0, %v2039
        %v2041 = vpop.f32.mrb[0].mxu0
        %v2042 = vadd.f32 0.0, %v2041
        %2043 = vmatprep.mubr.bf16.mxu0 %v625
        %2044 = vmatmul.mubr.bf16.gmra.mrb[0].mxu0 %v624
        %v2045 = vpop.f32.mrb[0].mxu0
        %v2046 = vadd.f32 0.0, %v2045
        %v2047 = vpop.f32.mrb[0].mxu0
        %v2048 = vadd.f32 0.0, %v2047
        %v2049 = vpop.f32.mrb[0].mxu0
        %v2050 = vadd.f32 0.0, %v2049
        %v2051 = vpop.f32.mrb[0].mxu0
        %v2052 = vadd.f32 0.0, %v2051
        %2053 = vmatprep.mubr.bf16.mxu0 %v627
        %2054 = vmatmul.mubr.bf16.gmra.mrb[0].mxu0 %v626
        %v2055 = vpop.f32.mrb[0].mxu0
        %v2056 = vadd.f32 0.0, %v2055
        %v2057 = vpop.f32.mrb[0].mxu0
        %v2058 = vadd.f32 0.0, %v2057
        %v2059 = vpop.f32.mrb[0].mxu0
        %v2060 = vadd.f32 0.0, %v2059
        %v2061 = vpop.f32.mrb[0].mxu0
        %v2062 = vadd.f32 0.0, %v2061
        %2063 = vmatprep.mubr.bf16.mxu0 %v629
        %2064 = vmatmul.mubr.bf16.gmra.mrb[0].mxu0 %v628
        %v2065 = vpop.f32.mrb[0].mxu0
        %v2066 = vadd.f32 0.0, %v2065
        %v2067 = vpop.f32.mrb[0].mxu0
        %v2068 = vadd.f32 0.0, %v2067
        %v2069 = vpop.f32.mrb[0].mxu0
        %v2070 = vadd.f32 0.0, %v2069
        %v2071 = vpop.f32.mrb[0].mxu0
        %v2072 = vadd.f32 0.0, %v2071
        %2073 = vdwg.mxu0
        %v2074 = vxor.u32 %v1337, 2147483648
        %v2075 = vxor.u32 %v1339, 2147483648
        %v2076 = vxor.u32 %v1530, 2147483648
        %v2077 = vxor.u32 %v1532, 2147483648
        %v2078 = vxor.u32 %v1341, 2147483648
        %v2079 = vxor.u32 %v1343, 2147483648
        %v2080 = vxor.u32 %v1534, 2147483648
        %v2081 = vxor.u32 %v1536, 2147483648
        %v2082 = vxor.u32 %v1347, 2147483648
        %v2083 = vxor.u32 %v1349, 2147483648
        %v2084 = vxor.u32 %v1540, 2147483648
        %v2085 = vxor.u32 %v1542, 2147483648
        %v2086 = vxor.u32 %v1351, 2147483648
        %v2087 = vxor.u32 %v1353, 2147483648
        %v2088 = vxor.u32 %v1544, 2147483648
        %v2089 = vxor.u32 %v1546, 2147483648
        %v2090 = vxor.u32 %v1357, 2147483648
        %v2091 = vxor.u32 %v1359, 2147483648
        %v2092 = vxor.u32 %v1550, 2147483648
        %v2093 = vxor.u32 %v1552, 2147483648
        %v2094 = vxor.u32 %v1361, 2147483648
        %v2095 = vxor.u32 %v1363, 2147483648
        %v2096 = vxor.u32 %v1554, 2147483648
        %v2097 = vxor.u32 %v1556, 2147483648
        %v2098 = vxor.u32 %v1367, 2147483648
        %v2099 = vxor.u32 %v1369, 2147483648
        %v2100 = vxor.u32 %v1560, 2147483648
        %v2101 = vxor.u32 %v1562, 2147483648
        %v2102 = vxor.u32 %v1371, 2147483648
        %v2103 = vxor.u32 %v1373, 2147483648
        %v2104 = vxor.u32 %v1564, 2147483648
        %v2105 = vxor.u32 %v1566, 2147483648
        %v2106 = vxor.u32 %v1377, 2147483648
        %v2107 = vxor.u32 %v1379, 2147483648
        %v2108 = vxor.u32 %v1570, 2147483648
        %v2109 = vxor.u32 %v1572, 2147483648
        %v2110 = vxor.u32 %v1381, 2147483648
        %v2111 = vxor.u32 %v1383, 2147483648
        %v2112 = vxor.u32 %v1574, 2147483648
        %v2113 = vxor.u32 %v1576, 2147483648
        %v2114 = vxor.u32 %v1387, 2147483648
        %v2115 = vxor.u32 %v1389, 2147483648
        %v2116 = vxor.u32 %v1580, 2147483648
        %v2117 = vxor.u32 %v1582, 2147483648
        %v2118 = vxor.u32 %v1391, 2147483648
        %v2119 = vxor.u32 %v1393, 2147483648
        %v2120 = vxor.u32 %v1584, 2147483648
        %v2121 = vxor.u32 %v1586, 2147483648
        %v2122 = vxor.u32 %v1397, 2147483648
        %v2123 = vxor.u32 %v1399, 2147483648
        %v2124 = vxor.u32 %v1590, 2147483648
        %v2125 = vxor.u32 %v1592, 2147483648
        %v2126 = vxor.u32 %v1401, 2147483648
        %v2127 = vxor.u32 %v1403, 2147483648
        %v2128 = vxor.u32 %v1594, 2147483648
        %v2129 = vxor.u32 %v1596, 2147483648
        %v2130 = vxor.u32 %v1407, 2147483648
        %v2131 = vxor.u32 %v1409, 2147483648
        %v2132 = vxor.u32 %v1600, 2147483648
        %v2133 = vxor.u32 %v1602, 2147483648
        %v2134 = vxor.u32 %v1411, 2147483648
        %v2135 = vxor.u32 %v1413, 2147483648
        %v2136 = vxor.u32 %v1604, 2147483648
        %v2137 = vxor.u32 %v1606, 2147483648
        %v2138 = vxor.u32 %v1417, 2147483648
        %v2139 = vxor.u32 %v1419, 2147483648
        %v2140 = vxor.u32 %v1610, 2147483648
        %v2141 = vxor.u32 %v1612, 2147483648
        %v2142 = vxor.u32 %v1421, 2147483648
        %v2143 = vxor.u32 %v1423, 2147483648
        %v2144 = vxor.u32 %v1614, 2147483648
        %v2145 = vxor.u32 %v1616, 2147483648
        %v2146 = vxor.u32 %v1427, 2147483648
        %v2147 = vxor.u32 %v1429, 2147483648
        %v2148 = vxor.u32 %v1620, 2147483648
        %v2149 = vxor.u32 %v1622, 2147483648
        %v2150 = vxor.u32 %v1431, 2147483648
        %v2151 = vxor.u32 %v1433, 2147483648
        %v2152 = vxor.u32 %v1624, 2147483648
        %v2153 = vxor.u32 %v1626, 2147483648
        %v2154 = vxor.u32 %v1437, 2147483648
        %v2155 = vxor.u32 %v1439, 2147483648
        %v2156 = vxor.u32 %v1630, 2147483648
        %v2157 = vxor.u32 %v1632, 2147483648
        %v2158 = vxor.u32 %v1441, 2147483648
        %v2159 = vxor.u32 %v1443, 2147483648
        %v2160 = vxor.u32 %v1634, 2147483648
        %v2161 = vxor.u32 %v1636, 2147483648
        %v2162 = vxor.u32 %v1447, 2147483648
        %v2163 = vxor.u32 %v1449, 2147483648
        %v2164 = vxor.u32 %v1640, 2147483648
        %v2165 = vxor.u32 %v1642, 2147483648
        %v2166 = vxor.u32 %v1451, 2147483648
        %v2167 = vxor.u32 %v1453, 2147483648
        %v2168 = vxor.u32 %v1644, 2147483648
        %v2169 = vxor.u32 %v1646, 2147483648
        %v2170 = vxor.u32 %v1457, 2147483648
        %v2171 = vxor.u32 %v1459, 2147483648
        %v2172 = vxor.u32 %v1650, 2147483648
        %v2173 = vxor.u32 %v1652, 2147483648
        %v2174 = vxor.u32 %v1461, 2147483648
        %v2175 = vxor.u32 %v1463, 2147483648
        %v2176 = vxor.u32 %v1654, 2147483648
        %v2177 = vxor.u32 %v1656, 2147483648
        %v2178 = vxor.u32 %v1467, 2147483648
        %v2179 = vxor.u32 %v1469, 2147483648
        %v2180 = vxor.u32 %v1660, 2147483648
        %v2181 = vxor.u32 %v1662, 2147483648
        %v2182 = vxor.u32 %v1471, 2147483648
        %v2183 = vxor.u32 %v1473, 2147483648
        %v2184 = vxor.u32 %v1664, 2147483648
        %v2185 = vxor.u32 %v1666, 2147483648
        %v2186 = vxor.u32 %v1477, 2147483648
        %v2187 = vxor.u32 %v1479, 2147483648
        %v2188 = vxor.u32 %v1670, 2147483648
        %v2189 = vxor.u32 %v1672, 2147483648
        %v2190 = vxor.u32 %v1481, 2147483648
        %v2191 = vxor.u32 %v1483, 2147483648
        %v2192 = vxor.u32 %v1674, 2147483648
        %v2193 = vxor.u32 %v1676, 2147483648
        %v2194 = vxor.u32 %v1487, 2147483648
        %v2195 = vxor.u32 %v1489, 2147483648
        %v2196 = vxor.u32 %v1680, 2147483648
        %v2197 = vxor.u32 %v1682, 2147483648
        %v2198 = vxor.u32 %v1491, 2147483648
        %v2199 = vxor.u32 %v1493, 2147483648
        %v2200 = vxor.u32 %v1684, 2147483648
        %v2201 = vxor.u32 %v1686, 2147483648
        %v2202 = vmul.f32 %v2074, 1.442695
        %v2203 = vpow.pop %v2202
        %v2204 = vmul.f32 %v2075, 1.442695
        %v2205 = vpow.pop %v2204
        %v2206 = vmul.f32 %v2076, 1.442695
        %v2207 = vpow.pop %v2206
        %v2208 = vmul.f32 %v2077, 1.442695
        %v2209 = vpow.pop %v2208
        %v2210 = vmul.f32 %v2078, 1.442695
        %v2211 = vpow.pop %v2210
        %v2212 = vmul.f32 %v2079, 1.442695
        %v2213 = vpow.pop %v2212
        %v2214 = vmul.f32 %v2080, 1.442695
        %v2215 = vpow.pop %v2214
        %v2216 = vmul.f32 %v2081, 1.442695
        %v2217 = vpow.pop %v2216
        %v2218 = vmul.f32 %v2082, 1.442695
        %v2219 = vpow.pop %v2218
        %v2220 = vmul.f32 %v2083, 1.442695
        %v2221 = vpow.pop %v2220
        %v2222 = vmul.f32 %v2084, 1.442695
        %v2223 = vpow.pop %v2222
        %v2224 = vmul.f32 %v2085, 1.442695
        %v2225 = vpow.pop %v2224
        %v2226 = vmul.f32 %v2086, 1.442695
        %v2227 = vpow.pop %v2226
        %v2228 = vmul.f32 %v2087, 1.442695
        %v2229 = vpow.pop %v2228
        %v2230 = vmul.f32 %v2088, 1.442695
        %v2231 = vpow.pop %v2230
        %v2232 = vmul.f32 %v2089, 1.442695
        %v2233 = vpow.pop %v2232
        %v2234 = vmul.f32 %v2090, 1.442695
        %v2235 = vpow.pop %v2234
        %v2236 = vmul.f32 %v2091, 1.442695
        %v2237 = vpow.pop %v2236
        %v2238 = vmul.f32 %v2092, 1.442695
        %v2239 = vpow.pop %v2238
        %v2240 = vmul.f32 %v2093, 1.442695
        %v2241 = vpow.pop %v2240
        %v2242 = vmul.f32 %v2094, 1.442695
        %v2243 = vpow.pop %v2242
        %v2244 = vmul.f32 %v2095, 1.442695
        %v2245 = vpow.pop %v2244
        %v2246 = vmul.f32 %v2096, 1.442695
        %v2247 = vpow.pop %v2246
        %v2248 = vmul.f32 %v2097, 1.442695
        %v2249 = vpow.pop %v2248
        %v2250 = vmul.f32 %v2098, 1.442695
        %v2251 = vpow.pop %v2250
        %v2252 = vmul.f32 %v2099, 1.442695
        %v2253 = vpow.pop %v2252
        %v2254 = vmul.f32 %v2100, 1.442695
        %v2255 = vpow.pop %v2254
        %v2256 = vmul.f32 %v2101, 1.442695
        %v2257 = vpow.pop %v2256
        %v2258 = vmul.f32 %v2102, 1.442695
        %v2259 = vpow.pop %v2258
        %v2260 = vmul.f32 %v2103, 1.442695
        %v2261 = vpow.pop %v2260
        %v2262 = vmul.f32 %v2104, 1.442695
        %v2263 = vpow.pop %v2262
        %v2264 = vmul.f32 %v2105, 1.442695
        %v2265 = vpow.pop %v2264
        %v2266 = vmul.f32 %v2106, 1.442695
        %v2267 = vpow.pop %v2266
        %v2268 = vmul.f32 %v2107, 1.442695
        %v2269 = vpow.pop %v2268
        %v2270 = vmul.f32 %v2108, 1.442695
        %v2271 = vpow.pop %v2270
        %v2272 = vmul.f32 %v2109, 1.442695
        %v2273 = vpow.pop %v2272
        %v2274 = vmul.f32 %v2110, 1.442695
        %v2275 = vpow.pop %v2274
        %v2276 = vmul.f32 %v2111, 1.442695
        %v2277 = vpow.pop %v2276
        %v2278 = vmul.f32 %v2112, 1.442695
        %v2279 = vpow.pop %v2278
        %v2280 = vmul.f32 %v2113, 1.442695
        %v2281 = vpow.pop %v2280
        %v2282 = vmul.f32 %v2114, 1.442695
        %v2283 = vpow.pop %v2282
        %v2284 = vmul.f32 %v2115, 1.442695
        %v2285 = vpow.pop %v2284
        %v2286 = vmul.f32 %v2116, 1.442695
        %v2287 = vpow.pop %v2286
        %v2288 = vmul.f32 %v2117, 1.442695
        %v2289 = vpow.pop %v2288
        %v2290 = vmul.f32 %v2118, 1.442695
        %v2291 = vpow.pop %v2290
        %v2292 = vmul.f32 %v2119, 1.442695
        %v2293 = vpow.pop %v2292
        %v2294 = vmul.f32 %v2120, 1.442695
        %v2295 = vpow.pop %v2294
        %v2296 = vmul.f32 %v2121, 1.442695
        %v2297 = vpow.pop %v2296
        %v2298 = vmul.f32 %v2122, 1.442695
        %v2299 = vpow.pop %v2298
        %v2300 = vmul.f32 %v2123, 1.442695
        %v2301 = vpow.pop %v2300
        %v2302 = vmul.f32 %v2124, 1.442695
        %v2303 = vpow.pop %v2302
        %v2304 = vmul.f32 %v2125, 1.442695
        %v2305 = vpow.pop %v2304
        %v2306 = vmul.f32 %v2126, 1.442695
        %v2307 = vpow.pop %v2306
        %v2308 = vmul.f32 %v2127, 1.442695
        %v2309 = vpow.pop %v2308
        %v2310 = vmul.f32 %v2128, 1.442695
        %v2311 = vpow.pop %v2310
        %v2312 = vmul.f32 %v2129, 1.442695
        %v2313 = vpow.pop %v2312
        %v2314 = vmul.f32 %v2130, 1.442695
        %v2315 = vpow.pop %v2314
        %v2316 = vmul.f32 %v2131, 1.442695
        %v2317 = vpow.pop %v2316
        %v2318 = vmul.f32 %v2132, 1.442695
        %v2319 = vpow.pop %v2318
        %v2320 = vmul.f32 %v2133, 1.442695
        %v2321 = vpow.pop %v2320
        %v2322 = vmul.f32 %v2134, 1.442695
        %v2323 = vpow.pop %v2322
        %v2324 = vmul.f32 %v2135, 1.442695
        %v2325 = vpow.pop %v2324
        %v2326 = vmul.f32 %v2136, 1.442695
        %v2327 = vpow.pop %v2326
        %v2328 = vmul.f32 %v2137, 1.442695
        %v2329 = vpow.pop %v2328
        %v2330 = vmul.f32 %v2138, 1.442695
        %v2331 = vpow.pop %v2330
        %v2332 = vmul.f32 %v2139, 1.442695
        %v2333 = vpow.pop %v2332
        %v2334 = vmul.f32 %v2140, 1.442695
        %v2335 = vpow.pop %v2334
        %v2336 = vmul.f32 %v2141, 1.442695
        %v2337 = vpow.pop %v2336
        %v2338 = vmul.f32 %v2142, 1.442695
        %v2339 = vpow.pop %v2338
        %v2340 = vmul.f32 %v2143, 1.442695
        %v2341 = vpow.pop %v2340
        %v2342 = vmul.f32 %v2144, 1.442695
        %v2343 = vpow.pop %v2342
        %v2344 = vmul.f32 %v2145, 1.442695
        %v2345 = vpow.pop %v2344
        %v2346 = vmul.f32 %v2146, 1.442695
        %v2347 = vpow.pop %v2346
        %v2348 = vmul.f32 %v2147, 1.442695
        %v2349 = vpow.pop %v2348
        %v2350 = vmul.f32 %v2148, 1.442695
        %v2351 = vpow.pop %v2350
        %v2352 = vmul.f32 %v2149, 1.442695
        %v2353 = vpow.pop %v2352
        %v2354 = vmul.f32 %v2150, 1.442695
        %v2355 = vpow.pop %v2354
        %v2356 = vmul.f32 %v2151, 1.442695
        %v2357 = vpow.pop %v2356
        %v2358 = vmul.f32 %v2152, 1.442695
        %v2359 = vpow.pop %v2358
        %v2360 = vmul.f32 %v2153, 1.442695
        %v2361 = vpow.pop %v2360
        %v2362 = vmul.f32 %v2154, 1.442695
        %v2363 = vpow.pop %v2362
        %v2364 = vmul.f32 %v2155, 1.442695
        %v2365 = vpow.pop %v2364
        %v2366 = vmul.f32 %v2156, 1.442695
        %v2367 = vpow.pop %v2366
        %v2368 = vmul.f32 %v2157, 1.442695
        %v2369 = vpow.pop %v2368
        %v2370 = vmul.f32 %v2158, 1.442695
        %v2371 = vpow.pop %v2370
        %v2372 = vmul.f32 %v2159, 1.442695
        %v2373 = vpow.pop %v2372
        %v2374 = vmul.f32 %v2160, 1.442695
        %v2375 = vpow.pop %v2374
        %v2376 = vmul.f32 %v2161, 1.442695
        %v2377 = vpow.pop %v2376
        %v2378 = vmul.f32 %v2162, 1.442695
        %v2379 = vpow.pop %v2378
        %v2380 = vmul.f32 %v2163, 1.442695
        %v2381 = vpow.pop %v2380
        %v2382 = vmul.f32 %v2164, 1.442695
        %v2383 = vpow.pop %v2382
        %v2384 = vmul.f32 %v2165, 1.442695
        %v2385 = vpow.pop %v2384
        %v2386 = vmul.f32 %v2166, 1.442695
        %v2387 = vpow.pop %v2386
        %v2388 = vmul.f32 %v2167, 1.442695
        %v2389 = vpow.pop %v2388
        %v2390 = vmul.f32 %v2168, 1.442695
        %v2391 = vpow.pop %v2390
        %v2392 = vmul.f32 %v2169, 1.442695
        %v2393 = vpow.pop %v2392
        %v2394 = vmul.f32 %v2170, 1.442695
        %v2395 = vpow.pop %v2394
        %v2396 = vmul.f32 %v2171, 1.442695
        %v2397 = vpow.pop %v2396
        %v2398 = vmul.f32 %v2172, 1.442695
        %v2399 = vpow.pop %v2398
        %v2400 = vmul.f32 %v2173, 1.442695
        %v2401 = vpow.pop %v2400
        %v2402 = vmul.f32 %v2174, 1.442695
        %v2403 = vpow.pop %v2402
        %v2404 = vmul.f32 %v2175, 1.442695
        %v2405 = vpow.pop %v2404
        %v2406 = vmul.f32 %v2176, 1.442695
        %v2407 = vpow.pop %v2406
        %v2408 = vmul.f32 %v2177, 1.442695
        %v2409 = vpow.pop %v2408
        %v2410 = vmul.f32 %v2178, 1.442695
        %v2411 = vpow.pop %v2410
        %v2412 = vmul.f32 %v2179, 1.442695
        %v2413 = vpow.pop %v2412
        %v2414 = vmul.f32 %v2180, 1.442695
        %v2415 = vpow.pop %v2414
        %v2416 = vmul.f32 %v2181, 1.442695
        %v2417 = vpow.pop %v2416
        %v2418 = vmul.f32 %v2182, 1.442695
        %v2419 = vpow.pop %v2418
        %v2420 = vmul.f32 %v2183, 1.442695
        %v2421 = vpow.pop %v2420
        %v2422 = vmul.f32 %v2184, 1.442695
        %v2423 = vpow.pop %v2422
        %v2424 = vmul.f32 %v2185, 1.442695
        %v2425 = vpow.pop %v2424
        %v2426 = vmul.f32 %v2186, 1.442695
        %v2427 = vpow.pop %v2426
        %v2428 = vmul.f32 %v2187, 1.442695
        %v2429 = vpow.pop %v2428
        %v2430 = vmul.f32 %v2188, 1.442695
        %v2431 = vpow.pop %v2430
        %v2432 = vmul.f32 %v2189, 1.442695
        %v2433 = vpow.pop %v2432
        %v2434 = vmul.f32 %v2190, 1.442695
        %v2435 = vpow.pop %v2434
        %v2436 = vmul.f32 %v2191, 1.442695
        %v2437 = vpow.pop %v2436
        %v2438 = vmul.f32 %v2192, 1.442695
        %v2439 = vpow.pop %v2438
        %v2440 = vmul.f32 %v2193, 1.442695
        %v2441 = vpow.pop %v2440
        %v2442 = vmul.f32 %v2194, 1.442695
        %v2443 = vpow.pop %v2442
        %v2444 = vmul.f32 %v2195, 1.442695
        %v2445 = vpow.pop %v2444
        %v2446 = vmul.f32 %v2196, 1.442695
        %v2447 = vpow.pop %v2446
        %v2448 = vmul.f32 %v2197, 1.442695
        %v2449 = vpow.pop %v2448
        %v2450 = vmul.f32 %v2198, 1.442695
        %v2451 = vpow.pop %v2450
        %v2452 = vmul.f32 %v2199, 1.442695
        %v2453 = vpow.pop %v2452
        %v2454 = vmul.f32 %v2200, 1.442695
        %v2455 = vpow.pop %v2454
        %v2456 = vmul.f32 %v2201, 1.442695
        %v2457 = vpow.pop %v2456
        %v2458 = vadd.f32 %v2203, 1.0
        %v2459 = vadd.f32 %v2205, 1.0
        %v2460 = vadd.f32 %v2207, 1.0
        %v2461 = vadd.f32 %v2209, 1.0
        %v2462 = vadd.f32 %v2211, 1.0
        %v2463 = vadd.f32 %v2213, 1.0
        %v2464 = vadd.f32 %v2215, 1.0
        %v2465 = vadd.f32 %v2217, 1.0
        %v2466 = vadd.f32 %v2219, 1.0
        %v2467 = vadd.f32 %v2221, 1.0
        %v2468 = vadd.f32 %v2223, 1.0
        %v2469 = vadd.f32 %v2225, 1.0
        %v2470 = vadd.f32 %v2227, 1.0
        %v2471 = vadd.f32 %v2229, 1.0
        %v2472 = vadd.f32 %v2231, 1.0
        %v2473 = vadd.f32 %v2233, 1.0
        %v2474 = vadd.f32 %v2235, 1.0
        %v2475 = vadd.f32 %v2237, 1.0
        %v2476 = vadd.f32 %v2239, 1.0
        %v2477 = vadd.f32 %v2241, 1.0
        %v2478 = vadd.f32 %v2243, 1.0
        %v2479 = vadd.f32 %v2245, 1.0
        %v2480 = vadd.f32 %v2247, 1.0
        %v2481 = vadd.f32 %v2249, 1.0
        %v2482 = vadd.f32 %v2251, 1.0
        %v2483 = vadd.f32 %v2253, 1.0
        %v2484 = vadd.f32 %v2255, 1.0
        %v2485 = vadd.f32 %v2257, 1.0
        %v2486 = vadd.f32 %v2259, 1.0
        %v2487 = vadd.f32 %v2261, 1.0
        %v2488 = vadd.f32 %v2263, 1.0
        %v2489 = vadd.f32 %v2265, 1.0
        %v2490 = vadd.f32 %v2267, 1.0
        %v2491 = vadd.f32 %v2269, 1.0
        %v2492 = vadd.f32 %v2271, 1.0
        %v2493 = vadd.f32 %v2273, 1.0
        %v2494 = vadd.f32 %v2275, 1.0
        %v2495 = vadd.f32 %v2277, 1.0
        %v2496 = vadd.f32 %v2279, 1.0
        %v2497 = vadd.f32 %v2281, 1.0
        %v2498 = vadd.f32 %v2283, 1.0
        %v2499 = vadd.f32 %v2285, 1.0
        %v2500 = vadd.f32 %v2287, 1.0
        %v2501 = vadd.f32 %v2289, 1.0
        %v2502 = vadd.f32 %v2291, 1.0
        %v2503 = vadd.f32 %v2293, 1.0
        %v2504 = vadd.f32 %v2295, 1.0
        %v2505 = vadd.f32 %v2297, 1.0
        %v2506 = vadd.f32 %v2299, 1.0
        %v2507 = vadd.f32 %v2301, 1.0
        %v2508 = vadd.f32 %v2303, 1.0
        %v2509 = vadd.f32 %v2305, 1.0
        %v2510 = vadd.f32 %v2307, 1.0
        %v2511 = vadd.f32 %v2309, 1.0
        %v2512 = vadd.f32 %v2311, 1.0
        %v2513 = vadd.f32 %v2313, 1.0
        %v2514 = vadd.f32 %v2315, 1.0
        %v2515 = vadd.f32 %v2317, 1.0
        %v2516 = vadd.f32 %v2319, 1.0
        %v2517 = vadd.f32 %v2321, 1.0
        %v2518 = vadd.f32 %v2323, 1.0
        %v2519 = vadd.f32 %v2325, 1.0
        %v2520 = vadd.f32 %v2327, 1.0
        %v2521 = vadd.f32 %v2329, 1.0
        %v2522 = vadd.f32 %v2331, 1.0
        %v2523 = vadd.f32 %v2333, 1.0
        %v2524 = vadd.f32 %v2335, 1.0
        %v2525 = vadd.f32 %v2337, 1.0
        %v2526 = vadd.f32 %v2339, 1.0
        %v2527 = vadd.f32 %v2341, 1.0
        %v2528 = vadd.f32 %v2343, 1.0
        %v2529 = vadd.f32 %v2345, 1.0
        %v2530 = vadd.f32 %v2347, 1.0
        %v2531 = vadd.f32 %v2349, 1.0
        %v2532 = vadd.f32 %v2351, 1.0
        %v2533 = vadd.f32 %v2353, 1.0
        %v2534 = vadd.f32 %v2355, 1.0
        %v2535 = vadd.f32 %v2357, 1.0
        %v2536 = vadd.f32 %v2359, 1.0
        %v2537 = vadd.f32 %v2361, 1.0
        %v2538 = vadd.f32 %v2363, 1.0
        %v2539 = vadd.f32 %v2365, 1.0
        %v2540 = vadd.f32 %v2367, 1.0
        %v2541 = vadd.f32 %v2369, 1.0
        %v2542 = vadd.f32 %v2371, 1.0
        %v2543 = vadd.f32 %v2373, 1.0
        %v2544 = vadd.f32 %v2375, 1.0
        %v2545 = vadd.f32 %v2377, 1.0
        %v2546 = vadd.f32 %v2379, 1.0
        %v2547 = vadd.f32 %v2381, 1.0
        %v2548 = vadd.f32 %v2383, 1.0
        %v2549 = vadd.f32 %v2385, 1.0
        %v2550 = vadd.f32 %v2387, 1.0
        %v2551 = vadd.f32 %v2389, 1.0
        %v2552 = vadd.f32 %v2391, 1.0
        %v2553 = vadd.f32 %v2393, 1.0
        %v2554 = vadd.f32 %v2395, 1.0
        %v2555 = vadd.f32 %v2397, 1.0
        %v2556 = vadd.f32 %v2399, 1.0
        %v2557 = vadd.f32 %v2401, 1.0
        %v2558 = vadd.f32 %v2403, 1.0
        %v2559 = vadd.f32 %v2405, 1.0
        %v2560 = vadd.f32 %v2407, 1.0
        %v2561 = vadd.f32 %v2409, 1.0
        %v2562 = vadd.f32 %v2411, 1.0
        %v2563 = vadd.f32 %v2413, 1.0
        %v2564 = vadd.f32 %v2415, 1.0
        %v2565 = vadd.f32 %v2417, 1.0
        %v2566 = vadd.f32 %v2419, 1.0
        %v2567 = vadd.f32 %v2421, 1.0
        %v2568 = vadd.f32 %v2423, 1.0
        %v2569 = vadd.f32 %v2425, 1.0
        %v2570 = vadd.f32 %v2427, 1.0
        %v2571 = vadd.f32 %v2429, 1.0
        %v2572 = vadd.f32 %v2431, 1.0
        %v2573 = vadd.f32 %v2433, 1.0
        %v2574 = vadd.f32 %v2435, 1.0
        %v2575 = vadd.f32 %v2437, 1.0
        %v2576 = vadd.f32 %v2439, 1.0
        %v2577 = vadd.f32 %v2441, 1.0
        %v2578 = vadd.f32 %v2443, 1.0
        %v2579 = vadd.f32 %v2445, 1.0
        %v2580 = vadd.f32 %v2447, 1.0
        %v2581 = vadd.f32 %v2449, 1.0
        %v2582 = vadd.f32 %v2451, 1.0
        %v2583 = vadd.f32 %v2453, 1.0
        %v2584 = vadd.f32 %v2455, 1.0
        %v2585 = vadd.f32 %v2457, 1.0
        %v2586 = vrcp.pop %v2458
        %v2587 = vmul.f32 1.0, %v2586
        %v2588 = vrcp.pop %v2459
        %v2589 = vmul.f32 1.0, %v2588
        %v2590 = vrcp.pop %v2460
        %v2591 = vmul.f32 1.0, %v2590
        %v2592 = vrcp.pop %v2461
        %v2593 = vmul.f32 1.0, %v2592
        %v2594 = vrcp.pop %v2462
        %v2595 = vmul.f32 1.0, %v2594
        %v2596 = vrcp.pop %v2463
        %v2597 = vmul.f32 1.0, %v2596
        %v2598 = vrcp.pop %v2464
        %v2599 = vmul.f32 1.0, %v2598
        %v2600 = vrcp.pop %v2465
        %v2601 = vmul.f32 1.0, %v2600
        %v2602 = vrcp.pop %v2466
        %v2603 = vmul.f32 1.0, %v2602
        %v2604 = vrcp.pop %v2467
        %v2605 = vmul.f32 1.0, %v2604
        %v2606 = vrcp.pop %v2468
        %v2607 = vmul.f32 1.0, %v2606
        %v2608 = vrcp.pop %v2469
        %v2609 = vmul.f32 1.0, %v2608
        %v2610 = vrcp.pop %v2470
        %v2611 = vmul.f32 1.0, %v2610
        %v2612 = vrcp.pop %v2471
        %v2613 = vmul.f32 1.0, %v2612
        %v2614 = vrcp.pop %v2472
        %v2615 = vmul.f32 1.0, %v2614
        %v2616 = vrcp.pop %v2473
        %v2617 = vmul.f32 1.0, %v2616
        %v2618 = vrcp.pop %v2474
        %v2619 = vmul.f32 1.0, %v2618
        %v2620 = vrcp.pop %v2475
        %v2621 = vmul.f32 1.0, %v2620
        %v2622 = vrcp.pop %v2476
        %v2623 = vmul.f32 1.0, %v2622
        %v2624 = vrcp.pop %v2477
        %v2625 = vmul.f32 1.0, %v2624
        %v2626 = vrcp.pop %v2478
        %v2627 = vmul.f32 1.0, %v2626
        %v2628 = vrcp.pop %v2479
        %v2629 = vmul.f32 1.0, %v2628
        %v2630 = vrcp.pop %v2480
        %v2631 = vmul.f32 1.0, %v2630
        %v2632 = vrcp.pop %v2481
        %v2633 = vmul.f32 1.0, %v2632
        %v2634 = vrcp.pop %v2482
        %v2635 = vmul.f32 1.0, %v2634
        %v2636 = vrcp.pop %v2483
        %v2637 = vmul.f32 1.0, %v2636
        %v2638 = vrcp.pop %v2484
        %v2639 = vmul.f32 1.0, %v2638
        %v2640 = vrcp.pop %v2485
        %v2641 = vmul.f32 1.0, %v2640
        %v2642 = vrcp.pop %v2486
        %v2643 = vmul.f32 1.0, %v2642
        %v2644 = vrcp.pop %v2487
        %v2645 = vmul.f32 1.0, %v2644
        %v2646 = vrcp.pop %v2488
        %v2647 = vmul.f32 1.0, %v2646
        %v2648 = vrcp.pop %v2489
        %v2649 = vmul.f32 1.0, %v2648
        %v2650 = vrcp.pop %v2490
        %v2651 = vmul.f32 1.0, %v2650
        %v2652 = vrcp.pop %v2491
        %v2653 = vmul.f32 1.0, %v2652
        %v2654 = vrcp.pop %v2492
        %v2655 = vmul.f32 1.0, %v2654
        %v2656 = vrcp.pop %v2493
        %v2657 = vmul.f32 1.0, %v2656
        %v2658 = vrcp.pop %v2494
        %v2659 = vmul.f32 1.0, %v2658
        %v2660 = vrcp.pop %v2495
        %v2661 = vmul.f32 1.0, %v2660
        %v2662 = vrcp.pop %v2496
        %v2663 = vmul.f32 1.0, %v2662
        %v2664 = vrcp.pop %v2497
        %v2665 = vmul.f32 1.0, %v2664
        %v2666 = vrcp.pop %v2498
        %v2667 = vmul.f32 1.0, %v2666
        %v2668 = vrcp.pop %v2499
        %v2669 = vmul.f32 1.0, %v2668
        %v2670 = vrcp.pop %v2500
        %v2671 = vmul.f32 1.0, %v2670
        %v2672 = vrcp.pop %v2501
        %v2673 = vmul.f32 1.0, %v2672
        %v2674 = vrcp.pop %v2502
        %v2675 = vmul.f32 1.0, %v2674
        %v2676 = vrcp.pop %v2503
        %v2677 = vmul.f32 1.0, %v2676
        %v2678 = vrcp.pop %v2504
        %v2679 = vmul.f32 1.0, %v2678
        %v2680 = vrcp.pop %v2505
        %v2681 = vmul.f32 1.0, %v2680
        %v2682 = vrcp.pop %v2506
        %v2683 = vmul.f32 1.0, %v2682
        %v2684 = vrcp.pop %v2507
        %v2685 = vmul.f32 1.0, %v2684
        %v2686 = vrcp.pop %v2508
        %v2687 = vmul.f32 1.0, %v2686
        %v2688 = vrcp.pop %v2509
        %v2689 = vmul.f32 1.0, %v2688
        %v2690 = vrcp.pop %v2510
        %v2691 = vmul.f32 1.0, %v2690
        %v2692 = vrcp.pop %v2511
        %v2693 = vmul.f32 1.0, %v2692
        %v2694 = vrcp.pop %v2512
        %v2695 = vmul.f32 1.0, %v2694
        %v2696 = vrcp.pop %v2513
        %v2697 = vmul.f32 1.0, %v2696
        %v2698 = vrcp.pop %v2514
        %v2699 = vmul.f32 1.0, %v2698
        %v2700 = vrcp.pop %v2515
        %v2701 = vmul.f32 1.0, %v2700
        %v2702 = vrcp.pop %v2516
        %v2703 = vmul.f32 1.0, %v2702
        %v2704 = vrcp.pop %v2517
        %v2705 = vmul.f32 1.0, %v2704
        %v2706 = vrcp.pop %v2518
        %v2707 = vmul.f32 1.0, %v2706
        %v2708 = vrcp.pop %v2519
        %v2709 = vmul.f32 1.0, %v2708
        %v2710 = vrcp.pop %v2520
        %v2711 = vmul.f32 1.0, %v2710
        %v2712 = vrcp.pop %v2521
        %v2713 = vmul.f32 1.0, %v2712
        %v2714 = vrcp.pop %v2522
        %v2715 = vmul.f32 1.0, %v2714
        %v2716 = vrcp.pop %v2523
        %v2717 = vmul.f32 1.0, %v2716
        %v2718 = vrcp.pop %v2524
        %v2719 = vmul.f32 1.0, %v2718
        %v2720 = vrcp.pop %v2525
        %v2721 = vmul.f32 1.0, %v2720
        %v2722 = vrcp.pop %v2526
        %v2723 = vmul.f32 1.0, %v2722
        %v2724 = vrcp.pop %v2527
        %v2725 = vmul.f32 1.0, %v2724
        %v2726 = vrcp.pop %v2528
        %v2727 = vmul.f32 1.0, %v2726
        %v2728 = vrcp.pop %v2529
        %v2729 = vmul.f32 1.0, %v2728
        %v2730 = vrcp.pop %v2530
        %v2731 = vmul.f32 1.0, %v2730
        %v2732 = vrcp.pop %v2531
        %v2733 = vmul.f32 1.0, %v2732
        %v2734 = vrcp.pop %v2532
        %v2735 = vmul.f32 1.0, %v2734
        %v2736 = vrcp.pop %v2533
        %v2737 = vmul.f32 1.0, %v2736
        %v2738 = vrcp.pop %v2534
        %v2739 = vmul.f32 1.0, %v2738
        %v2740 = vrcp.pop %v2535
        %v2741 = vmul.f32 1.0, %v2740
        %v2742 = vrcp.pop %v2536
        %v2743 = vmul.f32 1.0, %v2742
        %v2744 = vrcp.pop %v2537
        %v2745 = vmul.f32 1.0, %v2744
        %v2746 = vrcp.pop %v2538
        %v2747 = vmul.f32 1.0, %v2746
        %v2748 = vrcp.pop %v2539
        %v2749 = vmul.f32 1.0, %v2748
        %v2750 = vrcp.pop %v2540
        %v2751 = vmul.f32 1.0, %v2750
        %v2752 = vrcp.pop %v2541
        %v2753 = vmul.f32 1.0, %v2752
        %v2754 = vrcp.pop %v2542
        %v2755 = vmul.f32 1.0, %v2754
        %v2756 = vrcp.pop %v2543
        %v2757 = vmul.f32 1.0, %v2756
        %v2758 = vrcp.pop %v2544
        %v2759 = vmul.f32 1.0, %v2758
        %v2760 = vrcp.pop %v2545
        %v2761 = vmul.f32 1.0, %v2760
        %v2762 = vrcp.pop %v2546
        %v2763 = vmul.f32 1.0, %v2762
        %v2764 = vrcp.pop %v2547
        %v2765 = vmul.f32 1.0, %v2764
        %v2766 = vrcp.pop %v2548
        %v2767 = vmul.f32 1.0, %v2766
        %v2768 = vrcp.pop %v2549
        %v2769 = vmul.f32 1.0, %v2768
        %v2770 = vrcp.pop %v2550
        %v2771 = vmul.f32 1.0, %v2770
        %v2772 = vrcp.pop %v2551
        %v2773 = vmul.f32 1.0, %v2772
        %v2774 = vrcp.pop %v2552
        %v2775 = vmul.f32 1.0, %v2774
        %v2776 = vrcp.pop %v2553
        %v2777 = vmul.f32 1.0, %v2776
        %v2778 = vrcp.pop %v2554
        %v2779 = vmul.f32 1.0, %v2778
        %v2780 = vrcp.pop %v2555
        %v2781 = vmul.f32 1.0, %v2780
        %v2782 = vrcp.pop %v2556
        %v2783 = vmul.f32 1.0, %v2782
        %v2784 = vrcp.pop %v2557
        %v2785 = vmul.f32 1.0, %v2784
        %v2786 = vrcp.pop %v2558
        %v2787 = vmul.f32 1.0, %v2786
        %v2788 = vrcp.pop %v2559
        %v2789 = vmul.f32 1.0, %v2788
        %v2790 = vrcp.pop %v2560
        %v2791 = vmul.f32 1.0, %v2790
        %v2792 = vrcp.pop %v2561
        %v2793 = vmul.f32 1.0, %v2792
        %v2794 = vrcp.pop %v2562
        %v2795 = vmul.f32 1.0, %v2794
        %v2796 = vrcp.pop %v2563
        %v2797 = vmul.f32 1.0, %v2796
        %v2798 = vrcp.pop %v2564
        %v2799 = vmul.f32 1.0, %v2798
        %v2800 = vrcp.pop %v2565
        %v2801 = vmul.f32 1.0, %v2800
        %v2802 = vrcp.pop %v2566
        %v2803 = vmul.f32 1.0, %v2802
        %v2804 = vrcp.pop %v2567
        %v2805 = vmul.f32 1.0, %v2804
        %v2806 = vrcp.pop %v2568
        %v2807 = vmul.f32 1.0, %v2806
        %v2808 = vrcp.pop %v2569
        %v2809 = vmul.f32 1.0, %v2808
        %v2810 = vrcp.pop %v2570
        %v2811 = vmul.f32 1.0, %v2810
        %v2812 = vrcp.pop %v2571
        %v2813 = vmul.f32 1.0, %v2812
        %v2814 = vrcp.pop %v2572
        %v2815 = vmul.f32 1.0, %v2814
        %v2816 = vrcp.pop %v2573
        %v2817 = vmul.f32 1.0, %v2816
        %v2818 = vrcp.pop %v2574
        %v2819 = vmul.f32 1.0, %v2818
        %v2820 = vrcp.pop %v2575
        %v2821 = vmul.f32 1.0, %v2820
        %v2822 = vrcp.pop %v2576
        %v2823 = vmul.f32 1.0, %v2822
        %v2824 = vrcp.pop %v2577
        %v2825 = vmul.f32 1.0, %v2824
        %v2826 = vrcp.pop %v2578
        %v2827 = vmul.f32 1.0, %v2826
        %v2828 = vrcp.pop %v2579
        %v2829 = vmul.f32 1.0, %v2828
        %v2830 = vrcp.pop %v2580
        %v2831 = vmul.f32 1.0, %v2830
        %v2832 = vrcp.pop %v2581
        %v2833 = vmul.f32 1.0, %v2832
        %v2834 = vrcp.pop %v2582
        %v2835 = vmul.f32 1.0, %v2834
        %v2836 = vrcp.pop %v2583
        %v2837 = vmul.f32 1.0, %v2836
        %v2838 = vrcp.pop %v2584
        %v2839 = vmul.f32 1.0, %v2838
        %v2840 = vrcp.pop %v2585
        %v2841 = vmul.f32 1.0, %v2840
        %v2842 = vmul.f32 %v1337, %v2587
        %v2843 = vmul.f32 %v1339, %v2589
        %v2844 = vmul.f32 %v1530, %v2591
        %v2845 = vmul.f32 %v1532, %v2593
        %v2846 = vmul.f32 %v1341, %v2595
        %v2847 = vmul.f32 %v1343, %v2597
        %v2848 = vmul.f32 %v1534, %v2599
        %v2849 = vmul.f32 %v1536, %v2601
        %v2850 = vmul.f32 %v1347, %v2603
        %v2851 = vmul.f32 %v1349, %v2605
        %v2852 = vmul.f32 %v1540, %v2607
        %v2853 = vmul.f32 %v1542, %v2609
        %v2854 = vmul.f32 %v1351, %v2611
        %v2855 = vmul.f32 %v1353, %v2613
        %v2856 = vmul.f32 %v1544, %v2615
        %v2857 = vmul.f32 %v1546, %v2617
        %v2858 = vmul.f32 %v1357, %v2619
        %v2859 = vmul.f32 %v1359, %v2621
        %v2860 = vmul.f32 %v1550, %v2623
        %v2861 = vmul.f32 %v1552, %v2625
        %v2862 = vmul.f32 %v1361, %v2627
        %v2863 = vmul.f32 %v1363, %v2629
        %v2864 = vmul.f32 %v1554, %v2631
        %v2865 = vmul.f32 %v1556, %v2633
        %v2866 = vmul.f32 %v1367, %v2635
        %v2867 = vmul.f32 %v1369, %v2637
        %v2868 = vmul.f32 %v1560, %v2639
        %v2869 = vmul.f32 %v1562, %v2641
        %v2870 = vmul.f32 %v1371, %v2643
        %v2871 = vmul.f32 %v1373, %v2645
        %v2872 = vmul.f32 %v1564, %v2647
        %v2873 = vmul.f32 %v1566, %v2649
        %v2874 = vmul.f32 %v1377, %v2651
        %v2875 = vmul.f32 %v1379, %v2653
        %v2876 = vmul.f32 %v1570, %v2655
        %v2877 = vmul.f32 %v1572, %v2657
        %v2878 = vmul.f32 %v1381, %v2659
        %v2879 = vmul.f32 %v1383, %v2661
        %v2880 = vmul.f32 %v1574, %v2663
        %v2881 = vmul.f32 %v1576, %v2665
        %v2882 = vmul.f32 %v1387, %v2667
        %v2883 = vmul.f32 %v1389, %v2669
        %v2884 = vmul.f32 %v1580, %v2671
        %v2885 = vmul.f32 %v1582, %v2673
        %v2886 = vmul.f32 %v1391, %v2675
        %v2887 = vmul.f32 %v1393, %v2677
        %v2888 = vmul.f32 %v1584, %v2679
        %v2889 = vmul.f32 %v1586, %v2681
        %v2890 = vmul.f32 %v1397, %v2683
        %v2891 = vmul.f32 %v1399, %v2685
        %v2892 = vmul.f32 %v1590, %v2687
        %v2893 = vmul.f32 %v1592, %v2689
        %v2894 = vmul.f32 %v1401, %v2691
        %v2895 = vmul.f32 %v1403, %v2693
        %v2896 = vmul.f32 %v1594, %v2695
        %v2897 = vmul.f32 %v1596, %v2697
        %v2898 = vmul.f32 %v1407, %v2699
        %v2899 = vmul.f32 %v1409, %v2701
        %v2900 = vmul.f32 %v1600, %v2703
        %v2901 = vmul.f32 %v1602, %v2705
        %v2902 = vmul.f32 %v1411, %v2707
        %v2903 = vmul.f32 %v1413, %v2709
        %v2904 = vmul.f32 %v1604, %v2711
        %v2905 = vmul.f32 %v1606, %v2713
        %v2906 = vmul.f32 %v1417, %v2715
        %v2907 = vmul.f32 %v1419, %v2717
        %v2908 = vmul.f32 %v1610, %v2719
        %v2909 = vmul.f32 %v1612, %v2721
        %v2910 = vmul.f32 %v1421, %v2723
        %v2911 = vmul.f32 %v1423, %v2725
        %v2912 = vmul.f32 %v1614, %v2727
        %v2913 = vmul.f32 %v1616, %v2729
        %v2914 = vmul.f32 %v1427, %v2731
        %v2915 = vmul.f32 %v1429, %v2733
        %v2916 = vmul.f32 %v1620, %v2735
        %v2917 = vmul.f32 %v1622, %v2737
        %v2918 = vmul.f32 %v1431, %v2739
        %v2919 = vmul.f32 %v1433, %v2741
        %v2920 = vmul.f32 %v1624, %v2743
        %v2921 = vmul.f32 %v1626, %v2745
        %v2922 = vmul.f32 %v1437, %v2747
        %v2923 = vmul.f32 %v1439, %v2749
        %v2924 = vmul.f32 %v1630, %v2751
        %v2925 = vmul.f32 %v1632, %v2753
        %v2926 = vmul.f32 %v1441, %v2755
        %v2927 = vmul.f32 %v1443, %v2757
        %v2928 = vmul.f32 %v1634, %v2759
        %v2929 = vmul.f32 %v1636, %v2761
        %v2930 = vmul.f32 %v1447, %v2763
        %v2931 = vmul.f32 %v1449, %v2765
        %v2932 = vmul.f32 %v1640, %v2767
        %v2933 = vmul.f32 %v1642, %v2769
        %v2934 = vmul.f32 %v1451, %v2771
        %v2935 = vmul.f32 %v1453, %v2773
        %v2936 = vmul.f32 %v1644, %v2775
        %v2937 = vmul.f32 %v1646, %v2777
        %v2938 = vmul.f32 %v1457, %v2779
        %v2939 = vmul.f32 %v1459, %v2781
        %v2940 = vmul.f32 %v1650, %v2783
        %v2941 = vmul.f32 %v1652, %v2785
        %v2942 = vmul.f32 %v1461, %v2787
        %v2943 = vmul.f32 %v1463, %v2789
        %v2944 = vmul.f32 %v1654, %v2791
        %v2945 = vmul.f32 %v1656, %v2793
        %v2946 = vmul.f32 %v1467, %v2795
        %v2947 = vmul.f32 %v1469, %v2797
        %v2948 = vmul.f32 %v1660, %v2799
        %v2949 = vmul.f32 %v1662, %v2801
        %v2950 = vmul.f32 %v1471, %v2803
        %v2951 = vmul.f32 %v1473, %v2805
        %v2952 = vmul.f32 %v1664, %v2807
        %v2953 = vmul.f32 %v1666, %v2809
        %v2954 = vmul.f32 %v1477, %v2811
        %v2955 = vmul.f32 %v1479, %v2813
        %v2956 = vmul.f32 %v1670, %v2815
        %v2957 = vmul.f32 %v1672, %v2817
        %v2958 = vmul.f32 %v1481, %v2819
        %v2959 = vmul.f32 %v1483, %v2821
        %v2960 = vmul.f32 %v1674, %v2823
        %v2961 = vmul.f32 %v1676, %v2825
        %v2962 = vmul.f32 %v1487, %v2827
        %v2963 = vmul.f32 %v1489, %v2829
        %v2964 = vmul.f32 %v1680, %v2831
        %v2965 = vmul.f32 %v1682, %v2833
        %v2966 = vmul.f32 %v1491, %v2835
        %v2967 = vmul.f32 %v1493, %v2837
        %v2968 = vmul.f32 %v1684, %v2839
        %v2969 = vmul.f32 %v1686, %v2841
        %v2970 = vmul.f32 %v2842, %v1723
        %v2971 = vmul.f32 %v2843, %v1725
        %v2972 = vmul.f32 %v2844, %v1916
        %v2973 = vmul.f32 %v2845, %v1918
        %v2974 = vmul.f32 %v2846, %v1727
        %v2975 = vmul.f32 %v2847, %v1729
        %v2976 = vmul.f32 %v2848, %v1920
        %v2977 = vmul.f32 %v2849, %v1922
        %v2978 = vmul.f32 %v2850, %v1733
        %v2979 = vmul.f32 %v2851, %v1735
        %v2980 = vmul.f32 %v2852, %v1926
        %v2981 = vmul.f32 %v2853, %v1928
        %v2982 = vmul.f32 %v2854, %v1737
        %v2983 = vmul.f32 %v2855, %v1739
        %v2984 = vmul.f32 %v2856, %v1930
        %v2985 = vmul.f32 %v2857, %v1932
        %v2986 = vmul.f32 %v2858, %v1743
        %v2987 = vmul.f32 %v2859, %v1745
        %v2988 = vmul.f32 %v2860, %v1936
        %v2989 = vmul.f32 %v2861, %v1938
        %v2990 = vmul.f32 %v2862, %v1747
        %v2991 = vmul.f32 %v2863, %v1749
        %v2992 = vmul.f32 %v2864, %v1940
        %v2993 = vmul.f32 %v2865, %v1942
        %v2994 = vmul.f32 %v2866, %v1753
        %v2995 = vmul.f32 %v2867, %v1755
        %v2996 = vmul.f32 %v2868, %v1946
        %v2997 = vmul.f32 %v2869, %v1948
        %v2998 = vmul.f32 %v2870, %v1757
        %v2999 = vmul.f32 %v2871, %v1759
        %v3000 = vmul.f32 %v2872, %v1950
        %v3001 = vmul.f32 %v2873, %v1952
        %v3002 = vmul.f32 %v2874, %v1763
        %v3003 = vmul.f32 %v2875, %v1765
        %v3004 = vmul.f32 %v2876, %v1956
        %v3005 = vmul.f32 %v2877, %v1958
        %v3006 = vmul.f32 %v2878, %v1767
        %v3007 = vmul.f32 %v2879, %v1769
        %v3008 = vmul.f32 %v2880, %v1960
        %v3009 = vmul.f32 %v2881, %v1962
        %v3010 = vmul.f32 %v2882, %v1773
        %v3011 = vmul.f32 %v2883, %v1775
        %v3012 = vmul.f32 %v2884, %v1966
        %v3013 = vmul.f32 %v2885, %v1968
        %v3014 = vmul.f32 %v2886, %v1777
        %v3015 = vmul.f32 %v2887, %v1779
        %v3016 = vmul.f32 %v2888, %v1970
        %v3017 = vmul.f32 %v2889, %v1972
        %v3018 = vmul.f32 %v2890, %v1783
        %v3019 = vmul.f32 %v2891, %v1785
        %v3020 = vmul.f32 %v2892, %v1976
        %v3021 = vmul.f32 %v2893, %v1978
        %v3022 = vmul.f32 %v2894, %v1787
        %v3023 = vmul.f32 %v2895, %v1789
        %v3024 = vmul.f32 %v2896, %v1980
        %v3025 = vmul.f32 %v2897, %v1982
        %v3026 = vmul.f32 %v2898, %v1793
        %v3027 = vmul.f32 %v2899, %v1795
        %v3028 = vmul.f32 %v2900, %v1986
        %v3029 = vmul.f32 %v2901, %v1988
        %v3030 = vmul.f32 %v2902, %v1797
        %v3031 = vmul.f32 %v2903, %v1799
        %v3032 = vmul.f32 %v2904, %v1990
        %v3033 = vmul.f32 %v2905, %v1992
        %v3034 = vmul.f32 %v2906, %v1803
        %v3035 = vmul.f32 %v2907, %v1805
        %v3036 = vmul.f32 %v2908, %v1996
        %v3037 = vmul.f32 %v2909, %v1998
        %v3038 = vmul.f32 %v2910, %v1807
        %v3039 = vmul.f32 %v2911, %v1809
        %v3040 = vmul.f32 %v2912, %v2000
        %v3041 = vmul.f32 %v2913, %v2002
        %v3042 = vmul.f32 %v2914, %v1813
        %v3043 = vmul.f32 %v2915, %v1815
        %v3044 = vmul.f32 %v2916, %v2006
        %v3045 = vmul.f32 %v2917, %v2008
        %v3046 = vmul.f32 %v2918, %v1817
        %v3047 = vmul.f32 %v2919, %v1819
        %v3048 = vmul.f32 %v2920, %v2010
        %v3049 = vmul.f32 %v2921, %v2012
        %v3050 = vmul.f32 %v2922, %v1823
        %v3051 = vmul.f32 %v2923, %v1825
        %v3052 = vmul.f32 %v2924, %v2016
        %v3053 = vmul.f32 %v2925, %v2018
        %v3054 = vmul.f32 %v2926, %v1827
        %v3055 = vmul.f32 %v2927, %v1829
        %v3056 = vmul.f32 %v2928, %v2020
        %v3057 = vmul.f32 %v2929, %v2022
        %v3058 = vmul.f32 %v2930, %v1833
        %v3059 = vmul.f32 %v2931, %v1835
        %v3060 = vmul.f32 %v2932, %v2026
        %v3061 = vmul.f32 %v2933, %v2028
        %v3062 = vmul.f32 %v2934, %v1837
        %v3063 = vmul.f32 %v2935, %v1839
        %v3064 = vmul.f32 %v2936, %v2030
        %v3065 = vmul.f32 %v2937, %v2032
        %v3066 = vmul.f32 %v2938, %v1843
        %v3067 = vmul.f32 %v2939, %v1845
        %v3068 = vmul.f32 %v2940, %v2036
        %v3069 = vmul.f32 %v2941, %v2038
        %v3070 = vmul.f32 %v2942, %v1847
        %v3071 = vmul.f32 %v2943, %v1849
        %v3072 = vmul.f32 %v2944, %v2040
        %v3073 = vmul.f32 %v2945, %v2042
        %v3074 = vmul.f32 %v2946, %v1853
        %v3075 = vmul.f32 %v2947, %v1855
        %v3076 = vmul.f32 %v2948, %v2046
        %v3077 = vmul.f32 %v2949, %v2048
        %v3078 = vmul.f32 %v2950, %v1857
        %v3079 = vmul.f32 %v2951, %v1859
        %v3080 = vmul.f32 %v2952, %v2050
        %v3081 = vmul.f32 %v2953, %v2052
        %v3082 = vmul.f32 %v2954, %v1863
        %v3083 = vmul.f32 %v2955, %v1865
        %v3084 = vmul.f32 %v2956, %v2056
        %v3085 = vmul.f32 %v2957, %v2058
        %v3086 = vmul.f32 %v2958, %v1867
        %v3087 = vmul.f32 %v2959, %v1869
        %v3088 = vmul.f32 %v2960, %v2060
        %v3089 = vmul.f32 %v2961, %v2062
        %v3090 = vmul.f32 %v2962, %v1873
        %v3091 = vmul.f32 %v2963, %v1875
        %v3092 = vmul.f32 %v2964, %v2066
        %v3093 = vmul.f32 %v2965, %v2068
        %v3094 = vmul.f32 %v2966, %v1877
        %v3095 = vmul.f32 %v2967, %v1879
        %v3096 = vmul.f32 %v2968, %v2070
        %v3097 = vmul.f32 %v2969, %v2072
        %v3098 = vpack.c.bf16 %v2974, %v2970
        %v3099 = vpack.c.bf16 %v2975, %v2971
        %v3100 = vpack.c.bf16 %v2976, %v2972
        %v3101 = vpack.c.bf16 %v2977, %v2973
        %v3102 = vpack.c.bf16 %v2982, %v2978
        %v3103 = vpack.c.bf16 %v2983, %v2979
        %v3104 = vpack.c.bf16 %v2984, %v2980
        %v3105 = vpack.c.bf16 %v2985, %v2981
        %v3106 = vpack.c.bf16 %v2990, %v2986
        %v3107 = vpack.c.bf16 %v2991, %v2987
        %v3108 = vpack.c.bf16 %v2992, %v2988
        %v3109 = vpack.c.bf16 %v2993, %v2989
        %v3110 = vpack.c.bf16 %v2998, %v2994
        %v3111 = vpack.c.bf16 %v2999, %v2995
        %v3112 = vpack.c.bf16 %v3000, %v2996
        %v3113 = vpack.c.bf16 %v3001, %v2997
        %v3114 = vpack.c.bf16 %v3006, %v3002
        %v3115 = vpack.c.bf16 %v3007, %v3003
        %v3116 = vpack.c.bf16 %v3008, %v3004
        %v3117 = vpack.c.bf16 %v3009, %v3005
        %v3118 = vpack.c.bf16 %v3014, %v3010
        %v3119 = vpack.c.bf16 %v3015, %v3011
        %v3120 = vpack.c.bf16 %v3016, %v3012
        %v3121 = vpack.c.bf16 %v3017, %v3013
        %v3122 = vpack.c.bf16 %v3022, %v3018
        %v3123 = vpack.c.bf16 %v3023, %v3019
        %v3124 = vpack.c.bf16 %v3024, %v3020
        %v3125 = vpack.c.bf16 %v3025, %v3021
        %v3126 = vpack.c.bf16 %v3030, %v3026
        %v3127 = vpack.c.bf16 %v3031, %v3027
        %v3128 = vpack.c.bf16 %v3032, %v3028
        %v3129 = vpack.c.bf16 %v3033, %v3029
        %v3130 = vpack.c.bf16 %v3038, %v3034
        %v3131 = vpack.c.bf16 %v3039, %v3035
        %v3132 = vpack.c.bf16 %v3040, %v3036
        %v3133 = vpack.c.bf16 %v3041, %v3037
        %v3134 = vpack.c.bf16 %v3046, %v3042
        %v3135 = vpack.c.bf16 %v3047, %v3043
        %v3136 = vpack.c.bf16 %v3048, %v3044
        %v3137 = vpack.c.bf16 %v3049, %v3045
        %v3138 = vpack.c.bf16 %v3054, %v3050
        %v3139 = vpack.c.bf16 %v3055, %v3051
        %v3140 = vpack.c.bf16 %v3056, %v3052
        %v3141 = vpack.c.bf16 %v3057, %v3053
        %v3142 = vpack.c.bf16 %v3062, %v3058
        %v3143 = vpack.c.bf16 %v3063, %v3059
        %v3144 = vpack.c.bf16 %v3064, %v3060
        %v3145 = vpack.c.bf16 %v3065, %v3061
        %v3146 = vpack.c.bf16 %v3070, %v3066
        %v3147 = vpack.c.bf16 %v3071, %v3067
        %v3148 = vpack.c.bf16 %v3072, %v3068
        %v3149 = vpack.c.bf16 %v3073, %v3069
        %v3150 = vpack.c.bf16 %v3078, %v3074
        %v3151 = vpack.c.bf16 %v3079, %v3075
        %v3152 = vpack.c.bf16 %v3080, %v3076
        %v3153 = vpack.c.bf16 %v3081, %v3077
        %v3154 = vpack.c.bf16 %v3086, %v3082
        %v3155 = vpack.c.bf16 %v3087, %v3083
        %v3156 = vpack.c.bf16 %v3088, %v3084
        %v3157 = vpack.c.bf16 %v3089, %v3085
        %v3158 = vpack.c.bf16 %v3094, %v3090
        %v3159 = vpack.c.bf16 %v3095, %v3091
        %v3160 = vpack.c.bf16 %v3096, %v3092
        %v3161 = vpack.c.bf16 %v3097, %v3093
        %v3162 = vld [vmem:[#allocation2] sm:$0xff]
        %v3163 = vld [vmem:[#allocation2 + $0x8] sm:$0xff]
        %v3164 = vld [vmem:[#allocation2 + $0x10] sm:$0xff]
        %v3165 = vld [vmem:[#allocation2 + $0x18] sm:$0xff]
        %v3166 = vld [vmem:[#allocation2 + $0x20] sm:$0xff]
        %v3167 = vld [vmem:[#allocation2 + $0x28] sm:$0xff]
        %v3168 = vld [vmem:[#allocation2 + $0x30] sm:$0xff]
        %v3169 = vld [vmem:[#allocation2 + $0x38] sm:$0xff]
        %v3170 = vld [vmem:[#allocation2 + $0x40] sm:$0xff]
        %v3171 = vld [vmem:[#allocation2 + $0x48] sm:$0xff]
        %v3172 = vld [vmem:[#allocation2 + $0x50] sm:$0xff]
        %v3173 = vld [vmem:[#allocation2 + $0x58] sm:$0xff]
        %v3174 = vld [vmem:[#allocation2 + $0x60] sm:$0xff]
        %v3175 = vld [vmem:[#allocation2 + $0x68] sm:$0xff]
        %v3176 = vld [vmem:[#allocation2 + $0x70] sm:$0xff]
        %v3177 = vld [vmem:[#allocation2 + $0x78] sm:$0xff]
        %v3178 = vld [vmem:[#allocation2 + $0x80] sm:$0xff]
        %v3179 = vld [vmem:[#allocation2 + $0x88] sm:$0xff]
        %v3180 = vld [vmem:[#allocation2 + $0x90] sm:$0xff]
        %v3181 = vld [vmem:[#allocation2 + $0x98] sm:$0xff]
        %v3182 = vld [vmem:[#allocation2 + $0xa0] sm:$0xff]
        %v3183 = vld [vmem:[#allocation2 + $0xa8] sm:$0xff]
        %v3184 = vld [vmem:[#allocation2 + $0xb0] sm:$0xff]
        %v3185 = vld [vmem:[#allocation2 + $0xb8] sm:$0xff]
        %v3186 = vld [vmem:[#allocation2 + $0xc0] sm:$0xff]
        %v3187 = vld [vmem:[#allocation2 + $0xc8] sm:$0xff]
        %v3188 = vld [vmem:[#allocation2 + $0xd0] sm:$0xff]
        %v3189 = vld [vmem:[#allocation2 + $0xd8] sm:$0xff]
        %v3190 = vld [vmem:[#allocation2 + $0xe0] sm:$0xff]
        %v3191 = vld [vmem:[#allocation2 + $0xe8] sm:$0xff]
        %v3192 = vld [vmem:[#allocation2 + $0xf0] sm:$0xff]
        %v3193 = vld [vmem:[#allocation2 + $0xf8] sm:$0xff]
        %v3194 = vld [vmem:[#allocation2 + $0x100] sm:$0xff]
        %v3195 = vld [vmem:[#allocation2 + $0x108] sm:$0xff]
        %v3196 = vld [vmem:[#allocation2 + $0x110] sm:$0xff]
        %v3197 = vld [vmem:[#allocation2 + $0x118] sm:$0xff]
        %v3198 = vld [vmem:[#allocation2 + $0x120] sm:$0xff]
        %v3199 = vld [vmem:[#allocation2 + $0x128] sm:$0xff]
        %v3200 = vld [vmem:[#allocation2 + $0x130] sm:$0xff]
        %v3201 = vld [vmem:[#allocation2 + $0x138] sm:$0xff]
        %v3202 = vld [vmem:[#allocation2 + $0x140] sm:$0xff]
        %v3203 = vld [vmem:[#allocation2 + $0x148] sm:$0xff]
        %v3204 = vld [vmem:[#allocation2 + $0x150] sm:$0xff]
        %v3205 = vld [vmem:[#allocation2 + $0x158] sm:$0xff]
        %v3206 = vld [vmem:[#allocation2 + $0x160] sm:$0xff]
        %v3207 = vld [vmem:[#allocation2 + $0x168] sm:$0xff]
        %v3208 = vld [vmem:[#allocation2 + $0x170] sm:$0xff]
        %v3209 = vld [vmem:[#allocation2 + $0x178] sm:$0xff]
        %v3210 = vld [vmem:[#allocation2 + $0x180] sm:$0xff]
        %v3211 = vld [vmem:[#allocation2 + $0x188] sm:$0xff]
        %v3212 = vld [vmem:[#allocation2 + $0x190] sm:$0xff]
        %v3213 = vld [vmem:[#allocation2 + $0x198] sm:$0xff]
        %v3214 = vld [vmem:[#allocation2 + $0x1a0] sm:$0xff]
        %v3215 = vld [vmem:[#allocation2 + $0x1a8] sm:$0xff]
        %v3216 = vld [vmem:[#allocation2 + $0x1b0] sm:$0xff]
        %v3217 = vld [vmem:[#allocation2 + $0x1b8] sm:$0xff]
        %v3218 = vld [vmem:[#allocation2 + $0x1c0] sm:$0xff]
        %v3219 = vld [vmem:[#allocation2 + $0x1c8] sm:$0xff]
        %v3220 = vld [vmem:[#allocation2 + $0x1d0] sm:$0xff]
        %v3221 = vld [vmem:[#allocation2 + $0x1d8] sm:$0xff]
        %v3222 = vld [vmem:[#allocation2 + $0x1e0] sm:$0xff]
        %v3223 = vld [vmem:[#allocation2 + $0x1e8] sm:$0xff]
        %v3224 = vld [vmem:[#allocation2 + $0x1f0] sm:$0xff]
        %v3225 = vld [vmem:[#allocation2 + $0x1f8] sm:$0xff]
        %v3226 = vld [vmem:[%s223] sm:$0xff]
        %v3227 = vld [vmem:[%s223 + $0x8] sm:$0xff]
        %v3228 = vld [vmem:[%s223 + $0x10] sm:$0xff]
        %v3229 = vld [vmem:[%s223 + $0x18] sm:$0xff]
        %v3230 = vld [vmem:[%s223 + $0x20] sm:$0xff]
        %v3231 = vld [vmem:[%s223 + $0x28] sm:$0xff]
        %v3232 = vld [vmem:[%s223 + $0x30] sm:$0xff]
        %v3233 = vld [vmem:[%s223 + $0x38] sm:$0xff]
        %v3234 = vld [vmem:[%s223 + $0x40] sm:$0xff]
        %v3235 = vld [vmem:[%s223 + $0x48] sm:$0xff]
        %v3236 = vld [vmem:[%s223 + $0x50] sm:$0xff]
        %v3237 = vld [vmem:[%s223 + $0x58] sm:$0xff]
        %v3238 = vld [vmem:[%s223 + $0x60] sm:$0xff]
        %v3239 = vld [vmem:[%s223 + $0x68] sm:$0xff]
        %v3240 = vld [vmem:[%s223 + $0x70] sm:$0xff]
        %v3241 = vld [vmem:[%s223 + $0x78] sm:$0xff]
        %v3242 = vld [vmem:[%s223 + $0x80] sm:$0xff]
        %v3243 = vld [vmem:[%s223 + $0x88] sm:$0xff]
        %v3244 = vld [vmem:[%s223 + $0x90] sm:$0xff]
        %v3245 = vld [vmem:[%s223 + $0x98] sm:$0xff]
        %v3246 = vld [vmem:[%s223 + $0xa0] sm:$0xff]
        %v3247 = vld [vmem:[%s223 + $0xa8] sm:$0xff]
        %v3248 = vld [vmem:[%s223 + $0xb0] sm:$0xff]
        %v3249 = vld [vmem:[%s223 + $0xb8] sm:$0xff]
        %v3250 = vld [vmem:[%s223 + $0xc0] sm:$0xff]
        %v3251 = vld [vmem:[%s223 + $0xc8] sm:$0xff]
        %v3252 = vld [vmem:[%s223 + $0xd0] sm:$0xff]
        %v3253 = vld [vmem:[%s223 + $0xd8] sm:$0xff]
        %v3254 = vld [vmem:[%s223 + $0xe0] sm:$0xff]
        %v3255 = vld [vmem:[%s223 + $0xe8] sm:$0xff]
        %v3256 = vld [vmem:[%s223 + $0xf0] sm:$0xff]
        %v3257 = vld [vmem:[%s223 + $0xf8] sm:$0xff]
        %v3258 = vld [vmem:[%s223 + $0x100] sm:$0xff]
        %v3259 = vld [vmem:[%s223 + $0x108] sm:$0xff]
        %v3260 = vld [vmem:[%s223 + $0x110] sm:$0xff]
        %v3261 = vld [vmem:[%s223 + $0x118] sm:$0xff]
        %v3262 = vld [vmem:[%s223 + $0x120] sm:$0xff]
        %v3263 = vld [vmem:[%s223 + $0x128] sm:$0xff]
        %v3264 = vld [vmem:[%s223 + $0x130] sm:$0xff]
        %v3265 = vld [vmem:[%s223 + $0x138] sm:$0xff]
        %v3266 = vld [vmem:[%s223 + $0x140] sm:$0xff]
        %v3267 = vld [vmem:[%s223 + $0x148] sm:$0xff]
        %v3268 = vld [vmem:[%s223 + $0x150] sm:$0xff]
        %v3269 = vld [vmem:[%s223 + $0x158] sm:$0xff]
        %v3270 = vld [vmem:[%s223 + $0x160] sm:$0xff]
        %v3271 = vld [vmem:[%s223 + $0x168] sm:$0xff]
        %v3272 = vld [vmem:[%s223 + $0x170] sm:$0xff]
        %v3273 = vld [vmem:[%s223 + $0x178] sm:$0xff]
        %v3274 = vld [vmem:[%s223 + $0x180] sm:$0xff]
        %v3275 = vld [vmem:[%s223 + $0x188] sm:$0xff]
        %v3276 = vld [vmem:[%s223 + $0x190] sm:$0xff]
        %v3277 = vld [vmem:[%s223 + $0x198] sm:$0xff]
        %v3278 = vld [vmem:[%s223 + $0x1a0] sm:$0xff]
        %v3279 = vld [vmem:[%s223 + $0x1a8] sm:$0xff]
        %v3280 = vld [vmem:[%s223 + $0x1b0] sm:$0xff]
        %v3281 = vld [vmem:[%s223 + $0x1b8] sm:$0xff]
        %v3282 = vld [vmem:[%s223 + $0x1c0] sm:$0xff]
        %v3283 = vld [vmem:[%s223 + $0x1c8] sm:$0xff]
        %v3284 = vld [vmem:[%s223 + $0x1d0] sm:$0xff]
        %v3285 = vld [vmem:[%s223 + $0x1d8] sm:$0xff]
        %v3286 = vld [vmem:[%s223 + $0x1e0] sm:$0xff]
        %v3287 = vld [vmem:[%s223 + $0x1e8] sm:$0xff]
        %v3288 = vld [vmem:[%s223 + $0x1f0] sm:$0xff]
        %v3289 = vld [vmem:[%s223 + $0x1f8] sm:$0xff]
        %v3354 = vunpack.c.l.b16 %v3226
        %v3355 = vunpack.c.h.b16 %v3226
        %v3356 = vunpack.c.l.b16 %v3227
        %v3357 = vunpack.c.h.b16 %v3227
        %v3358 = vunpack.c.l.b16 %v3228
        %v3359 = vunpack.c.h.b16 %v3228
        %v3360 = vunpack.c.l.b16 %v3229
        %v3361 = vunpack.c.h.b16 %v3229
        %v3362 = vunpack.c.l.b16 %v3230
        %v3363 = vunpack.c.h.b16 %v3230
        %v3364 = vunpack.c.l.b16 %v3231
        %v3365 = vunpack.c.h.b16 %v3231
        %v3366 = vunpack.c.l.b16 %v3232
        %v3367 = vunpack.c.h.b16 %v3232
        %v3368 = vunpack.c.l.b16 %v3233
        %v3369 = vunpack.c.h.b16 %v3233
        %v3370 = vunpack.c.l.b16 %v3234
        %v3371 = vunpack.c.h.b16 %v3234
        %v3372 = vunpack.c.l.b16 %v3235
        %v3373 = vunpack.c.h.b16 %v3235
        %v3374 = vunpack.c.l.b16 %v3236
        %v3375 = vunpack.c.h.b16 %v3236
        %v3376 = vunpack.c.l.b16 %v3237
        %v3377 = vunpack.c.h.b16 %v3237
        %v3378 = vunpack.c.l.b16 %v3238
        %v3379 = vunpack.c.h.b16 %v3238
        %v3380 = vunpack.c.l.b16 %v3239
        %v3381 = vunpack.c.h.b16 %v3239
        %v3382 = vunpack.c.l.b16 %v3240
        %v3383 = vunpack.c.h.b16 %v3240
        %v3384 = vunpack.c.l.b16 %v3241
        %v3385 = vunpack.c.h.b16 %v3241
        %v3386 = vunpack.c.l.b16 %v3242
        %v3387 = vunpack.c.h.b16 %v3242
        %v3388 = vunpack.c.l.b16 %v3243
        %v3389 = vunpack.c.h.b16 %v3243
        %v3390 = vunpack.c.l.b16 %v3244
        %v3391 = vunpack.c.h.b16 %v3244
        %v3392 = vunpack.c.l.b16 %v3245
        %v3393 = vunpack.c.h.b16 %v3245
        %v3394 = vunpack.c.l.b16 %v3246
        %v3395 = vunpack.c.h.b16 %v3246
        %v3396 = vunpack.c.l.b16 %v3247
        %v3397 = vunpack.c.h.b16 %v3247
        %v3398 = vunpack.c.l.b16 %v3248
        %v3399 = vunpack.c.h.b16 %v3248
        %v3400 = vunpack.c.l.b16 %v3249
        %v3401 = vunpack.c.h.b16 %v3249
        %v3402 = vunpack.c.l.b16 %v3250
        %v3403 = vunpack.c.h.b16 %v3250
        %v3404 = vunpack.c.l.b16 %v3251
        %v3405 = vunpack.c.h.b16 %v3251
        %v3406 = vunpack.c.l.b16 %v3252
        %v3407 = vunpack.c.h.b16 %v3252
        %v3408 = vunpack.c.l.b16 %v3253
        %v3409 = vunpack.c.h.b16 %v3253
        %v3410 = vunpack.c.l.b16 %v3254
        %v3411 = vunpack.c.h.b16 %v3254
        %v3412 = vunpack.c.l.b16 %v3255
        %v3413 = vunpack.c.h.b16 %v3255
        %v3414 = vunpack.c.l.b16 %v3256
        %v3415 = vunpack.c.h.b16 %v3256
        %v3416 = vunpack.c.l.b16 %v3257
        %v3417 = vunpack.c.h.b16 %v3257
        %v3418 = vunpack.c.l.b16 %v3258
        %v3419 = vunpack.c.h.b16 %v3258
        %v3420 = vunpack.c.l.b16 %v3259
        %v3421 = vunpack.c.h.b16 %v3259
        %v3422 = vunpack.c.l.b16 %v3260
        %v3423 = vunpack.c.h.b16 %v3260
        %v3424 = vunpack.c.l.b16 %v3261
        %v3425 = vunpack.c.h.b16 %v3261
        %v3426 = vunpack.c.l.b16 %v3262
        %v3427 = vunpack.c.h.b16 %v3262
        %v3428 = vunpack.c.l.b16 %v3263
        %v3429 = vunpack.c.h.b16 %v3263
        %v3430 = vunpack.c.l.b16 %v3264
        %v3431 = vunpack.c.h.b16 %v3264
        %v3432 = vunpack.c.l.b16 %v3265
        %v3433 = vunpack.c.h.b16 %v3265
        %v3434 = vunpack.c.l.b16 %v3266
        %v3435 = vunpack.c.h.b16 %v3266
        %v3436 = vunpack.c.l.b16 %v3267
        %v3437 = vunpack.c.h.b16 %v3267
        %v3438 = vunpack.c.l.b16 %v3268
        %v3439 = vunpack.c.h.b16 %v3268
        %v3440 = vunpack.c.l.b16 %v3269
        %v3441 = vunpack.c.h.b16 %v3269
        %v3442 = vunpack.c.l.b16 %v3270
        %v3443 = vunpack.c.h.b16 %v3270
        %v3444 = vunpack.c.l.b16 %v3271
        %v3445 = vunpack.c.h.b16 %v3271
        %v3446 = vunpack.c.l.b16 %v3272
        %v3447 = vunpack.c.h.b16 %v3272
        %v3448 = vunpack.c.l.b16 %v3273
        %v3449 = vunpack.c.h.b16 %v3273
        %v3450 = vunpack.c.l.b16 %v3274
        %v3451 = vunpack.c.h.b16 %v3274
        %v3452 = vunpack.c.l.b16 %v3275
        %v3453 = vunpack.c.h.b16 %v3275
        %v3454 = vunpack.c.l.b16 %v3276
        %v3455 = vunpack.c.h.b16 %v3276
        %v3456 = vunpack.c.l.b16 %v3277
        %v3457 = vunpack.c.h.b16 %v3277
        %v3458 = vunpack.c.l.b16 %v3278
        %v3459 = vunpack.c.h.b16 %v3278
        %v3460 = vunpack.c.l.b16 %v3279
        %v3461 = vunpack.c.h.b16 %v3279
        %v3462 = vunpack.c.l.b16 %v3280
        %v3463 = vunpack.c.h.b16 %v3280
        %v3464 = vunpack.c.l.b16 %v3281
        %v3465 = vunpack.c.h.b16 %v3281
        %v3466 = vunpack.c.l.b16 %v3282
        %v3467 = vunpack.c.h.b16 %v3282
        %v3468 = vunpack.c.l.b16 %v3283
        %v3469 = vunpack.c.h.b16 %v3283
        %v3470 = vunpack.c.l.b16 %v3284
        %v3471 = vunpack.c.h.b16 %v3284
        %v3472 = vunpack.c.l.b16 %v3285
        %v3473 = vunpack.c.h.b16 %v3285
        %v3474 = vunpack.c.l.b16 %v3286
        %v3475 = vunpack.c.h.b16 %v3286
        %v3476 = vunpack.c.l.b16 %v3287
        %v3477 = vunpack.c.h.b16 %v3287
        %v3478 = vunpack.c.l.b16 %v3288
        %v3479 = vunpack.c.h.b16 %v3288
        %v3480 = vunpack.c.l.b16 %v3289
        %v3481 = vunpack.c.h.b16 %v3289
        %v3482 = vpack.c.b16 %v3356, %v3354
        %v3483 = vpack.c.b16 %v3357, %v3355
        %v3484 = vpack.c.b16 %v3360, %v3358
        %v3485 = vpack.c.b16 %v3361, %v3359
        %v3486 = vpack.c.b16 %v3364, %v3362
        %v3487 = vpack.c.b16 %v3365, %v3363
        %v3488 = vpack.c.b16 %v3368, %v3366
        %v3489 = vpack.c.b16 %v3369, %v3367
        %v3490 = vpack.c.b16 %v3372, %v3370
        %v3491 = vpack.c.b16 %v3373, %v3371
        %v3492 = vpack.c.b16 %v3376, %v3374
        %v3493 = vpack.c.b16 %v3377, %v3375
        %v3494 = vpack.c.b16 %v3380, %v3378
        %v3495 = vpack.c.b16 %v3381, %v3379
        %v3496 = vpack.c.b16 %v3384, %v3382
        %v3497 = vpack.c.b16 %v3385, %v3383
        %v3498 = vpack.c.b16 %v3388, %v3386
        %v3499 = vpack.c.b16 %v3389, %v3387
        %v3500 = vpack.c.b16 %v3392, %v3390
        %v3501 = vpack.c.b16 %v3393, %v3391
        %v3502 = vpack.c.b16 %v3396, %v3394
        %v3503 = vpack.c.b16 %v3397, %v3395
        %v3504 = vpack.c.b16 %v3400, %v3398
        %v3505 = vpack.c.b16 %v3401, %v3399
        %v3506 = vpack.c.b16 %v3404, %v3402
        %v3507 = vpack.c.b16 %v3405, %v3403
        %v3508 = vpack.c.b16 %v3408, %v3406
        %v3509 = vpack.c.b16 %v3409, %v3407
        %v3510 = vpack.c.b16 %v3412, %v3410
        %v3511 = vpack.c.b16 %v3413, %v3411
        %v3512 = vpack.c.b16 %v3416, %v3414
        %v3513 = vpack.c.b16 %v3417, %v3415
        %v3514 = vpack.c.b16 %v3420, %v3418
        %v3515 = vpack.c.b16 %v3421, %v3419
        %v3516 = vpack.c.b16 %v3424, %v3422
        %v3517 = vpack.c.b16 %v3425, %v3423
        %v3518 = vpack.c.b16 %v3428, %v3426
        %v3519 = vpack.c.b16 %v3429, %v3427
        %v3520 = vpack.c.b16 %v3432, %v3430
        %v3521 = vpack.c.b16 %v3433, %v3431
        %v3522 = vpack.c.b16 %v3436, %v3434
        %v3523 = vpack.c.b16 %v3437, %v3435
        %v3524 = vpack.c.b16 %v3440, %v3438
        %v3525 = vpack.c.b16 %v3441, %v3439
        %v3526 = vpack.c.b16 %v3444, %v3442
        %v3527 = vpack.c.b16 %v3445, %v3443
        %v3528 = vpack.c.b16 %v3448, %v3446
        %v3529 = vpack.c.b16 %v3449, %v3447
        %v3530 = vpack.c.b16 %v3452, %v3450
        %v3531 = vpack.c.b16 %v3453, %v3451
        %v3532 = vpack.c.b16 %v3456, %v3454
        %v3533 = vpack.c.b16 %v3457, %v3455
        %v3534 = vpack.c.b16 %v3460, %v3458
        %v3535 = vpack.c.b16 %v3461, %v3459
        %v3536 = vpack.c.b16 %v3464, %v3462
        %v3537 = vpack.c.b16 %v3465, %v3463
        %v3538 = vpack.c.b16 %v3468, %v3466
        %v3539 = vpack.c.b16 %v3469, %v3467
        %v3540 = vpack.c.b16 %v3472, %v3470
        %v3541 = vpack.c.b16 %v3473, %v3471
        %v3542 = vpack.c.b16 %v3476, %v3474
        %v3543 = vpack.c.b16 %v3477, %v3475
        %v3544 = vpack.c.b16 %v3480, %v3478
        %v3545 = vpack.c.b16 %v3481, %v3479
        %3610 = vmatprep.subr.bf16.mxu0 %v3483
        %3611 = vmatpush1.bf16.msra.mxu0 %v3482
        %3612 = vmatprep.subr.bf16.mxu0 %v3485
        %3613 = vmatpush1.bf16.msra.mxu0 %v3484
        %3614 = vmatprep.subr.bf16.mxu0 %v3487
        %3615 = vmatpush1.bf16.msra.mxu0 %v3486
        %3616 = vmatprep.subr.bf16.mxu0 %v3489
        %3617 = vmatpush1.bf16.msra.mxu0 %v3488
        %3618 = vmatprep.subr.bf16.mxu0 %v3491
        %3619 = vmatpush1.bf16.msra.mxu0 %v3490
        %3620 = vmatprep.subr.bf16.mxu0 %v3493
        %3621 = vmatpush1.bf16.msra.mxu0 %v3492
        %3622 = vmatprep.subr.bf16.mxu0 %v3495
        %3623 = vmatpush1.bf16.msra.mxu0 %v3494
        %3624 = vmatprep.subr.bf16.mxu0 %v3497
        %3625 = vmatpush1.bf16.msra.mxu0 %v3496
        %3626 = vmatprep.subr.bf16.mxu0 %v3499
        %3627 = vmatpush1.bf16.msra.mxu0 %v3498
        %3628 = vmatprep.subr.bf16.mxu0 %v3501
        %3629 = vmatpush1.bf16.msra.mxu0 %v3500
        %3630 = vmatprep.subr.bf16.mxu0 %v3503
        %3631 = vmatpush1.bf16.msra.mxu0 %v3502
        %3632 = vmatprep.subr.bf16.mxu0 %v3505
        %3633 = vmatpush1.bf16.msra.mxu0 %v3504
        %3634 = vmatprep.subr.bf16.mxu0 %v3507
        %3635 = vmatpush1.bf16.msra.mxu0 %v3506
        %3636 = vmatprep.subr.bf16.mxu0 %v3509
        %3637 = vmatpush1.bf16.msra.mxu0 %v3508
        %3638 = vmatprep.subr.bf16.mxu0 %v3511
        %3639 = vmatpush1.bf16.msra.mxu0 %v3510
        %3640 = vmatprep.subr.bf16.mxu0 %v3513
        %3641 = vmatpush1.bf16.msra.mxu0 %v3512
        %3642 = vmatprep.mubr.bf16.mxu0 %v3099
        %3643 = vmatmul.mubr.bf16.gmra.mrb[0].mxu0 %v3098
        %v3644 = vpop.f32.mrb[0].mxu0
        %v3645 = vadd.f32 0.0, %v3644
        %v3646 = vpop.f32.mrb[0].mxu0
        %v3647 = vadd.f32 0.0, %v3646
        %v3648 = vpop.f32.mrb[0].mxu0
        %v3649 = vadd.f32 0.0, %v3648
        %v3650 = vpop.f32.mrb[0].mxu0
        %v3651 = vadd.f32 0.0, %v3650
        %3652 = vmatprep.mubr.bf16.mxu0 %v3103
        %3653 = vmatmul.mubr.bf16.gmra.mrb[0].mxu0 %v3102
        %v3654 = vpop.f32.mrb[0].mxu0
        %v3655 = vadd.f32 0.0, %v3654
        %v3656 = vpop.f32.mrb[0].mxu0
        %v3657 = vadd.f32 0.0, %v3656
        %v3658 = vpop.f32.mrb[0].mxu0
        %v3659 = vadd.f32 0.0, %v3658
        %v3660 = vpop.f32.mrb[0].mxu0
        %v3661 = vadd.f32 0.0, %v3660
        %3662 = vmatprep.mubr.bf16.mxu0 %v3107
        %3663 = vmatmul.mubr.bf16.gmra.mrb[0].mxu0 %v3106
        %v3664 = vpop.f32.mrb[0].mxu0
        %v3665 = vadd.f32 0.0, %v3664
        %v3666 = vpop.f32.mrb[0].mxu0
        %v3667 = vadd.f32 0.0, %v3666
        %v3668 = vpop.f32.mrb[0].mxu0
        %v3669 = vadd.f32 0.0, %v3668
        %v3670 = vpop.f32.mrb[0].mxu0
        %v3671 = vadd.f32 0.0, %v3670
        %3672 = vmatprep.mubr.bf16.mxu0 %v3111
        %3673 = vmatmul.mubr.bf16.gmra.mrb[0].mxu0 %v3110
        %v3674 = vpop.f32.mrb[0].mxu0
        %v3675 = vadd.f32 0.0, %v3674
        %v3676 = vpop.f32.mrb[0].mxu0
        %v3677 = vadd.f32 0.0, %v3676
        %v3678 = vpop.f32.mrb[0].mxu0
        %v3679 = vadd.f32 0.0, %v3678
        %v3680 = vpop.f32.mrb[0].mxu0
        %v3681 = vadd.f32 0.0, %v3680
        %3682 = vmatprep.mubr.bf16.mxu0 %v3115
        %3683 = vmatmul.mubr.bf16.gmra.mrb[0].mxu0 %v3114
        %v3684 = vpop.f32.mrb[0].mxu0
        %v3685 = vadd.f32 0.0, %v3684
        %v3686 = vpop.f32.mrb[0].mxu0
        %v3687 = vadd.f32 0.0, %v3686
        %v3688 = vpop.f32.mrb[0].mxu0
        %v3689 = vadd.f32 0.0, %v3688
        %v3690 = vpop.f32.mrb[0].mxu0
        %v3691 = vadd.f32 0.0, %v3690
        %3692 = vmatprep.mubr.bf16.mxu0 %v3119
        %3693 = vmatmul.mubr.bf16.gmra.mrb[0].mxu0 %v3118
        %v3694 = vpop.f32.mrb[0].mxu0
        %v3695 = vadd.f32 0.0, %v3694
        %v3696 = vpop.f32.mrb[0].mxu0
        %v3697 = vadd.f32 0.0, %v3696
        %v3698 = vpop.f32.mrb[0].mxu0
        %v3699 = vadd.f32 0.0, %v3698
        %v3700 = vpop.f32.mrb[0].mxu0
        %v3701 = vadd.f32 0.0, %v3700
        %3702 = vmatprep.mubr.bf16.mxu0 %v3123
        %3703 = vmatmul.mubr.bf16.gmra.mrb[0].mxu0 %v3122
        %v3704 = vpop.f32.mrb[0].mxu0
        %v3705 = vadd.f32 0.0, %v3704
        %v3706 = vpop.f32.mrb[0].mxu0
        %v3707 = vadd.f32 0.0, %v3706
        %v3708 = vpop.f32.mrb[0].mxu0
        %v3709 = vadd.f32 0.0, %v3708
        %v3710 = vpop.f32.mrb[0].mxu0
        %v3711 = vadd.f32 0.0, %v3710
        %3712 = vmatprep.mubr.bf16.mxu0 %v3127
        %3713 = vmatmul.mubr.bf16.gmra.mrb[0].mxu0 %v3126
        %v3714 = vpop.f32.mrb[0].mxu0
        %v3715 = vadd.f32 0.0, %v3714
        %v3716 = vpop.f32.mrb[0].mxu0
        %v3717 = vadd.f32 0.0, %v3716
        %v3718 = vpop.f32.mrb[0].mxu0
        %v3719 = vadd.f32 0.0, %v3718
        %v3720 = vpop.f32.mrb[0].mxu0
        %v3721 = vadd.f32 0.0, %v3720
        %3722 = vmatprep.mubr.bf16.mxu0 %v3131
        %3723 = vmatmul.mubr.bf16.gmra.mrb[0].mxu0 %v3130
        %v3724 = vpop.f32.mrb[0].mxu0
        %v3725 = vadd.f32 0.0, %v3724
        %v3726 = vpop.f32.mrb[0].mxu0
        %v3727 = vadd.f32 0.0, %v3726
        %v3728 = vpop.f32.mrb[0].mxu0
        %v3729 = vadd.f32 0.0, %v3728
        %v3730 = vpop.f32.mrb[0].mxu0
        %v3731 = vadd.f32 0.0, %v3730
        %3732 = vmatprep.mubr.bf16.mxu0 %v3135
        %3733 = vmatmul.mubr.bf16.gmra.mrb[0].mxu0 %v3134
        %v3734 = vpop.f32.mrb[0].mxu0
        %v3735 = vadd.f32 0.0, %v3734
        %v3736 = vpop.f32.mrb[0].mxu0
        %v3737 = vadd.f32 0.0, %v3736
        %v3738 = vpop.f32.mrb[0].mxu0
        %v3739 = vadd.f32 0.0, %v3738
        %v3740 = vpop.f32.mrb[0].mxu0
        %v3741 = vadd.f32 0.0, %v3740
        %3742 = vmatprep.mubr.bf16.mxu0 %v3139
        %3743 = vmatmul.mubr.bf16.gmra.mrb[0].mxu0 %v3138
        %v3744 = vpop.f32.mrb[0].mxu0
        %v3745 = vadd.f32 0.0, %v3744
        %v3746 = vpop.f32.mrb[0].mxu0
        %v3747 = vadd.f32 0.0, %v3746
        %v3748 = vpop.f32.mrb[0].mxu0
        %v3749 = vadd.f32 0.0, %v3748
        %v3750 = vpop.f32.mrb[0].mxu0
        %v3751 = vadd.f32 0.0, %v3750
        %3752 = vmatprep.mubr.bf16.mxu0 %v3143
        %3753 = vmatmul.mubr.bf16.gmra.mrb[0].mxu0 %v3142
        %v3754 = vpop.f32.mrb[0].mxu0
        %v3755 = vadd.f32 0.0, %v3754
        %v3756 = vpop.f32.mrb[0].mxu0
        %v3757 = vadd.f32 0.0, %v3756
        %v3758 = vpop.f32.mrb[0].mxu0
        %v3759 = vadd.f32 0.0, %v3758
        %v3760 = vpop.f32.mrb[0].mxu0
        %v3761 = vadd.f32 0.0, %v3760
        %3762 = vmatprep.mubr.bf16.mxu0 %v3147
        %3763 = vmatmul.mubr.bf16.gmra.mrb[0].mxu0 %v3146
        %v3764 = vpop.f32.mrb[0].mxu0
        %v3765 = vadd.f32 0.0, %v3764
        %v3766 = vpop.f32.mrb[0].mxu0
        %v3767 = vadd.f32 0.0, %v3766
        %v3768 = vpop.f32.mrb[0].mxu0
        %v3769 = vadd.f32 0.0, %v3768
        %v3770 = vpop.f32.mrb[0].mxu0
        %v3771 = vadd.f32 0.0, %v3770
        %3772 = vmatprep.mubr.bf16.mxu0 %v3151
        %3773 = vmatmul.mubr.bf16.gmra.mrb[0].mxu0 %v3150
        %v3774 = vpop.f32.mrb[0].mxu0
        %v3775 = vadd.f32 0.0, %v3774
        %v3776 = vpop.f32.mrb[0].mxu0
        %v3777 = vadd.f32 0.0, %v3776
        %v3778 = vpop.f32.mrb[0].mxu0
        %v3779 = vadd.f32 0.0, %v3778
        %v3780 = vpop.f32.mrb[0].mxu0
        %v3781 = vadd.f32 0.0, %v3780
        %3782 = vmatprep.mubr.bf16.mxu0 %v3155
        %3783 = vmatmul.mubr.bf16.gmra.mrb[0].mxu0 %v3154
        %v3784 = vpop.f32.mrb[0].mxu0
        %v3785 = vadd.f32 0.0, %v3784
        %v3786 = vpop.f32.mrb[0].mxu0
        %v3787 = vadd.f32 0.0, %v3786
        %v3788 = vpop.f32.mrb[0].mxu0
        %v3789 = vadd.f32 0.0, %v3788
        %v3790 = vpop.f32.mrb[0].mxu0
        %v3791 = vadd.f32 0.0, %v3790
        %3792 = vmatprep.mubr.bf16.mxu0 %v3159
        %3793 = vmatmul.mubr.bf16.gmra.mrb[0].mxu0 %v3158
        %v3794 = vpop.f32.mrb[0].mxu0
        %v3795 = vadd.f32 0.0, %v3794
        %v3796 = vpop.f32.mrb[0].mxu0
        %v3797 = vadd.f32 0.0, %v3796
        %v3798 = vpop.f32.mrb[0].mxu0
        %v3799 = vadd.f32 0.0, %v3798
        %v3800 = vpop.f32.mrb[0].mxu0
        %v3801 = vadd.f32 0.0, %v3800
        %3802 = vdwg.mxu0
        %3803 = vmatprep.subr.bf16.mxu0 %v3515
        %3804 = vmatpush1.bf16.msra.mxu0 %v3514
        %3805 = vmatprep.subr.bf16.mxu0 %v3517
        %3806 = vmatpush1.bf16.msra.mxu0 %v3516
        %3807 = vmatprep.subr.bf16.mxu0 %v3519
        %3808 = vmatpush1.bf16.msra.mxu0 %v3518
        %3809 = vmatprep.subr.bf16.mxu0 %v3521
        %3810 = vmatpush1.bf16.msra.mxu0 %v3520
        %3811 = vmatprep.subr.bf16.mxu0 %v3523
        %3812 = vmatpush1.bf16.msra.mxu0 %v3522
        %3813 = vmatprep.subr.bf16.mxu0 %v3525
        %3814 = vmatpush1.bf16.msra.mxu0 %v3524
        %3815 = vmatprep.subr.bf16.mxu0 %v3527
        %3816 = vmatpush1.bf16.msra.mxu0 %v3526
        %3817 = vmatprep.subr.bf16.mxu0 %v3529
        %3818 = vmatpush1.bf16.msra.mxu0 %v3528
        %3819 = vmatprep.subr.bf16.mxu0 %v3531
        %3820 = vmatpush1.bf16.msra.mxu0 %v3530
        %3821 = vmatprep.subr.bf16.mxu0 %v3533
        %3822 = vmatpush1.bf16.msra.mxu0 %v3532
        %3823 = vmatprep.subr.bf16.mxu0 %v3535
        %3824 = vmatpush1.bf16.msra.mxu0 %v3534
        %3825 = vmatprep.subr.bf16.mxu0 %v3537
        %3826 = vmatpush1.bf16.msra.mxu0 %v3536
        %3827 = vmatprep.subr.bf16.mxu0 %v3539
        %3828 = vmatpush1.bf16.msra.mxu0 %v3538
        %3829 = vmatprep.subr.bf16.mxu0 %v3541
        %3830 = vmatpush1.bf16.msra.mxu0 %v3540
        %3831 = vmatprep.subr.bf16.mxu0 %v3543
        %3832 = vmatpush1.bf16.msra.mxu0 %v3542
        %3833 = vmatprep.subr.bf16.mxu0 %v3545
        %3834 = vmatpush1.bf16.msra.mxu0 %v3544
        %3835 = vmatprep.mubr.bf16.mxu0 %v3101
        %3836 = vmatmul.mubr.bf16.gmra.mrb[0].mxu0 %v3100
        %v3837 = vpop.f32.mrb[0].mxu0
        %v3838 = vadd.f32 %v3645, %v3837
        %v3839 = vpop.f32.mrb[0].mxu0
        %v3840 = vadd.f32 %v3647, %v3839
        %v3841 = vpop.f32.mrb[0].mxu0
        %v3842 = vadd.f32 %v3649, %v3841
        %v3843 = vpop.f32.mrb[0].mxu0
        %v3844 = vadd.f32 %v3651, %v3843
        %3845 = vmatprep.mubr.bf16.mxu0 %v3105
        %3846 = vmatmul.mubr.bf16.gmra.mrb[0].mxu0 %v3104
        %v3847 = vpop.f32.mrb[0].mxu0
        %v3848 = vadd.f32 %v3655, %v3847
        %v3849 = vpop.f32.mrb[0].mxu0
        %v3850 = vadd.f32 %v3657, %v3849
        %v3851 = vpop.f32.mrb[0].mxu0
        %v3852 = vadd.f32 %v3659, %v3851
        %v3853 = vpop.f32.mrb[0].mxu0
        %v3854 = vadd.f32 %v3661, %v3853
        %3855 = vmatprep.mubr.bf16.mxu0 %v3109
        %3856 = vmatmul.mubr.bf16.gmra.mrb[0].mxu0 %v3108
        %v3857 = vpop.f32.mrb[0].mxu0
        %v3858 = vadd.f32 %v3665, %v3857
        %v3859 = vpop.f32.mrb[0].mxu0
        %v3860 = vadd.f32 %v3667, %v3859
        %v3861 = vpop.f32.mrb[0].mxu0
        %v3862 = vadd.f32 %v3669, %v3861
        %v3863 = vpop.f32.mrb[0].mxu0
        %v3864 = vadd.f32 %v3671, %v3863
        %3865 = vmatprep.mubr.bf16.mxu0 %v3113
        %3866 = vmatmul.mubr.bf16.gmra.mrb[0].mxu0 %v3112
        %v3867 = vpop.f32.mrb[0].mxu0
        %v3868 = vadd.f32 %v3675, %v3867
        %v3869 = vpop.f32.mrb[0].mxu0
        %v3870 = vadd.f32 %v3677, %v3869
        %v3871 = vpop.f32.mrb[0].mxu0
        %v3872 = vadd.f32 %v3679, %v3871
        %v3873 = vpop.f32.mrb[0].mxu0
        %v3874 = vadd.f32 %v3681, %v3873
        %3875 = vmatprep.mubr.bf16.mxu0 %v3117
        %3876 = vmatmul.mubr.bf16.gmra.mrb[0].mxu0 %v3116
        %v3877 = vpop.f32.mrb[0].mxu0
        %v3878 = vadd.f32 %v3685, %v3877
        %v3879 = vpop.f32.mrb[0].mxu0
        %v3880 = vadd.f32 %v3687, %v3879
        %v3881 = vpop.f32.mrb[0].mxu0
        %v3882 = vadd.f32 %v3689, %v3881
        %v3883 = vpop.f32.mrb[0].mxu0
        %v3884 = vadd.f32 %v3691, %v3883
        %3885 = vmatprep.mubr.bf16.mxu0 %v3121
        %3886 = vmatmul.mubr.bf16.gmra.mrb[0].mxu0 %v3120
        %v3887 = vpop.f32.mrb[0].mxu0
        %v3888 = vadd.f32 %v3695, %v3887
        %v3889 = vpop.f32.mrb[0].mxu0
        %v3890 = vadd.f32 %v3697, %v3889
        %v3891 = vpop.f32.mrb[0].mxu0
        %v3892 = vadd.f32 %v3699, %v3891
        %v3893 = vpop.f32.mrb[0].mxu0
        %v3894 = vadd.f32 %v3701, %v3893
        %3895 = vmatprep.mubr.bf16.mxu0 %v3125
        %3896 = vmatmul.mubr.bf16.gmra.mrb[0].mxu0 %v3124
        %v3897 = vpop.f32.mrb[0].mxu0
        %v3898 = vadd.f32 %v3705, %v3897
        %v3899 = vpop.f32.mrb[0].mxu0
        %v3900 = vadd.f32 %v3707, %v3899
        %v3901 = vpop.f32.mrb[0].mxu0
        %v3902 = vadd.f32 %v3709, %v3901
        %v3903 = vpop.f32.mrb[0].mxu0
        %v3904 = vadd.f32 %v3711, %v3903
        %3905 = vmatprep.mubr.bf16.mxu0 %v3129
        %3906 = vmatmul.mubr.bf16.gmra.mrb[0].mxu0 %v3128
        %v3907 = vpop.f32.mrb[0].mxu0
        %v3908 = vadd.f32 %v3715, %v3907
        %v3909 = vpop.f32.mrb[0].mxu0
        %v3910 = vadd.f32 %v3717, %v3909
        %v3911 = vpop.f32.mrb[0].mxu0
        %v3912 = vadd.f32 %v3719, %v3911
        %v3913 = vpop.f32.mrb[0].mxu0
        %v3914 = vadd.f32 %v3721, %v3913
        %3915 = vmatprep.mubr.bf16.mxu0 %v3133
        %3916 = vmatmul.mubr.bf16.gmra.mrb[0].mxu0 %v3132
        %v3917 = vpop.f32.mrb[0].mxu0
        %v3918 = vadd.f32 %v3725, %v3917
        %v3919 = vpop.f32.mrb[0].mxu0
        %v3920 = vadd.f32 %v3727, %v3919
        %v3921 = vpop.f32.mrb[0].mxu0
        %v3922 = vadd.f32 %v3729, %v3921
        %v3923 = vpop.f32.mrb[0].mxu0
        %v3924 = vadd.f32 %v3731, %v3923
        %3925 = vmatprep.mubr.bf16.mxu0 %v3137
        %3926 = vmatmul.mubr.bf16.gmra.mrb[0].mxu0 %v3136
        %v3927 = vpop.f32.mrb[0].mxu0
        %v3928 = vadd.f32 %v3735, %v3927
        %v3929 = vpop.f32.mrb[0].mxu0
        %v3930 = vadd.f32 %v3737, %v3929
        %v3931 = vpop.f32.mrb[0].mxu0
        %v3932 = vadd.f32 %v3739, %v3931
        %v3933 = vpop.f32.mrb[0].mxu0
        %v3934 = vadd.f32 %v3741, %v3933
        %3935 = vmatprep.mubr.bf16.mxu0 %v3141
        %3936 = vmatmul.mubr.bf16.gmra.mrb[0].mxu0 %v3140
        %v3937 = vpop.f32.mrb[0].mxu0
        %v3938 = vadd.f32 %v3745, %v3937
        %v3939 = vpop.f32.mrb[0].mxu0
        %v3940 = vadd.f32 %v3747, %v3939
        %v3941 = vpop.f32.mrb[0].mxu0
        %v3942 = vadd.f32 %v3749, %v3941
        %v3943 = vpop.f32.mrb[0].mxu0
        %v3944 = vadd.f32 %v3751, %v3943
        %3945 = vmatprep.mubr.bf16.mxu0 %v3145
        %3946 = vmatmul.mubr.bf16.gmra.mrb[0].mxu0 %v3144
        %v3947 = vpop.f32.mrb[0].mxu0
        %v3948 = vadd.f32 %v3755, %v3947
        %v3949 = vpop.f32.mrb[0].mxu0
        %v3950 = vadd.f32 %v3757, %v3949
        %v3951 = vpop.f32.mrb[0].mxu0
        %v3952 = vadd.f32 %v3759, %v3951
        %v3953 = vpop.f32.mrb[0].mxu0
        %v3954 = vadd.f32 %v3761, %v3953
        %3955 = vmatprep.mubr.bf16.mxu0 %v3149
        %3956 = vmatmul.mubr.bf16.gmra.mrb[0].mxu0 %v3148
        %v3957 = vpop.f32.mrb[0].mxu0
        %v3958 = vadd.f32 %v3765, %v3957
        %v3959 = vpop.f32.mrb[0].mxu0
        %v3960 = vadd.f32 %v3767, %v3959
        %v3961 = vpop.f32.mrb[0].mxu0
        %v3962 = vadd.f32 %v3769, %v3961
        %v3963 = vpop.f32.mrb[0].mxu0
        %v3964 = vadd.f32 %v3771, %v3963
        %3965 = vmatprep.mubr.bf16.mxu0 %v3153
        %3966 = vmatmul.mubr.bf16.gmra.mrb[0].mxu0 %v3152
        %v3967 = vpop.f32.mrb[0].mxu0
        %v3968 = vadd.f32 %v3775, %v3967
        %v3969 = vpop.f32.mrb[0].mxu0
        %v3970 = vadd.f32 %v3777, %v3969
        %v3971 = vpop.f32.mrb[0].mxu0
        %v3972 = vadd.f32 %v3779, %v3971
        %v3973 = vpop.f32.mrb[0].mxu0
        %v3974 = vadd.f32 %v3781, %v3973
        %3975 = vmatprep.mubr.bf16.mxu0 %v3157
        %3976 = vmatmul.mubr.bf16.gmra.mrb[0].mxu0 %v3156
        %v3977 = vpop.f32.mrb[0].mxu0
        %v3978 = vadd.f32 %v3785, %v3977
        %v3979 = vpop.f32.mrb[0].mxu0
        %v3980 = vadd.f32 %v3787, %v3979
        %v3981 = vpop.f32.mrb[0].mxu0
        %v3982 = vadd.f32 %v3789, %v3981
        %v3983 = vpop.f32.mrb[0].mxu0
        %v3984 = vadd.f32 %v3791, %v3983
        %3985 = vmatprep.mubr.bf16.mxu0 %v3161
        %3986 = vmatmul.mubr.bf16.gmra.mrb[0].mxu0 %v3160
        %v3987 = vpop.f32.mrb[0].mxu0
        %v3988 = vadd.f32 %v3795, %v3987
        %v3989 = vpop.f32.mrb[0].mxu0
        %v3990 = vadd.f32 %v3797, %v3989
        %v3991 = vpop.f32.mrb[0].mxu0
        %v3992 = vadd.f32 %v3799, %v3991
        %v3993 = vpop.f32.mrb[0].mxu0
        %v3994 = vadd.f32 %v3801, %v3993
        %3995 = vdwg.mxu0
        %v3996 = vadd.f32 %v3162, %v3838
        %v3997 = vadd.f32 %v3163, %v3840
        %v3998 = vadd.f32 %v3164, %v3842
        %v3999 = vadd.f32 %v3165, %v3844
        %v4000 = vadd.f32 %v3166, %v3848
        %v4001 = vadd.f32 %v3167, %v3850
        %v4002 = vadd.f32 %v3168, %v3852
        %v4003 = vadd.f32 %v3169, %v3854
        %v4004 = vadd.f32 %v3170, %v3858
        %v4005 = vadd.f32 %v3171, %v3860
        %v4006 = vadd.f32 %v3172, %v3862
        %v4007 = vadd.f32 %v3173, %v3864
        %v4008 = vadd.f32 %v3174, %v3868
        %v4009 = vadd.f32 %v3175, %v3870
        %v4010 = vadd.f32 %v3176, %v3872
        %v4011 = vadd.f32 %v3177, %v3874
        %v4012 = vadd.f32 %v3178, %v3878
        %v4013 = vadd.f32 %v3179, %v3880
        %v4014 = vadd.f32 %v3180, %v3882
        %v4015 = vadd.f32 %v3181, %v3884
        %v4016 = vadd.f32 %v3182, %v3888
        %v4017 = vadd.f32 %v3183, %v3890
        %v4018 = vadd.f32 %v3184, %v3892
        %v4019 = vadd.f32 %v3185, %v3894
        %v4020 = vadd.f32 %v3186, %v3898
        %v4021 = vadd.f32 %v3187, %v3900
        %v4022 = vadd.f32 %v3188, %v3902
        %v4023 = vadd.f32 %v3189, %v3904
        %v4024 = vadd.f32 %v3190, %v3908
        %v4025 = vadd.f32 %v3191, %v3910
        %v4026 = vadd.f32 %v3192, %v3912
        %v4027 = vadd.f32 %v3193, %v3914
        %v4028 = vadd.f32 %v3194, %v3918
        %v4029 = vadd.f32 %v3195, %v3920
        %v4030 = vadd.f32 %v3196, %v3922
        %v4031 = vadd.f32 %v3197, %v3924
        %v4032 = vadd.f32 %v3198, %v3928
        %v4033 = vadd.f32 %v3199, %v3930
        %v4034 = vadd.f32 %v3200, %v3932
        %v4035 = vadd.f32 %v3201, %v3934
        %v4036 = vadd.f32 %v3202, %v3938
        %v4037 = vadd.f32 %v3203, %v3940
        %v4038 = vadd.f32 %v3204, %v3942
        %v4039 = vadd.f32 %v3205, %v3944
        %v4040 = vadd.f32 %v3206, %v3948
        %v4041 = vadd.f32 %v3207, %v3950
        %v4042 = vadd.f32 %v3208, %v3952
        %v4043 = vadd.f32 %v3209, %v3954
        %v4044 = vadd.f32 %v3210, %v3958
        %v4045 = vadd.f32 %v3211, %v3960
        %v4046 = vadd.f32 %v3212, %v3962
        %v4047 = vadd.f32 %v3213, %v3964
        %v4048 = vadd.f32 %v3214, %v3968
        %v4049 = vadd.f32 %v3215, %v3970
        %v4050 = vadd.f32 %v3216, %v3972
        %v4051 = vadd.f32 %v3217, %v3974
        %v4052 = vadd.f32 %v3218, %v3978
        %v4053 = vadd.f32 %v3219, %v3980
        %v4054 = vadd.f32 %v3220, %v3982
        %v4055 = vadd.f32 %v3221, %v3984
        %v4056 = vadd.f32 %v3222, %v3988
        %v4057 = vadd.f32 %v3223, %v3990
        %v4058 = vadd.f32 %v3224, %v3992
        %v4059 = vadd.f32 %v3225, %v3994
        %4060 = vst [vmem:[#allocation2] sm:$0xff] %v3996
        %4061 = vst [vmem:[#allocation2 + $0x8] sm:$0xff] %v3997
        %4062 = vst [vmem:[#allocation2 + $0x10] sm:$0xff] %v3998
        %4063 = vst [vmem:[#allocation2 + $0x18] sm:$0xff] %v3999
        %4064 = vst [vmem:[#allocation2 + $0x20] sm:$0xff] %v4000
        %4065 = vst [vmem:[#allocation2 + $0x28] sm:$0xff] %v4001
        %4066 = vst [vmem:[#allocation2 + $0x30] sm:$0xff] %v4002
        %4067 = vst [vmem:[#allocation2 + $0x38] sm:$0xff] %v4003
        %4068 = vst [vmem:[#allocation2 + $0x40] sm:$0xff] %v4004
        %4069 = vst [vmem:[#allocation2 + $0x48] sm:$0xff] %v4005
        %4070 = vst [vmem:[#allocation2 + $0x50] sm:$0xff] %v4006
        %4071 = vst [vmem:[#allocation2 + $0x58] sm:$0xff] %v4007
        %4072 = vst [vmem:[#allocation2 + $0x60] sm:$0xff] %v4008
        %4073 = vst [vmem:[#allocation2 + $0x68] sm:$0xff] %v4009
        %4074 = vst [vmem:[#allocation2 + $0x70] sm:$0xff] %v4010
        %4075 = vst [vmem:[#allocation2 + $0x78] sm:$0xff] %v4011
        %4076 = vst [vmem:[#allocation2 + $0x80] sm:$0xff] %v4012
        %4077 = vst [vmem:[#allocation2 + $0x88] sm:$0xff] %v4013
        %4078 = vst [vmem:[#allocation2 + $0x90] sm:$0xff] %v4014
        %4079 = vst [vmem:[#allocation2 + $0x98] sm:$0xff] %v4015
        %4080 = vst [vmem:[#allocation2 + $0xa0] sm:$0xff] %v4016
        %4081 = vst [vmem:[#allocation2 + $0xa8] sm:$0xff] %v4017
        %4082 = vst [vmem:[#allocation2 + $0xb0] sm:$0xff] %v4018
        %4083 = vst [vmem:[#allocation2 + $0xb8] sm:$0xff] %v4019
        %4084 = vst [vmem:[#allocation2 + $0xc0] sm:$0xff] %v4020
        %4085 = vst [vmem:[#allocation2 + $0xc8] sm:$0xff] %v4021
        %4086 = vst [vmem:[#allocation2 + $0xd0] sm:$0xff] %v4022
        %4087 = vst [vmem:[#allocation2 + $0xd8] sm:$0xff] %v4023
        %4088 = vst [vmem:[#allocation2 + $0xe0] sm:$0xff] %v4024
        %4089 = vst [vmem:[#allocation2 + $0xe8] sm:$0xff] %v4025
        %4090 = vst [vmem:[#allocation2 + $0xf0] sm:$0xff] %v4026
        %4091 = vst [vmem:[#allocation2 + $0xf8] sm:$0xff] %v4027
        %4092 = vst [vmem:[#allocation2 + $0x100] sm:$0xff] %v4028
        %4093 = vst [vmem:[#allocation2 + $0x108] sm:$0xff] %v4029
        %4094 = vst [vmem:[#allocation2 + $0x110] sm:$0xff] %v4030
        %4095 = vst [vmem:[#allocation2 + $0x118] sm:$0xff] %v4031
        %4096 = vst [vmem:[#allocation2 + $0x120] sm:$0xff] %v4032
        %4097 = vst [vmem:[#allocation2 + $0x128] sm:$0xff] %v4033
        %4098 = vst [vmem:[#allocation2 + $0x130] sm:$0xff] %v4034
        %4099 = vst [vmem:[#allocation2 + $0x138] sm:$0xff] %v4035
        %4100 = vst [vmem:[#allocation2 + $0x140] sm:$0xff] %v4036
        %4101 = vst [vmem:[#allocation2 + $0x148] sm:$0xff] %v4037
        %4102 = vst [vmem:[#allocation2 + $0x150] sm:$0xff] %v4038
        %4103 = vst [vmem:[#allocation2 + $0x158] sm:$0xff] %v4039
        %4104 = vst [vmem:[#allocation2 + $0x160] sm:$0xff] %v4040
        %4105 = vst [vmem:[#allocation2 + $0x168] sm:$0xff] %v4041
        %4106 = vst [vmem:[#allocation2 + $0x170] sm:$0xff] %v4042
        %4107 = vst [vmem:[#allocation2 + $0x178] sm:$0xff] %v4043
        %4108 = vst [vmem:[#allocation2 + $0x180] sm:$0xff] %v4044
        %4109 = vst [vmem:[#allocation2 + $0x188] sm:$0xff] %v4045
        %4110 = vst [vmem:[#allocation2 + $0x190] sm:$0xff] %v4046
        %4111 = vst [vmem:[#allocation2 + $0x198] sm:$0xff] %v4047
        %4112 = vst [vmem:[#allocation2 + $0x1a0] sm:$0xff] %v4048
        %4113 = vst [vmem:[#allocation2 + $0x1a8] sm:$0xff] %v4049
        %4114 = vst [vmem:[#allocation2 + $0x1b0] sm:$0xff] %v4050
        %4115 = vst [vmem:[#allocation2 + $0x1b8] sm:$0xff] %v4051
        %4116 = vst [vmem:[#allocation2 + $0x1c0] sm:$0xff] %v4052
        %4117 = vst [vmem:[#allocation2 + $0x1c8] sm:$0xff] %v4053
        %4118 = vst [vmem:[#allocation2 + $0x1d0] sm:$0xff] %v4054
        %4119 = vst [vmem:[#allocation2 + $0x1d8] sm:$0xff] %v4055
        %4120 = vst [vmem:[#allocation2 + $0x1e0] sm:$0xff] %v4056
        %4121 = vst [vmem:[#allocation2 + $0x1e8] sm:$0xff] %v4057
        %4122 = vst [vmem:[#allocation2 + $0x1f0] sm:$0xff] %v4058
        %4123 = vst [vmem:[#allocation2 + $0x1f8] sm:$0xff] %v4059
        %p4124 = scmp.eq.s32.totalorder %s25, 2
        // Predicated region
        $region45: #{expert_forward_prepped.1} parent=31 // pred_check
          %p4125 = pneg %p4124
        $region46: #{expert_forward_prepped.1} parent=31 // pred_check_branch
          %4127 = sbr.rel (%p4125) target = $region48
        $region47: #{expert_forward_prepped.1} parent=31 // pred_region
          %v4128 = vld [vmem:[#allocation2] sm:$0xff]
          %v4129 = vld [vmem:[#allocation2 + $0x8] sm:$0xff]
          %v4130 = vld [vmem:[#allocation2 + $0x10] sm:$0xff]
          %v4131 = vld [vmem:[#allocation2 + $0x18] sm:$0xff]
          %v4132 = vld [vmem:[#allocation2 + $0x20] sm:$0xff]
          %v4133 = vld [vmem:[#allocation2 + $0x28] sm:$0xff]
          %v4134 = vld [vmem:[#allocation2 + $0x30] sm:$0xff]
          %v4135 = vld [vmem:[#allocation2 + $0x38] sm:$0xff]
          %v4136 = vld [vmem:[#allocation2 + $0x40] sm:$0xff]
          %v4137 = vld [vmem:[#allocation2 + $0x48] sm:$0xff]
          %v4138 = vld [vmem:[#allocation2 + $0x50] sm:$0xff]
          %v4139 = vld [vmem:[#allocation2 + $0x58] sm:$0xff]
          %v4140 = vld [vmem:[#allocation2 + $0x60] sm:$0xff]
          %v4141 = vld [vmem:[#allocation2 + $0x68] sm:$0xff]
          %v4142 = vld [vmem:[#allocation2 + $0x70] sm:$0xff]
          %v4143 = vld [vmem:[#allocation2 + $0x78] sm:$0xff]
          %v4144 = vld [vmem:[#allocation2 + $0x80] sm:$0xff]
          %v4145 = vld [vmem:[#allocation2 + $0x88] sm:$0xff]
          %v4146 = vld [vmem:[#allocation2 + $0x90] sm:$0xff]
          %v4147 = vld [vmem:[#allocation2 + $0x98] sm:$0xff]
          %v4148 = vld [vmem:[#allocation2 + $0xa0] sm:$0xff]
          %v4149 = vld [vmem:[#allocation2 + $0xa8] sm:$0xff]
          %v4150 = vld [vmem:[#allocation2 + $0xb0] sm:$0xff]
          %v4151 = vld [vmem:[#allocation2 + $0xb8] sm:$0xff]
          %v4152 = vld [vmem:[#allocation2 + $0xc0] sm:$0xff]
          %v4153 = vld [vmem:[#allocation2 + $0xc8] sm:$0xff]
          %v4154 = vld [vmem:[#allocation2 + $0xd0] sm:$0xff]
          %v4155 = vld [vmem:[#allocation2 + $0xd8] sm:$0xff]
          %v4156 = vld [vmem:[#allocation2 + $0xe0] sm:$0xff]
          %v4157 = vld [vmem:[#allocation2 + $0xe8] sm:$0xff]
          %v4158 = vld [vmem:[#allocation2 + $0xf0] sm:$0xff]
          %v4159 = vld [vmem:[#allocation2 + $0xf8] sm:$0xff]
          %v4160 = vld [vmem:[#allocation2 + $0x100] sm:$0xff]
          %v4161 = vld [vmem:[#allocation2 + $0x108] sm:$0xff]
          %v4162 = vld [vmem:[#allocation2 + $0x110] sm:$0xff]
          %v4163 = vld [vmem:[#allocation2 + $0x118] sm:$0xff]
          %v4164 = vld [vmem:[#allocation2 + $0x120] sm:$0xff]
          %v4165 = vld [vmem:[#allocation2 + $0x128] sm:$0xff]
          %v4166 = vld [vmem:[#allocation2 + $0x130] sm:$0xff]
          %v4167 = vld [vmem:[#allocation2 + $0x138] sm:$0xff]
          %v4168 = vld [vmem:[#allocation2 + $0x140] sm:$0xff]
          %v4169 = vld [vmem:[#allocation2 + $0x148] sm:$0xff]
          %v4170 = vld [vmem:[#allocation2 + $0x150] sm:$0xff]
          %v4171 = vld [vmem:[#allocation2 + $0x158] sm:$0xff]
          %v4172 = vld [vmem:[#allocation2 + $0x160] sm:$0xff]
          %v4173 = vld [vmem:[#allocation2 + $0x168] sm:$0xff]
          %v4174 = vld [vmem:[#allocation2 + $0x170] sm:$0xff]
          %v4175 = vld [vmem:[#allocation2 + $0x178] sm:$0xff]
          %v4176 = vld [vmem:[#allocation2 + $0x180] sm:$0xff]
          %v4177 = vld [vmem:[#allocation2 + $0x188] sm:$0xff]
          %v4178 = vld [vmem:[#allocation2 + $0x190] sm:$0xff]
          %v4179 = vld [vmem:[#allocation2 + $0x198] sm:$0xff]
          %v4180 = vld [vmem:[#allocation2 + $0x1a0] sm:$0xff]
          %v4181 = vld [vmem:[#allocation2 + $0x1a8] sm:$0xff]
          %v4182 = vld [vmem:[#allocation2 + $0x1b0] sm:$0xff]
          %v4183 = vld [vmem:[#allocation2 + $0x1b8] sm:$0xff]
          %v4184 = vld [vmem:[#allocation2 + $0x1c0] sm:$0xff]
          %v4185 = vld [vmem:[#allocation2 + $0x1c8] sm:$0xff]
          %v4186 = vld [vmem:[#allocation2 + $0x1d0] sm:$0xff]
          %v4187 = vld [vmem:[#allocation2 + $0x1d8] sm:$0xff]
          %v4188 = vld [vmem:[#allocation2 + $0x1e0] sm:$0xff]
          %v4189 = vld [vmem:[#allocation2 + $0x1e8] sm:$0xff]
          %v4190 = vld [vmem:[#allocation2 + $0x1f0] sm:$0xff]
          %v4191 = vld [vmem:[#allocation2 + $0x1f8] sm:$0xff]
          %v4192 = vpack.c.bf16 %v4130, %v4128
          %v4193 = vpack.c.bf16 %v4131, %v4129
          %v4194 = vpack.c.bf16 %v4134, %v4132
          %v4195 = vpack.c.bf16 %v4135, %v4133
          %v4196 = vpack.c.bf16 %v4138, %v4136
          %v4197 = vpack.c.bf16 %v4139, %v4137
          %v4198 = vpack.c.bf16 %v4142, %v4140
          %v4199 = vpack.c.bf16 %v4143, %v4141
          %v4200 = vpack.c.bf16 %v4146, %v4144
          %v4201 = vpack.c.bf16 %v4147, %v4145
          %v4202 = vpack.c.bf16 %v4150, %v4148
          %v4203 = vpack.c.bf16 %v4151, %v4149
          %v4204 = vpack.c.bf16 %v4154, %v4152
          %v4205 = vpack.c.bf16 %v4155, %v4153
          %v4206 = vpack.c.bf16 %v4158, %v4156
          %v4207 = vpack.c.bf16 %v4159, %v4157
          %v4208 = vpack.c.bf16 %v4162, %v4160
          %v4209 = vpack.c.bf16 %v4163, %v4161
          %v4210 = vpack.c.bf16 %v4166, %v4164
          %v4211 = vpack.c.bf16 %v4167, %v4165
          %v4212 = vpack.c.bf16 %v4170, %v4168
          %v4213 = vpack.c.bf16 %v4171, %v4169
          %v4214 = vpack.c.bf16 %v4174, %v4172
          %v4215 = vpack.c.bf16 %v4175, %v4173
          %v4216 = vpack.c.bf16 %v4178, %v4176
          %v4217 = vpack.c.bf16 %v4179, %v4177
          %v4218 = vpack.c.bf16 %v4182, %v4180
          %v4219 = vpack.c.bf16 %v4183, %v4181
          %v4220 = vpack.c.bf16 %v4186, %v4184
          %v4221 = vpack.c.bf16 %v4187, %v4185
          %v4222 = vpack.c.bf16 %v4190, %v4188
          %v4223 = vpack.c.bf16 %v4191, %v4189
          %v4256 = vunpack.c.l.b16 %v4192
          %v4257 = vunpack.c.l.b16 %v4193
          %v4258 = vunpack.c.h.b16 %v4192
          %v4259 = vunpack.c.h.b16 %v4193
          %v4260 = vunpack.c.l.b16 %v4194
          %v4261 = vunpack.c.l.b16 %v4195
          %v4262 = vunpack.c.h.b16 %v4194
          %v4263 = vunpack.c.h.b16 %v4195
          %v4264 = vunpack.c.l.b16 %v4196
          %v4265 = vunpack.c.l.b16 %v4197
          %v4266 = vunpack.c.h.b16 %v4196
          %v4267 = vunpack.c.h.b16 %v4197
          %v4268 = vunpack.c.l.b16 %v4198
          %v4269 = vunpack.c.l.b16 %v4199
          %v4270 = vunpack.c.h.b16 %v4198
          %v4271 = vunpack.c.h.b16 %v4199
          %v4272 = vunpack.c.l.b16 %v4200
          %v4273 = vunpack.c.l.b16 %v4201
          %v4274 = vunpack.c.h.b16 %v4200
          %v4275 = vunpack.c.h.b16 %v4201
          %v4276 = vunpack.c.l.b16 %v4202
          %v4277 = vunpack.c.l.b16 %v4203
          %v4278 = vunpack.c.h.b16 %v4202
          %v4279 = vunpack.c.h.b16 %v4203
          %v4280 = vunpack.c.l.b16 %v4204
          %v4281 = vunpack.c.l.b16 %v4205
          %v4282 = vunpack.c.h.b16 %v4204
          %v4283 = vunpack.c.h.b16 %v4205
          %v4284 = vunpack.c.l.b16 %v4206
          %v4285 = vunpack.c.l.b16 %v4207
          %v4286 = vunpack.c.h.b16 %v4206
          %v4287 = vunpack.c.h.b16 %v4207
          %v4288 = vunpack.c.l.b16 %v4208
          %v4289 = vunpack.c.l.b16 %v4209
          %v4290 = vunpack.c.h.b16 %v4208
          %v4291 = vunpack.c.h.b16 %v4209
          %v4292 = vunpack.c.l.b16 %v4210
          %v4293 = vunpack.c.l.b16 %v4211
          %v4294 = vunpack.c.h.b16 %v4210
          %v4295 = vunpack.c.h.b16 %v4211
          %v4296 = vunpack.c.l.b16 %v4212
          %v4297 = vunpack.c.l.b16 %v4213
          %v4298 = vunpack.c.h.b16 %v4212
          %v4299 = vunpack.c.h.b16 %v4213
          %v4300 = vunpack.c.l.b16 %v4214
          %v4301 = vunpack.c.l.b16 %v4215
          %v4302 = vunpack.c.h.b16 %v4214
          %v4303 = vunpack.c.h.b16 %v4215
          %v4304 = vunpack.c.l.b16 %v4216
          %v4305 = vunpack.c.l.b16 %v4217
          %v4306 = vunpack.c.h.b16 %v4216
          %v4307 = vunpack.c.h.b16 %v4217
          %v4308 = vunpack.c.l.b16 %v4218
          %v4309 = vunpack.c.l.b16 %v4219
          %v4310 = vunpack.c.h.b16 %v4218
          %v4311 = vunpack.c.h.b16 %v4219
          %v4312 = vunpack.c.l.b16 %v4220
          %v4313 = vunpack.c.l.b16 %v4221
          %v4314 = vunpack.c.h.b16 %v4220
          %v4315 = vunpack.c.h.b16 %v4221
          %v4316 = vunpack.c.l.b16 %v4222
          %v4317 = vunpack.c.l.b16 %v4223
          %v4318 = vunpack.c.h.b16 %v4222
          %v4319 = vunpack.c.h.b16 %v4223
          %v4320 = vpack.c.b16 %v4257, %v4256
          %v4321 = vpack.c.b16 %v4259, %v4258
          %v4322 = vpack.c.b16 %v4261, %v4260
          %v4323 = vpack.c.b16 %v4263, %v4262
          %v4324 = vpack.c.b16 %v4265, %v4264
          %v4325 = vpack.c.b16 %v4267, %v4266
          %v4326 = vpack.c.b16 %v4269, %v4268
          %v4327 = vpack.c.b16 %v4271, %v4270
          %v4328 = vpack.c.b16 %v4273, %v4272
          %v4329 = vpack.c.b16 %v4275, %v4274
          %v4330 = vpack.c.b16 %v4277, %v4276
          %v4331 = vpack.c.b16 %v4279, %v4278
          %v4332 = vpack.c.b16 %v4281, %v4280
          %v4333 = vpack.c.b16 %v4283, %v4282
          %v4334 = vpack.c.b16 %v4285, %v4284
          %v4335 = vpack.c.b16 %v4287, %v4286
          %v4336 = vpack.c.b16 %v4289, %v4288
          %v4337 = vpack.c.b16 %v4291, %v4290
          %v4338 = vpack.c.b16 %v4293, %v4292
          %v4339 = vpack.c.b16 %v4295, %v4294
          %v4340 = vpack.c.b16 %v4297, %v4296
          %v4341 = vpack.c.b16 %v4299, %v4298
          %v4342 = vpack.c.b16 %v4301, %v4300
          %v4343 = vpack.c.b16 %v4303, %v4302
          %v4344 = vpack.c.b16 %v4305, %v4304
          %v4345 = vpack.c.b16 %v4307, %v4306
          %v4346 = vpack.c.b16 %v4309, %v4308
          %v4347 = vpack.c.b16 %v4311, %v4310
          %v4348 = vpack.c.b16 %v4313, %v4312
          %v4349 = vpack.c.b16 %v4315, %v4314
          %v4350 = vpack.c.b16 %v4317, %v4316
          %v4351 = vpack.c.b16 %v4319, %v4318
          %4384 = vst [vmem:[%s272] sm:$0xff] %v4320
          %4385 = vst [vmem:[%s272 + $0x8] sm:$0xff] %v4321
          %4386 = vst [vmem:[%s272 + $0x10] sm:$0xff] %v4322
          %4387 = vst [vmem:[%s272 + $0x18] sm:$0xff] %v4323
          %4388 = vst [vmem:[%s272 + $0x20] sm:$0xff] %v4324
          %4389 = vst [vmem:[%s272 + $0x28] sm:$0xff] %v4325
          %4390 = vst [vmem:[%s272 + $0x30] sm:$0xff] %v4326
          %4391 = vst [vmem:[%s272 + $0x38] sm:$0xff] %v4327
          %4392 = vst [vmem:[%s272 + $0x40] sm:$0xff] %v4328
          %4393 = vst [vmem:[%s272 + $0x48] sm:$0xff] %v4329
          %4394 = vst [vmem:[%s272 + $0x50] sm:$0xff] %v4330
          %4395 = vst [vmem:[%s272 + $0x58] sm:$0xff] %v4331
          %4396 = vst [vmem:[%s272 + $0x60] sm:$0xff] %v4332
          %4397 = vst [vmem:[%s272 + $0x68] sm:$0xff] %v4333
          %4398 = vst [vmem:[%s272 + $0x70] sm:$0xff] %v4334
          %4399 = vst [vmem:[%s272 + $0x78] sm:$0xff] %v4335
          %4400 = vst [vmem:[%s272 + $0x80] sm:$0xff] %v4336
          %4401 = vst [vmem:[%s272 + $0x88] sm:$0xff] %v4337
          %4402 = vst [vmem:[%s272 + $0x90] sm:$0xff] %v4338
          %4403 = vst [vmem:[%s272 + $0x98] sm:$0xff] %v4339
          %4404 = vst [vmem:[%s272 + $0xa0] sm:$0xff] %v4340
          %4405 = vst [vmem:[%s272 + $0xa8] sm:$0xff] %v4341
          %4406 = vst [vmem:[%s272 + $0xb0] sm:$0xff] %v4342
          %4407 = vst [vmem:[%s272 + $0xb8] sm:$0xff] %v4343
          %4408 = vst [vmem:[%s272 + $0xc0] sm:$0xff] %v4344
          %4409 = vst [vmem:[%s272 + $0xc8] sm:$0xff] %v4345
          %4410 = vst [vmem:[%s272 + $0xd0] sm:$0xff] %v4346
          %4411 = vst [vmem:[%s272 + $0xd8] sm:$0xff] %v4347
          %4412 = vst [vmem:[%s272 + $0xe0] sm:$0xff] %v4348
          %4413 = vst [vmem:[%s272 + $0xe8] sm:$0xff] %v4349
          %4414 = vst [vmem:[%s272 + $0xf0] sm:$0xff] %v4350
          %4415 = vst [vmem:[%s272 + $0xf8] sm:$0xff] %v4351
        $region48: #{expert_forward_prepped.1} parent=31 // pred_fallthru
          _
        %s4416 = smul.u32 32, %s24
        %p4417 = scmp.lt.s32.totalorder %s4416, 63
        %s4418 = scalar_select %p4417, %s4416, 63
        %s4419 = smul.addr %s4418, 2
        %s4420 = smul.addr %s4419, 4
        %s4421 = scalar_lea.vmem %s3, %s4420
        // Predicated region
        $region49: #{expert_forward_prepped.1} parent=31 // pred_check
          %p4422 = pneg %p128
        $region50: #{expert_forward_prepped.1} parent=31 // pred_check_branch
          %4424 = sbr.rel (%p4422) target = $region52
        $region51: #{expert_forward_prepped.1} parent=31 // pred_region
          %s4425 = smul.u32 32, %s24
        $region52: #{expert_forward_prepped.1} parent=31 // pred_fallthru
          _
      $region32: #{expert_forward_prepped.1} parent=5 // pred_fallthru
        _
      %p4426 = scmp.le.s32.totalorder 2, %s15
      // Predicated region
      $region53: #{expert_forward_prepped.1} parent=5 // pred_check
        %p4427 = pneg %p4426
      $region54: #{expert_forward_prepped.1} parent=5 // pred_check_branch
        %4429 = sbr.rel (%p4427) target = $region56
      $region55: #{expert_forward_prepped.1} parent=5 // pred_region
        %s4430 = ssub.s32 %s15, 2
        // Predicated region
        $region57: #{expert_forward_prepped.1} parent=55 // pred_check
          %p4431 = pneg %p134
        $region58: #{expert_forward_prepped.1} parent=55 // pred_check_branch
          %4433 = sbr.rel (%p4431) target = $region60
        $region59: #{expert_forward_prepped.1} parent=55 // pred_region
          %s4434 = smul.u32 32, %s26
          %p4435 = scmp.lt.s32.totalorder %s4434, 63
          %s4436 = scalar_select %p4435, %s4434, 63
          %s4437 = smul.addr %s4436, 2
          %s4438 = smul.addr %s4437, 4
          %s4439 = scalar_lea.vmem %s3, %s4438
        $region60: #{expert_forward_prepped.1} parent=55 // pred_fallthru
          _
      $region56: #{expert_forward_prepped.1} parent=5 // pred_fallthru
        _
    $region6: #{expert_forward_prepped.1} parent=1 // loop_footer
      %s19 = sadd.s32 1, %s15
    $region7: #{expert_forward_prepped.1} parent=1 // loop_footer_branch
      %14 = sbr.rel target = $region3
    $region8: #{expert_forward_prepped.1} parent=1 // loop_exit
      _
    %4440 = vsyncpa [#allocation4], 1
    %s4441 = scalar_lea.sflag [#allocation4], 1
    %4442 = vsyncpa %s4441, 1
    %4443 = vsyncpa [#allocation6], 1
    %s4444 = scalar_lea.sflag [#allocation6], 1
    %4445 = vsyncpa %s4444, 1

</llo_original>
